<compile_context>
chip_gen: v7x
topology: tpu7x:2x2x1
jax: 0.10.0
libtpu: 0.0.40
codegen_flags: <defaults>
</compile_context>

<pallas_src>
import functools

import jax
import jax.numpy as jnp
import numpy as np
from jax.experimental import pallas as pl
from jax.experimental.pallas import tpu as pltpu


def _relu_conv_bn_kernel(x_ref, w_ref, b_ref, o_ref, xp_ref, *,
                         K, stride, pad, H, W, Ho, Wo):
    """Fused ReLU -> conv2d (per-tap MXU matmuls) -> BN (eval mode).

    x_ref:  (Nb, C_in, H, W)     batch tile, NCHW, unpadded, f32
    w_ref:  (K*K, C_out, C_in)   conv weight with BN scale pre-folded, bf16,
                                 tap-major so w_ref[t] is a leading-axis read
    b_ref:  (C_out, 1)           folded eval-mode BatchNorm shift, f32
    o_ref:  (Nb, C_out, Ho*Wo)   output; lane dim = flattened spatial (dense)
    xp_ref: (Nb, C_in, Hp, Wp)   VMEM scratch used for in-kernel zero padding
    """
    Nb = x_ref.shape[0]
    C_in = x_ref.shape[1]
    Hp, Wp = H + 2 * pad, W + 2 * pad

    # In-kernel zero padding.  The interior is fully rewritten every grid
    # step, so only the four halo strips need zeroing.  (A program_id==0
    # one-time zero would be unsafe under megacore 'parallel' sharding.)
    if pad > 0:
        xp_ref[:, :, :pad, :] = jnp.zeros((Nb, C_in, pad, Wp), xp_ref.dtype)
        xp_ref[:, :, pad + H:, :] = jnp.zeros((Nb, C_in, pad, Wp), xp_ref.dtype)
        xp_ref[:, :, :, :pad] = jnp.zeros((Nb, C_in, Hp, pad), xp_ref.dtype)
        xp_ref[:, :, :, pad + W:] = jnp.zeros((Nb, C_in, Hp, pad), xp_ref.dtype)

    # ReLU(0) == 0, so ReLU-then-pad == pad-then-ReLU.
    xp_ref[:, :, pad:pad + H, pad:pad + W] = jnp.maximum(
        x_ref[...].astype(jnp.float32), 0.0)
    xp = xp_ref[...]                                    # (Nb, C_in, Hp, Wp)

    bias = b_ref[...]                                   # (C_out, 1), f32

    # Per-tap accumulation: K*K small MXU matmuls per image with an f32
    # accumulator.  No (K*K*C_in, Ho*Wo) im2col buffer, no sublane concat.
    for nb in range(Nb):
        acc = None
        for t in range(K * K):
            dy, dx = divmod(t, K)
            tap = jax.lax.slice(
                xp[nb],
                (0, dy, dx),
                (C_in, dy + (Ho - 1) * stride + 1, dx + (Wo - 1) * stride + 1),
                (1, stride, stride))                    # (C_in, Ho, Wo)
            tap = tap.reshape(C_in, Ho * Wo).astype(jnp.bfloat16)
            part = jnp.dot(w_ref[t], tap,               # bf16 x bf16 -> f32
                           preferred_element_type=jnp.float32)
            acc = part if acc is None else acc + part
        o_ref[nb] = (acc + bias).astype(o_ref.dtype)


def relu_conv_bn_forward(x, weight, gamma, beta, running_mean, running_var, *,
                         stride, padding, eps=1e-5,
                         vmem_budget_bytes=8 * 1024 * 1024):
    """Pallas implementation of ReLUConvBN.forward on NCHW input.

    x:      (N, C_in, H, W)      float32, NCHW (PyTorch convention)
    weight: (C_out, C_in, K, K)  conv weight, OIHW (bias=False)
    gamma/beta/running_mean/running_var: (C_out,) BatchNorm parameters
    """
    N, C_in, H, W = x.shape
    C_out, _, K, _ = weight.shape
    Ho = (H + 2 * padding - K) // stride + 1
    Wo = (W + 2 * padding - K) // stride + 1
    Hp, Wp = H + 2 * padding, W + 2 * padding

    # Fold eval-mode BN into per-channel scale/shift; fold the scale into the
    # conv weight (tiny weight-side transform, done once outside the grid).
    s = gamma / jnp.sqrt(running_var + eps)
    b = (beta - running_mean * s).reshape(C_out, 1).astype(jnp.float32)
    # Tap-major fused weight (K*K, C_out, C_in), bf16 MXU operand.
    w_fused = jnp.transpose(weight, (2, 3, 0, 1)).reshape(K * K, C_out, C_in)
    w_fused = (w_fused * s[None, :, None]).astype(jnp.bfloat16)

    # Rough (8,128)-tile-padded VMEM footprint of a buffer.
    def padded_bytes(shape, itemsize):
        sub = -(-shape[-2] // 8) * 8
        lane = -(-shape[-1] // 128) * 128
        lead = int(np.prod(shape[:-2])) if len(shape) > 2 else 1
        return lead * sub * lane * itemsize

    def vmem_estimate(nb):
        return (2 * padded_bytes((nb, C_in, H, W), 4)          # dbl-buf input
                + 2 * padded_bytes((nb, C_out, Ho * Wo), 4)    # dbl-buf output
                + padded_bytes((nb, C_in, Hp, Wp), 4)          # pad scratch
                + padded_bytes((K * K, C_out, C_in), 2)        # resident weight
                + padded_bytes((C_out, 1), 4))

    # Batch-tile size: amortize per-grid-step overhead while staying within a
    # conservative (v5e-safe) VMEM budget; cap unrolled code size.
    Nb = 1
    for cand in range(1, min(N, 8) + 1):
        if N % cand == 0 and vmem_estimate(cand) <= vmem_budget_bytes:
            Nb = cand

    kernel = functools.partial(_relu_conv_bn_kernel, K=K, stride=stride,
                               pad=padding, H=H, W=W, Ho=Ho, Wo=Wo)

    flops = 2 * N * C_out * K * K * C_in * Ho * Wo
    bytes_accessed = (x.size * x.dtype.itemsize + w_fused.size * 2
                      + b.size * 4 + N * C_out * Ho * Wo * x.dtype.itemsize)
    vmem_limit = int(min(max(2 * vmem_estimate(Nb), 8 * 2 ** 20), 64 * 2 ** 20))

    out = pl.pallas_call(
        kernel,
        out_shape=jax.ShapeDtypeStruct((N, C_out, Ho * Wo), x.dtype),
        grid=(N // Nb,),
        in_specs=[
            pl.BlockSpec((Nb, C_in, H, W), lambda n: (n, 0, 0, 0)),
            pl.BlockSpec((K * K, C_out, C_in), lambda n: (0, 0, 0)),
            pl.BlockSpec((C_out, 1), lambda n: (0, 0)),
        ],
        out_specs=pl.BlockSpec((Nb, C_out, Ho * Wo), lambda n: (n, 0, 0)),
        scratch_shapes=[pltpu.VMEM((Nb, C_in, Hp, Wp), jnp.float32)],
        compiler_params=pltpu.CompilerParams(
            dimension_semantics=("parallel",),
            vmem_limit_bytes=vmem_limit),
        cost_estimate=pl.CostEstimate(
            flops=flops, transcendentals=0, bytes_accessed=bytes_accessed),
    )(x, w_fused, b)

    # Free (metadata-only) split of the trailing spatial dim back to NCHW.
    return out.reshape(N, C_out, Ho, Wo)


# ---------------------------------------------------------------------------
# Pure-JAX (lax) reference for verification, in NCHW exactly like PyTorch.
# ---------------------------------------------------------------------------
def relu_conv_bn_reference(x, weight, gamma, beta, mean, var, *,
                           stride, padding, eps=1e-5):
    y = jnp.maximum(x, 0.0)
    y = jax.lax.conv_general_dilated(
        y, weight, window_strides=(stride, stride),
        padding=[(padding, padding), (padding, padding)],
        dimension_numbers=("NCHW", "OIHW", "NCHW"),
        precision=jax.lax.Precision.HIGHEST)
    inv = gamma / jnp.sqrt(var + eps)
    return y * inv[None, :, None, None] + (beta - mean * inv)[None, :, None, None]


if __name__ == "__main__":
    def run_case(key, N, C_in, C_out, H, W, K, stride, padding):
        ks = jax.random.split(key, 4)
        x = jax.random.normal(ks[0], (N, C_in, H, W), jnp.float32)
        weight = jax.random.normal(ks[1], (C_out, C_in, K, K), jnp.float32) * 0.2
        gamma = 1.0 + 0.1 * jax.random.normal(ks[2], (C_out,), jnp.float32)
        beta = 0.1 * jax.random.normal(ks[3], (C_out,), jnp.float32)
        # Fresh PyTorch BatchNorm2d running stats (eval mode).
        mean = jnp.zeros((C_out,), jnp.float32)
        var = jnp.ones((C_out,), jnp.float32)

        out = relu_conv_bn_forward(x, weight, gamma, beta, mean, var,
                                   stride=stride, padding=padding)
        out = jax.block_until_ready(out)

        ref = relu_conv_bn_reference(x, weight, gamma, beta, mean, var,
                                     stride=stride, padding=padding)
        ref = jax.block_until_ready(ref)

        assert out.shape == ref.shape, (out.shape, ref.shape)
        # bf16 MXU operands (f32 accumulation) -> loosened tolerance.
        np.testing.assert_allclose(np.asarray(out), np.asarray(ref),
                                   atol=2e-2, rtol=2e-2)

    k1, k2 = jax.random.split(jax.random.PRNGKey(0))
    # Typical ReLUConvBN usage: 3x3 conv, stride 1, padding 1.
    run_case(k1, N=2, C_in=4, C_out=8, H=16, W=16, K=3, stride=1, padding=1)
    # Also common in NAS cells: 1x1 conv, stride 1, padding 0.
    run_case(k2, N=2, C_in=8, C_out=16, H=16, W=16, K=1, stride=1, padding=0)

    print("KERNEL_OK")
</pallas_src>

<mosaic_0001>
module attributes {stable_mosaic.version = 11 : i64} {
  func.func @_relu_conv_bn_kernel(%arg0: i32, %arg1: memref<2x4x16x16xf32, #tpu.memory_space<vmem>>, %arg2: memref<9x8x4xbf16, #tpu.memory_space<vmem>>, %arg3: memref<8x1xf32, #tpu.memory_space<vmem>>, %arg4: memref<2x8x256xf32, #tpu.memory_space<vmem>>, %arg5: memref<2x4x18x18xf32, #tpu.memory_space<vmem>>) attributes {dimension_semantics = [#tpu.dimension_semantics<parallel>], iteration_bounds = array<i64: 1>, scalar_prefetch = 0 : i64, scratch_operands = 1 : i64, tpu.core_type = #tpu.core_type<tc>, window_params = [{transform_indices = @transform_0, window_bounds = array<i64: 2, 4, 16, 16>}, {pipeline_mode = #tpu.pipeline_mode<synchronous>, transform_indices = @transform_1, window_bounds = array<i64: 9, 8, 4>}, {pipeline_mode = #tpu.pipeline_mode<synchronous>, transform_indices = @transform_2, window_bounds = array<i64: 8, 1>}, {transform_indices = @transform_3, window_bounds = array<i64: 2, 8, 256>}]} {
    %cst = arith.constant 0.000000e+00 : f32
    %0 = vector.broadcast %cst : f32 to vector<2x4x1x18xf32>
    %c0 = arith.constant 0 : index
    %c0_0 = arith.constant 0 : index
    %c0_1 = arith.constant 0 : index
    %c0_2 = arith.constant 0 : index
    %1 = vector.load %arg5[%c0, %c0_0, %c0_1, %c0_2] : memref<2x4x18x18xf32, #tpu.memory_space<vmem>>, vector<2x4x1x18xf32>
    tpu.vector_store %arg5[%c0, %c0_0, %c0_1, %c0_2], %0 {strides = array<i32>} : memref<2x4x18x18xf32, #tpu.memory_space<vmem>>, vector<2x4x1x18xf32>,
    %cst_3 = arith.constant 0.000000e+00 : f32
    %2 = vector.broadcast %cst_3 : f32 to vector<2x4x1x18xf32>
    %c0_4 = arith.constant 0 : index
    %c0_5 = arith.constant 0 : index
    %c17 = arith.constant 17 : index
    %c0_6 = arith.constant 0 : index
    %3 = vector.load %arg5[%c0_4, %c0_5, %c17, %c0_6] : memref<2x4x18x18xf32, #tpu.memory_space<vmem>>, vector<2x4x1x18xf32>
    tpu.vector_store %arg5[%c0_4, %c0_5, %c17, %c0_6], %2 {strides = array<i32>} : memref<2x4x18x18xf32, #tpu.memory_space<vmem>>, vector<2x4x1x18xf32>,
    %cst_7 = arith.constant 0.000000e+00 : f32
    %4 = vector.broadcast %cst_7 : f32 to vector<2x4x18x1xf32>
    %c0_8 = arith.constant 0 : index
    %c0_9 = arith.constant 0 : index
    %c0_10 = arith.constant 0 : index
    %c0_11 = arith.constant 0 : index
    %5 = vector.load %arg5[%c0_8, %c0_9, %c0_10, %c0_11] : memref<2x4x18x18xf32, #tpu.memory_space<vmem>>, vector<2x4x18x1xf32>
    tpu.vector_store %arg5[%c0_8, %c0_9, %c0_10, %c0_11], %4 {strides = array<i32>} : memref<2x4x18x18xf32, #tpu.memory_space<vmem>>, vector<2x4x18x1xf32>,
    %cst_12 = arith.constant 0.000000e+00 : f32
    %6 = vector.broadcast %cst_12 : f32 to vector<2x4x18x1xf32>
    %c0_13 = arith.constant 0 : index
    %c0_14 = arith.constant 0 : index
    %c0_15 = arith.constant 0 : index
    %c17_16 = arith.constant 17 : index
    %7 = vector.load %arg5[%c0_13, %c0_14, %c0_15, %c17_16] : memref<2x4x18x18xf32, #tpu.memory_space<vmem>>, vector<2x4x18x1xf32>
    tpu.vector_store %arg5[%c0_13, %c0_14, %c0_15, %c17_16], %6 {strides = array<i32>} : memref<2x4x18x18xf32, #tpu.memory_space<vmem>>, vector<2x4x18x1xf32>,
    %c0_17 = arith.constant 0 : index
    %c0_18 = arith.constant 0 : index
    %c0_19 = arith.constant 0 : index
    %c0_20 = arith.constant 0 : index
    %8 = vector.load %arg1[%c0_17, %c0_18, %c0_19, %c0_20] : memref<2x4x16x16xf32, #tpu.memory_space<vmem>>, vector<2x4x16x16xf32>
    %cst_21 = arith.constant 0.000000e+00 : f32
    %9 = vector.broadcast %cst_21 : f32 to vector<2x4x16x16xf32>
    %10 = arith.maximumf %8, %9 : vector<2x4x16x16xf32>
    %c0_22 = arith.constant 0 : index
    %c0_23 = arith.constant 0 : index
    %c1 = arith.constant 1 : index
    %c1_24 = arith.constant 1 : index
    %11 = vector.load %arg5[%c0_22, %c0_23, %c1, %c1_24] : memref<2x4x18x18xf32, #tpu.memory_space<vmem>>, vector<2x4x16x16xf32>
    tpu.vector_store %arg5[%c0_22, %c0_23, %c1, %c1_24], %10 {strides = array<i32>} : memref<2x4x18x18xf32, #tpu.memory_space<vmem>>, vector<2x4x16x16xf32>,
    %c0_25 = arith.constant 0 : index
    %c0_26 = arith.constant 0 : index
    %c0_27 = arith.constant 0 : index
    %c0_28 = arith.constant 0 : index
    %12 = vector.load %arg5[%c0_25, %c0_26, %c0_27, %c0_28] : memref<2x4x18x18xf32, #tpu.memory_space<vmem>>, vector<2x4x18x18xf32>
    %c0_29 = arith.constant 0 : index
    %c0_30 = arith.constant 0 : index
    %13 = vector.load %arg3[%c0_29, %c0_30] : memref<8x1xf32, #tpu.memory_space<vmem>>, vector<8x1xf32>
    %14 = vector.extract_strided_slice %12 {offsets = [0, 0, 0, 0], sizes = [1, 4, 18, 18], strides = [1, 1, 1, 1]} : vector<2x4x18x18xf32> to vector<1x4x18x18xf32>
    %15 = vector.shape_cast %14 : vector<1x4x18x18xf32> to vector<4x18x18xf32>
    %16 = vector.extract_strided_slice %15 {offsets = [0, 0, 0], sizes = [4, 16, 16], strides = [1, 1, 1]} : vector<4x18x18xf32> to vector<4x16x16xf32>
    %17 = vector.shape_cast %16 : vector<4x16x16xf32> to vector<4x256xf32>
    %18 = arith.truncf %17 : vector<4x256xf32> to vector<4x256xbf16>
    %c0_31 = arith.constant 0 : index
    %c0_32 = arith.constant 0 : index
    %c0_33 = arith.constant 0 : index
    %19 = vector.load %arg2[%c0_31, %c0_32, %c0_33] : memref<9x8x4xbf16, #tpu.memory_space<vmem>>, vector<1x8x4xbf16>
    %20 = vector.shape_cast %19 : vector<1x8x4xbf16> to vector<8x4xbf16>
    %cst_34 = arith.constant dense<0.000000e+00> : vector<8x256xf32>
    %21 = tpu.matmul %20, %18, %cst_34 {dimension_numbers = #tpu.dot_dimension_numbers<[1], [0], [0], [1], [0, 0, 1, 1], [], []>} : vector<8x4xbf16>, vector<4x256xbf16>, vector<8x256xf32> -> vector<8x256xf32>
    %22 = vector.extract_strided_slice %12 {offsets = [0, 0, 0, 0], sizes = [1, 4, 18, 18], strides = [1, 1, 1, 1]} : vector<2x4x18x18xf32> to vector<1x4x18x18xf32>
    %23 = vector.shape_cast %22 : vector<1x4x18x18xf32> to vector<4x18x18xf32>
    %24 = vector.extract_strided_slice %23 {offsets = [0, 0, 1], sizes = [4, 16, 16], strides = [1, 1, 1]} : vector<4x18x18xf32> to vector<4x16x16xf32>
    %25 = vector.shape_cast %24 : vector<4x16x16xf32> to vector<4x256xf32>
    %26 = arith.truncf %25 : vector<4x256xf32> to vector<4x256xbf16>
    %c1_35 = arith.constant 1 : index
    %c0_36 = arith.constant 0 : index
    %c0_37 = arith.constant 0 : index
    %27 = vector.load %arg2[%c1_35, %c0_36, %c0_37] : memref<9x8x4xbf16, #tpu.memory_space<vmem>>, vector<1x8x4xbf16>
    %28 = vector.shape_cast %27 : vector<1x8x4xbf16> to vector<8x4xbf16>
    %cst_38 = arith.constant dense<0.000000e+00> : vector<8x256xf32>
    %29 = tpu.matmul %28, %26, %cst_38 {dimension_numbers = #tpu.dot_dimension_numbers<[1], [0], [0], [1], [0, 0, 1, 1], [], []>} : vector<8x4xbf16>, vector<4x256xbf16>, vector<8x256xf32> -> vector<8x256xf32>
    %30 = arith.addf %21, %29 : vector<8x256xf32>
    %31 = vector.extract_strided_slice %12 {offsets = [0, 0, 0, 0], sizes = [1, 4, 18, 18], strides = [1, 1, 1, 1]} : vector<2x4x18x18xf32> to vector<1x4x18x18xf32>
    %32 = vector.shape_cast %31 : vector<1x4x18x18xf32> to vector<4x18x18xf32>
    %33 = vector.extract_strided_slice %32 {offsets = [0, 0, 2], sizes = [4, 16, 16], strides = [1, 1, 1]} : vector<4x18x18xf32> to vector<4x16x16xf32>
    %34 = vector.shape_cast %33 : vector<4x16x16xf32> to vector<4x256xf32>
    %35 = arith.truncf %34 : vector<4x256xf32> to vector<4x256xbf16>
    %c2 = arith.constant 2 : index
    %c0_39 = arith.constant 0 : index
    %c0_40 = arith.constant 0 : index
    %36 = vector.load %arg2[%c2, %c0_39, %c0_40] : memref<9x8x4xbf16, #tpu.memory_space<vmem>>, vector<1x8x4xbf16>
    %37 = vector.shape_cast %36 : vector<1x8x4xbf16> to vector<8x4xbf16>
    %cst_41 = arith.constant dense<0.000000e+00> : vector<8x256xf32>
    %38 = tpu.matmul %37, %35, %cst_41 {dimension_numbers = #tpu.dot_dimension_numbers<[1], [0], [0], [1], [0, 0, 1, 1], [], []>} : vector<8x4xbf16>, vector<4x256xbf16>, vector<8x256xf32> -> vector<8x256xf32>
    %39 = arith.addf %30, %38 : vector<8x256xf32>
    %40 = vector.extract_strided_slice %12 {offsets = [0, 0, 0, 0], sizes = [1, 4, 18, 18], strides = [1, 1, 1, 1]} : vector<2x4x18x18xf32> to vector<1x4x18x18xf32>
    %41 = vector.shape_cast %40 : vector<1x4x18x18xf32> to vector<4x18x18xf32>
    %42 = vector.extract_strided_slice %41 {offsets = [0, 1, 0], sizes = [4, 16, 16], strides = [1, 1, 1]} : vector<4x18x18xf32> to vector<4x16x16xf32>
    %43 = vector.shape_cast %42 : vector<4x16x16xf32> to vector<4x256xf32>
    %44 = arith.truncf %43 : vector<4x256xf32> to vector<4x256xbf16>
    %c3 = arith.constant 3 : index
    %c0_42 = arith.constant 0 : index
    %c0_43 = arith.constant 0 : index
    %45 = vector.load %arg2[%c3, %c0_42, %c0_43] : memref<9x8x4xbf16, #tpu.memory_space<vmem>>, vector<1x8x4xbf16>
    %46 = vector.shape_cast %45 : vector<1x8x4xbf16> to vector<8x4xbf16>
    %cst_44 = arith.constant dense<0.000000e+00> : vector<8x256xf32>
    %47 = tpu.matmul %46, %44, %cst_44 {dimension_numbers = #tpu.dot_dimension_numbers<[1], [0], [0], [1], [0, 0, 1, 1], [], []>} : vector<8x4xbf16>, vector<4x256xbf16>, vector<8x256xf32> -> vector<8x256xf32>
    %48 = arith.addf %39, %47 : vector<8x256xf32>
    %49 = vector.extract_strided_slice %12 {offsets = [0, 0, 0, 0], sizes = [1, 4, 18, 18], strides = [1, 1, 1, 1]} : vector<2x4x18x18xf32> to vector<1x4x18x18xf32>
    %50 = vector.shape_cast %49 : vector<1x4x18x18xf32> to vector<4x18x18xf32>
    %51 = vector.extract_strided_slice %50 {offsets = [0, 1, 1], sizes = [4, 16, 16], strides = [1, 1, 1]} : vector<4x18x18xf32> to vector<4x16x16xf32>
    %52 = vector.shape_cast %51 : vector<4x16x16xf32> to vector<4x256xf32>
    %53 = arith.truncf %52 : vector<4x256xf32> to vector<4x256xbf16>
    %c4 = arith.constant 4 : index
    %c0_45 = arith.constant 0 : index
    %c0_46 = arith.constant 0 : index
    %54 = vector.load %arg2[%c4, %c0_45, %c0_46] : memref<9x8x4xbf16, #tpu.memory_space<vmem>>, vector<1x8x4xbf16>
    %55 = vector.shape_cast %54 : vector<1x8x4xbf16> to vector<8x4xbf16>
    %cst_47 = arith.constant dense<0.000000e+00> : vector<8x256xf32>
    %56 = tpu.matmul %55, %53, %cst_47 {dimension_numbers = #tpu.dot_dimension_numbers<[1], [0], [0], [1], [0, 0, 1, 1], [], []>} : vector<8x4xbf16>, vector<4x256xbf16>, vector<8x256xf32> -> vector<8x256xf32>
    %57 = arith.addf %48, %56 : vector<8x256xf32>
    %58 = vector.extract_strided_slice %12 {offsets = [0, 0, 0, 0], sizes = [1, 4, 18, 18], strides = [1, 1, 1, 1]} : vector<2x4x18x18xf32> to vector<1x4x18x18xf32>
    %59 = vector.shape_cast %58 : vector<1x4x18x18xf32> to vector<4x18x18xf32>
    %60 = vector.extract_strided_slice %59 {offsets = [0, 1, 2], sizes = [4, 16, 16], strides = [1, 1, 1]} : vector<4x18x18xf32> to vector<4x16x16xf32>
    %61 = vector.shape_cast %60 : vector<4x16x16xf32> to vector<4x256xf32>
    %62 = arith.truncf %61 : vector<4x256xf32> to vector<4x256xbf16>
    %c5 = arith.constant 5 : index
    %c0_48 = arith.constant 0 : index
    %c0_49 = arith.constant 0 : index
    %63 = vector.load %arg2[%c5, %c0_48, %c0_49] : memref<9x8x4xbf16, #tpu.memory_space<vmem>>, vector<1x8x4xbf16>
    %64 = vector.shape_cast %63 : vector<1x8x4xbf16> to vector<8x4xbf16>
    %cst_50 = arith.constant dense<0.000000e+00> : vector<8x256xf32>
    %65 = tpu.matmul %64, %62, %cst_50 {dimension_numbers = #tpu.dot_dimension_numbers<[1], [0], [0], [1], [0, 0, 1, 1], [], []>} : vector<8x4xbf16>, vector<4x256xbf16>, vector<8x256xf32> -> vector<8x256xf32>
    %66 = arith.addf %57, %65 : vector<8x256xf32>
    %67 = vector.extract_strided_slice %12 {offsets = [0, 0, 0, 0], sizes = [1, 4, 18, 18], strides = [1, 1, 1, 1]} : vector<2x4x18x18xf32> to vector<1x4x18x18xf32>
    %68 = vector.shape_cast %67 : vector<1x4x18x18xf32> to vector<4x18x18xf32>
    %69 = vector.extract_strided_slice %68 {offsets = [0, 2, 0], sizes = [4, 16, 16], strides = [1, 1, 1]} : vector<4x18x18xf32> to vector<4x16x16xf32>
    %70 = vector.shape_cast %69 : vector<4x16x16xf32> to vector<4x256xf32>
    %71 = arith.truncf %70 : vector<4x256xf32> to vector<4x256xbf16>
    %c6 = arith.constant 6 : index
    %c0_51 = arith.constant 0 : index
    %c0_52 = arith.constant 0 : index
    %72 = vector.load %arg2[%c6, %c0_51, %c0_52] : memref<9x8x4xbf16, #tpu.memory_space<vmem>>, vector<1x8x4xbf16>
    %73 = vector.shape_cast %72 : vector<1x8x4xbf16> to vector<8x4xbf16>
    %cst_53 = arith.constant dense<0.000000e+00> : vector<8x256xf32>
    %74 = tpu.matmul %73, %71, %cst_53 {dimension_numbers = #tpu.dot_dimension_numbers<[1], [0], [0], [1], [0, 0, 1, 1], [], []>} : vector<8x4xbf16>, vector<4x256xbf16>, vector<8x256xf32> -> vector<8x256xf32>
    %75 = arith.addf %66, %74 : vector<8x256xf32>
    %76 = vector.extract_strided_slice %12 {offsets = [0, 0, 0, 0], sizes = [1, 4, 18, 18], strides = [1, 1, 1, 1]} : vector<2x4x18x18xf32> to vector<1x4x18x18xf32>
    %77 = vector.shape_cast %76 : vector<1x4x18x18xf32> to vector<4x18x18xf32>
    %78 = vector.extract_strided_slice %77 {offsets = [0, 2, 1], sizes = [4, 16, 16], strides = [1, 1, 1]} : vector<4x18x18xf32> to vector<4x16x16xf32>
    %79 = vector.shape_cast %78 : vector<4x16x16xf32> to vector<4x256xf32>
    %80 = arith.truncf %79 : vector<4x256xf32> to vector<4x256xbf16>
    %c7 = arith.constant 7 : index
    %c0_54 = arith.constant 0 : index
    %c0_55 = arith.constant 0 : index
    %81 = vector.load %arg2[%c7, %c0_54, %c0_55] : memref<9x8x4xbf16, #tpu.memory_space<vmem>>, vector<1x8x4xbf16>
    %82 = vector.shape_cast %81 : vector<1x8x4xbf16> to vector<8x4xbf16>
    %cst_56 = arith.constant dense<0.000000e+00> : vector<8x256xf32>
    %83 = tpu.matmul %82, %80, %cst_56 {dimension_numbers = #tpu.dot_dimension_numbers<[1], [0], [0], [1], [0, 0, 1, 1], [], []>} : vector<8x4xbf16>, vector<4x256xbf16>, vector<8x256xf32> -> vector<8x256xf32>
    %84 = arith.addf %75, %83 : vector<8x256xf32>
    %85 = vector.extract_strided_slice %12 {offsets = [0, 0, 0, 0], sizes = [1, 4, 18, 18], strides = [1, 1, 1, 1]} : vector<2x4x18x18xf32> to vector<1x4x18x18xf32>
    %86 = vector.shape_cast %85 : vector<1x4x18x18xf32> to vector<4x18x18xf32>
    %87 = vector.extract_strided_slice %86 {offsets = [0, 2, 2], sizes = [4, 16, 16], strides = [1, 1, 1]} : vector<4x18x18xf32> to vector<4x16x16xf32>
    %88 = vector.shape_cast %87 : vector<4x16x16xf32> to vector<4x256xf32>
    %89 = arith.truncf %88 : vector<4x256xf32> to vector<4x256xbf16>
    %c8 = arith.constant 8 : index
    %c0_57 = arith.constant 0 : index
    %c0_58 = arith.constant 0 : index
    %90 = vector.load %arg2[%c8, %c0_57, %c0_58] : memref<9x8x4xbf16, #tpu.memory_space<vmem>>, vector<1x8x4xbf16>
    %91 = vector.shape_cast %90 : vector<1x8x4xbf16> to vector<8x4xbf16>
    %cst_59 = arith.constant dense<0.000000e+00> : vector<8x256xf32>
    %92 = tpu.matmul %91, %89, %cst_59 {dimension_numbers = #tpu.dot_dimension_numbers<[1], [0], [0], [1], [0, 0, 1, 1], [], []>} : vector<8x4xbf16>, vector<4x256xbf16>, vector<8x256xf32> -> vector<8x256xf32>
    %93 = arith.addf %84, %92 : vector<8x256xf32>
    %94 = vector.broadcast %13 : vector<8x1xf32> to vector<8x256xf32>
    %95 = arith.addf %93, %94 : vector<8x256xf32>
    %c0_60 = arith.constant 0 : index
    %c0_61 = arith.constant 0 : index
    %c0_62 = arith.constant 0 : index
    %96 = vector.load %arg4[%c0_60, %c0_61, %c0_62] : memref<2x8x256xf32, #tpu.memory_space<vmem>>, vector<1x8x256xf32>
    %97 = vector.shape_cast %96 : vector<1x8x256xf32> to vector<8x256xf32>
    %98 = vector.shape_cast %95 : vector<8x256xf32> to vector<1x8x256xf32>
    tpu.vector_store %arg4[%c0_60, %c0_61, %c0_62], %98 {strides = array<i32>} : memref<2x8x256xf32, #tpu.memory_space<vmem>>, vector<1x8x256xf32>,
    %99 = vector.extract_strided_slice %12 {offsets = [1, 0, 0, 0], sizes = [1, 4, 18, 18], strides = [1, 1, 1, 1]} : vector<2x4x18x18xf32> to vector<1x4x18x18xf32>
    %100 = vector.shape_cast %99 : vector<1x4x18x18xf32> to vector<4x18x18xf32>
    %101 = vector.extract_strided_slice %100 {offsets = [0, 0, 0], sizes = [4, 16, 16], strides = [1, 1, 1]} : vector<4x18x18xf32> to vector<4x16x16xf32>
    %102 = vector.shape_cast %101 : vector<4x16x16xf32> to vector<4x256xf32>
    %103 = arith.truncf %102 : vector<4x256xf32> to vector<4x256xbf16>
    %c0_63 = arith.constant 0 : index
    %c0_64 = arith.constant 0 : index
    %c0_65 = arith.constant 0 : index
    %104 = vector.load %arg2[%c0_63, %c0_64, %c0_65] : memref<9x8x4xbf16, #tpu.memory_space<vmem>>, vector<1x8x4xbf16>
    %105 = vector.shape_cast %104 : vector<1x8x4xbf16> to vector<8x4xbf16>
    %cst_66 = arith.constant dense<0.000000e+00> : vector<8x256xf32>
    %106 = tpu.matmul %105, %103, %cst_66 {dimension_numbers = #tpu.dot_dimension_numbers<[1], [0], [0], [1], [0, 0, 1, 1], [], []>} : vector<8x4xbf16>, vector<4x256xbf16>, vector<8x256xf32> -> vector<8x256xf32>
    %107 = vector.extract_strided_slice %12 {offsets = [1, 0, 0, 0], sizes = [1, 4, 18, 18], strides = [1, 1, 1, 1]} : vector<2x4x18x18xf32> to vector<1x4x18x18xf32>
    %108 = vector.shape_cast %107 : vector<1x4x18x18xf32> to vector<4x18x18xf32>
    %109 = vector.extract_strided_slice %108 {offsets = [0, 0, 1], sizes = [4, 16, 16], strides = [1, 1, 1]} : vector<4x18x18xf32> to vector<4x16x16xf32>
    %110 = vector.shape_cast %109 : vector<4x16x16xf32> to vector<4x256xf32>
    %111 = arith.truncf %110 : vector<4x256xf32> to vector<4x256xbf16>
    %c1_67 = arith.constant 1 : index
    %c0_68 = arith.constant 0 : index
    %c0_69 = arith.constant 0 : index
    %112 = vector.load %arg2[%c1_67, %c0_68, %c0_69] : memref<9x8x4xbf16, #tpu.memory_space<vmem>>, vector<1x8x4xbf16>
    %113 = vector.shape_cast %112 : vector<1x8x4xbf16> to vector<8x4xbf16>
    %cst_70 = arith.constant dense<0.000000e+00> : vector<8x256xf32>
    %114 = tpu.matmul %113, %111, %cst_70 {dimension_numbers = #tpu.dot_dimension_numbers<[1], [0], [0], [1], [0, 0, 1, 1], [], []>} : vector<8x4xbf16>, vector<4x256xbf16>, vector<8x256xf32> -> vector<8x256xf32>
    %115 = arith.addf %106, %114 : vector<8x256xf32>
    %116 = vector.extract_strided_slice %12 {offsets = [1, 0, 0, 0], sizes = [1, 4, 18, 18], strides = [1, 1, 1, 1]} : vector<2x4x18x18xf32> to vector<1x4x18x18xf32>
    %117 = vector.shape_cast %116 : vector<1x4x18x18xf32> to vector<4x18x18xf32>
    %118 = vector.extract_strided_slice %117 {offsets = [0, 0, 2], sizes = [4, 16, 16], strides = [1, 1, 1]} : vector<4x18x18xf32> to vector<4x16x16xf32>
    %119 = vector.shape_cast %118 : vector<4x16x16xf32> to vector<4x256xf32>
    %120 = arith.truncf %119 : vector<4x256xf32> to vector<4x256xbf16>
    %c2_71 = arith.constant 2 : index
    %c0_72 = arith.constant 0 : index
    %c0_73 = arith.constant 0 : index
    %121 = vector.load %arg2[%c2_71, %c0_72, %c0_73] : memref<9x8x4xbf16, #tpu.memory_space<vmem>>, vector<1x8x4xbf16>
    %122 = vector.shape_cast %121 : vector<1x8x4xbf16> to vector<8x4xbf16>
    %cst_74 = arith.constant dense<0.000000e+00> : vector<8x256xf32>
    %123 = tpu.matmul %122, %120, %cst_74 {dimension_numbers = #tpu.dot_dimension_numbers<[1], [0], [0], [1], [0, 0, 1, 1], [], []>} : vector<8x4xbf16>, vector<4x256xbf16>, vector<8x256xf32> -> vector<8x256xf32>
    %124 = arith.addf %115, %123 : vector<8x256xf32>
    %125 = vector.extract_strided_slice %12 {offsets = [1, 0, 0, 0], sizes = [1, 4, 18, 18], strides = [1, 1, 1, 1]} : vector<2x4x18x18xf32> to vector<1x4x18x18xf32>
    %126 = vector.shape_cast %125 : vector<1x4x18x18xf32> to vector<4x18x18xf32>
    %127 = vector.extract_strided_slice %126 {offsets = [0, 1, 0], sizes = [4, 16, 16], strides = [1, 1, 1]} : vector<4x18x18xf32> to vector<4x16x16xf32>
    %128 = vector.shape_cast %127 : vector<4x16x16xf32> to vector<4x256xf32>
    %129 = arith.truncf %128 : vector<4x256xf32> to vector<4x256xbf16>
    %c3_75 = arith.constant 3 : index
    %c0_76 = arith.constant 0 : index
    %c0_77 = arith.constant 0 : index
    %130 = vector.load %arg2[%c3_75, %c0_76, %c0_77] : memref<9x8x4xbf16, #tpu.memory_space<vmem>>, vector<1x8x4xbf16>
    %131 = vector.shape_cast %130 : vector<1x8x4xbf16> to vector<8x4xbf16>
    %cst_78 = arith.constant dense<0.000000e+00> : vector<8x256xf32>
    %132 = tpu.matmul %131, %129, %cst_78 {dimension_numbers = #tpu.dot_dimension_numbers<[1], [0], [0], [1], [0, 0, 1, 1], [], []>} : vector<8x4xbf16>, vector<4x256xbf16>, vector<8x256xf32> -> vector<8x256xf32>
    %133 = arith.addf %124, %132 : vector<8x256xf32>
    %134 = vector.extract_strided_slice %12 {offsets = [1, 0, 0, 0], sizes = [1, 4, 18, 18], strides = [1, 1, 1, 1]} : vector<2x4x18x18xf32> to vector<1x4x18x18xf32>
    %135 = vector.shape_cast %134 : vector<1x4x18x18xf32> to vector<4x18x18xf32>
    %136 = vector.extract_strided_slice %135 {offsets = [0, 1, 1], sizes = [4, 16, 16], strides = [1, 1, 1]} : vector<4x18x18xf32> to vector<4x16x16xf32>
    %137 = vector.shape_cast %136 : vector<4x16x16xf32> to vector<4x256xf32>
    %138 = arith.truncf %137 : vector<4x256xf32> to vector<4x256xbf16>
    %c4_79 = arith.constant 4 : index
    %c0_80 = arith.constant 0 : index
    %c0_81 = arith.constant 0 : index
    %139 = vector.load %arg2[%c4_79, %c0_80, %c0_81] : memref<9x8x4xbf16, #tpu.memory_space<vmem>>, vector<1x8x4xbf16>
    %140 = vector.shape_cast %139 : vector<1x8x4xbf16> to vector<8x4xbf16>
    %cst_82 = arith.constant dense<0.000000e+00> : vector<8x256xf32>
    %141 = tpu.matmul %140, %138, %cst_82 {dimension_numbers = #tpu.dot_dimension_numbers<[1], [0], [0], [1], [0, 0, 1, 1], [], []>} : vector<8x4xbf16>, vector<4x256xbf16>, vector<8x256xf32> -> vector<8x256xf32>
    %142 = arith.addf %133, %141 : vector<8x256xf32>
    %143 = vector.extract_strided_slice %12 {offsets = [1, 0, 0, 0], sizes = [1, 4, 18, 18], strides = [1, 1, 1, 1]} : vector<2x4x18x18xf32> to vector<1x4x18x18xf32>
    %144 = vector.shape_cast %143 : vector<1x4x18x18xf32> to vector<4x18x18xf32>
    %145 = vector.extract_strided_slice %144 {offsets = [0, 1, 2], sizes = [4, 16, 16], strides = [1, 1, 1]} : vector<4x18x18xf32> to vector<4x16x16xf32>
    %146 = vector.shape_cast %145 : vector<4x16x16xf32> to vector<4x256xf32>
    %147 = arith.truncf %146 : vector<4x256xf32> to vector<4x256xbf16>
    %c5_83 = arith.constant 5 : index
    %c0_84 = arith.constant 0 : index
    %c0_85 = arith.constant 0 : index
    %148 = vector.load %arg2[%c5_83, %c0_84, %c0_85] : memref<9x8x4xbf16, #tpu.memory_space<vmem>>, vector<1x8x4xbf16>
    %149 = vector.shape_cast %148 : vector<1x8x4xbf16> to vector<8x4xbf16>
    %cst_86 = arith.constant dense<0.000000e+00> : vector<8x256xf32>
    %150 = tpu.matmul %149, %147, %cst_86 {dimension_numbers = #tpu.dot_dimension_numbers<[1], [0], [0], [1], [0, 0, 1, 1], [], []>} : vector<8x4xbf16>, vector<4x256xbf16>, vector<8x256xf32> -> vector<8x256xf32>
    %151 = arith.addf %142, %150 : vector<8x256xf32>
    %152 = vector.extract_strided_slice %12 {offsets = [1, 0, 0, 0], sizes = [1, 4, 18, 18], strides = [1, 1, 1, 1]} : vector<2x4x18x18xf32> to vector<1x4x18x18xf32>
    %153 = vector.shape_cast %152 : vector<1x4x18x18xf32> to vector<4x18x18xf32>
    %154 = vector.extract_strided_slice %153 {offsets = [0, 2, 0], sizes = [4, 16, 16], strides = [1, 1, 1]} : vector<4x18x18xf32> to vector<4x16x16xf32>
    %155 = vector.shape_cast %154 : vector<4x16x16xf32> to vector<4x256xf32>
    %156 = arith.truncf %155 : vector<4x256xf32> to vector<4x256xbf16>
    %c6_87 = arith.constant 6 : index
    %c0_88 = arith.constant 0 : index
    %c0_89 = arith.constant 0 : index
    %157 = vector.load %arg2[%c6_87, %c0_88, %c0_89] : memref<9x8x4xbf16, #tpu.memory_space<vmem>>, vector<1x8x4xbf16>
    %158 = vector.shape_cast %157 : vector<1x8x4xbf16> to vector<8x4xbf16>
    %cst_90 = arith.constant dense<0.000000e+00> : vector<8x256xf32>
    %159 = tpu.matmul %158, %156, %cst_90 {dimension_numbers = #tpu.dot_dimension_numbers<[1], [0], [0], [1], [0, 0, 1, 1], [], []>} : vector<8x4xbf16>, vector<4x256xbf16>, vector<8x256xf32> -> vector<8x256xf32>
    %160 = arith.addf %151, %159 : vector<8x256xf32>
    %161 = vector.extract_strided_slice %12 {offsets = [1, 0, 0, 0], sizes = [1, 4, 18, 18], strides = [1, 1, 1, 1]} : vector<2x4x18x18xf32> to vector<1x4x18x18xf32>
    %162 = vector.shape_cast %161 : vector<1x4x18x18xf32> to vector<4x18x18xf32>
    %163 = vector.extract_strided_slice %162 {offsets = [0, 2, 1], sizes = [4, 16, 16], strides = [1, 1, 1]} : vector<4x18x18xf32> to vector<4x16x16xf32>
    %164 = vector.shape_cast %163 : vector<4x16x16xf32> to vector<4x256xf32>
    %165 = arith.truncf %164 : vector<4x256xf32> to vector<4x256xbf16>
    %c7_91 = arith.constant 7 : index
    %c0_92 = arith.constant 0 : index
    %c0_93 = arith.constant 0 : index
    %166 = vector.load %arg2[%c7_91, %c0_92, %c0_93] : memref<9x8x4xbf16, #tpu.memory_space<vmem>>, vector<1x8x4xbf16>
    %167 = vector.shape_cast %166 : vector<1x8x4xbf16> to vector<8x4xbf16>
    %cst_94 = arith.constant dense<0.000000e+00> : vector<8x256xf32>
    %168 = tpu.matmul %167, %165, %cst_94 {dimension_numbers = #tpu.dot_dimension_numbers<[1], [0], [0], [1], [0, 0, 1, 1], [], []>} : vector<8x4xbf16>, vector<4x256xbf16>, vector<8x256xf32> -> vector<8x256xf32>
    %169 = arith.addf %160, %168 : vector<8x256xf32>
    %170 = vector.extract_strided_slice %12 {offsets = [1, 0, 0, 0], sizes = [1, 4, 18, 18], strides = [1, 1, 1, 1]} : vector<2x4x18x18xf32> to vector<1x4x18x18xf32>
    %171 = vector.shape_cast %170 : vector<1x4x18x18xf32> to vector<4x18x18xf32>
    %172 = vector.extract_strided_slice %171 {offsets = [0, 2, 2], sizes = [4, 16, 16], strides = [1, 1, 1]} : vector<4x18x18xf32> to vector<4x16x16xf32>
    %173 = vector.shape_cast %172 : vector<4x16x16xf32> to vector<4x256xf32>
    %174 = arith.truncf %173 : vector<4x256xf32> to vector<4x256xbf16>
    %c8_95 = arith.constant 8 : index
    %c0_96 = arith.constant 0 : index
    %c0_97 = arith.constant 0 : index
    %175 = vector.load %arg2[%c8_95, %c0_96, %c0_97] : memref<9x8x4xbf16, #tpu.memory_space<vmem>>, vector<1x8x4xbf16>
    %176 = vector.shape_cast %175 : vector<1x8x4xbf16> to vector<8x4xbf16>
    %cst_98 = arith.constant dense<0.000000e+00> : vector<8x256xf32>
    %177 = tpu.matmul %176, %174, %cst_98 {dimension_numbers = #tpu.dot_dimension_numbers<[1], [0], [0], [1], [0, 0, 1, 1], [], []>} : vector<8x4xbf16>, vector<4x256xbf16>, vector<8x256xf32> -> vector<8x256xf32>
    %178 = arith.addf %169, %177 : vector<8x256xf32>
    %179 = vector.broadcast %13 : vector<8x1xf32> to vector<8x256xf32>
    %180 = arith.addf %178, %179 : vector<8x256xf32>
    %c1_99 = arith.constant 1 : index
    %c0_100 = arith.constant 0 : index
    %c0_101 = arith.constant 0 : index
    %181 = vector.load %arg4[%c1_99, %c0_100, %c0_101] : memref<2x8x256xf32, #tpu.memory_space<vmem>>, vector<1x8x256xf32>
    %182 = vector.shape_cast %181 : vector<1x8x256xf32> to vector<8x256xf32>
    %183 = vector.shape_cast %180 : vector<8x256xf32> to vector<1x8x256xf32>
    tpu.vector_store %arg4[%c1_99, %c0_100, %c0_101], %183 {strides = array<i32>} : memref<2x8x256xf32, #tpu.memory_space<vmem>>, vector<1x8x256xf32>,
    return
  }
  func.func @transform_0(%arg0: i32) -> (i32, i32, i32, i32) {
    %c0_i32 = arith.constant 0 : i32
    %c0_i32_0 = arith.constant 0 : i32
    %c0_i32_1 = arith.constant 0 : i32
    %c0_i32_2 = arith.constant 0 : i32
    return %arg0, %c0_i32, %c0_i32_0, %c0_i32_1 : i32, i32, i32, i32
  }
  func.func @transform_1(%arg0: i32) -> (i32, i32, i32) {
    %c0_i32 = arith.constant 0 : i32
    %c0_i32_0 = arith.constant 0 : i32
    %c0_i32_1 = arith.constant 0 : i32
    %c0_i32_2 = arith.constant 0 : i32
    return %c0_i32, %c0_i32_0, %c0_i32_1 : i32, i32, i32
  }
  func.func @transform_2(%arg0: i32) -> (i32, i32) {
    %c0_i32 = arith.constant 0 : i32
    %c0_i32_0 = arith.constant 0 : i32
    %c0_i32_1 = arith.constant 0 : i32
    return %c0_i32, %c0_i32_0 : i32, i32
  }
  func.func @transform_3(%arg0: i32) -> (i32, i32, i32) {
    %c0_i32 = arith.constant 0 : i32
    %c0_i32_0 = arith.constant 0 : i32
    %c0_i32_1 = arith.constant 0 : i32
    return %arg0, %c0_i32, %c0_i32_0 : i32, i32, i32
  }
}

</mosaic_0001>

<llo_original>
// kernel: tpu_custom_call.1
$region0: #{tpu_custom_call.1}
  #allocation0 [shape = 'u32[]', space=smem, size = 0x4, offset = 0x4, fixed_abs, tag = 'smem constant byte address 0x4 - core index']
  #allocation1 [shape = 'u32[144,128]{1,0:T(1,128)}', space=vmem, size = 0x12000, scoped, tag = 'internal scratch']
  #allocation2 [shape = 'f32[2,4,18,18]{3,2,1,0:T(8,128)}', space=vmem, size = 0x18000, scoped, tag = 'scratch operand']
  %s0 = inlined_call_operand.hbm [shape: f32[2,4,16,16], index: 0, kind: input, shape index: {}]
  %s1 = inlined_call_operand.vmem [shape: bf16[9,8,4], index: 1, kind: input, shape index: {}]
  %s2 = inlined_call_operand.vmem [shape: f32[8,1], index: 2, kind: input, shape index: {}]
  %s3 = inlined_call_operand.hbm [shape: f32[2,8,256], index: 3, kind: output, shape index: {}]
  %s4 = sld [smem:[#allocation0]]
  $region26: #{tpu_custom_call.1} parent=0
    _
  %s6 = ssub.s32 1, %s4
  %s7 = scalar_select 0, %s6, %s4
  $region1: #{tpu_custom_call.1} parent=0
    #allocation3 [shape = 'u8[65536]{0}', space=vmem, size = 0x10000, scoped, tag = 'input window, operand 0, single buffered']
    #allocation4 [shape = 's32[1]{0}', space=sflag, size = 0x4, scoped, tag = 'scoped memory for tpu_custom_call.1']
    #allocation5 [shape = 's32[1]{0}', space=sflag, size = 0x4, scoped, tag = 'scoped memory for tpu_custom_call.1']
    #allocation6 [shape = 'u8[16384]{0}', space=vmem, size = 0x4000, scoped, tag = 'output window, operand 0, single buffered']
    %8 = vsyncpa [#allocation4], 0
    %9 = vsyncpa [#allocation5], 0
    // Predicated region
    $region2: #{tpu_custom_call.1} parent=1 // pred_check
      _
    $region3: #{tpu_custom_call.1} parent=1 // pred_check_branch
      %11 = sbr.rel (0) target = $region5
    $region4: #{tpu_custom_call.1} parent=1 // pred_region
      %s13 = ssub.s32 2048, 2048
      %14 = vsyncadd [#allocation4], %s13
      %s15 = sshll.u32 [#allocation3], 4
      %s16 = int_to_ptr.vmem [resolvable:$true] %s15
      %21 = dma.hbm_to_vmem [thread:$0]  %s0, 2048, %s16, [#allocation4], 128, 128, 8
    $region5: #{tpu_custom_call.1} parent=1 // pred_fallthru
      _
    // Predicated region
    $region6: #{tpu_custom_call.1} parent=1 // pred_check
      _
    $region7: #{tpu_custom_call.1} parent=1 // pred_check_branch
      %23 = sbr.rel (0) target = $region9
    $region8: #{tpu_custom_call.1} parent=1 // pred_region
      _
    $region9: #{tpu_custom_call.1} parent=1 // pred_fallthru
      _
    // Predicated region
    $region10: #{tpu_custom_call.1} parent=1 // pred_check
      _
    $region11: #{tpu_custom_call.1} parent=1 // pred_check_branch
      %25 = sbr.rel (0) target = $region13
    $region12: #{tpu_custom_call.1} parent=1 // pred_region
      _
    $region13: #{tpu_custom_call.1} parent=1 // pred_fallthru
      _
    // Predicated region
    $region14: #{tpu_custom_call.1} parent=1 // pred_check
      _
    $region15: #{tpu_custom_call.1} parent=1 // pred_check_branch
      %27 = sbr.rel (0) target = $region17
    $region16: #{tpu_custom_call.1} parent=1 // pred_region
      %28 = dma.done [#allocation4], 2048
    $region17: #{tpu_custom_call.1} parent=1 // pred_fallthru
      _
    %vm30 = vcmask 139264
    %31 = vst.msk [vmem:[#allocation2] sm:$0x1] %vm30, 0.0
    %32 = vst.msk [vmem:[#allocation2 + $0x18] sm:$0x1] %vm30, 0.0
    %33 = vst.msk [vmem:[#allocation2 + $0x30] sm:$0x1] %vm30, 0.0
    %34 = vst.msk [vmem:[#allocation2 + $0x48] sm:$0x1] %vm30, 0.0
    %35 = vst.msk [vmem:[#allocation2 + $0x60] sm:$0x1] %vm30, 0.0
    %36 = vst.msk [vmem:[#allocation2 + $0x78] sm:$0x1] %vm30, 0.0
    %37 = vst.msk [vmem:[#allocation2 + $0x90] sm:$0x1] %vm30, 0.0
    %38 = vst.msk [vmem:[#allocation2 + $0xa8] sm:$0x1] %vm30, 0.0
    %39 = vst.msk [vmem:[#allocation2 + $0x11] sm:$0x1] %vm30, 0.0
    %40 = vst.msk [vmem:[#allocation2 + $0x29] sm:$0x1] %vm30, 0.0
    %41 = vst.msk [vmem:[#allocation2 + $0x41] sm:$0x1] %vm30, 0.0
    %42 = vst.msk [vmem:[#allocation2 + $0x59] sm:$0x1] %vm30, 0.0
    %43 = vst.msk [vmem:[#allocation2 + $0x71] sm:$0x1] %vm30, 0.0
    %44 = vst.msk [vmem:[#allocation2 + $0x89] sm:$0x1] %vm30, 0.0
    %45 = vst.msk [vmem:[#allocation2 + $0xa1] sm:$0x1] %vm30, 0.0
    %46 = vst.msk [vmem:[#allocation2 + $0xb9] sm:$0x1] %vm30, 0.0
    %vm47 = vcmask 7168
    %48 = vst.msk [vmem:[#allocation2] sm:$0xff] %vm47, 0.0
    %49 = vst.msk [vmem:[#allocation2 + $0x8] sm:$0xff] %vm47, 0.0
    %vm50 = vcmask 1024
    %51 = vst.msk [vmem:[#allocation2 + $0x10] sm:$0x3] %vm50, 0.0
    %52 = vst.msk [vmem:[#allocation2 + $0x18] sm:$0xff] %vm47, 0.0
    %53 = vst.msk [vmem:[#allocation2 + $0x20] sm:$0xff] %vm47, 0.0
    %54 = vst.msk [vmem:[#allocation2 + $0x28] sm:$0x3] %vm50, 0.0
    %55 = vst.msk [vmem:[#allocation2 + $0x30] sm:$0xff] %vm47, 0.0
    %56 = vst.msk [vmem:[#allocation2 + $0x38] sm:$0xff] %vm47, 0.0
    %57 = vst.msk [vmem:[#allocation2 + $0x40] sm:$0x3] %vm50, 0.0
    %58 = vst.msk [vmem:[#allocation2 + $0x48] sm:$0xff] %vm47, 0.0
    %59 = vst.msk [vmem:[#allocation2 + $0x50] sm:$0xff] %vm47, 0.0
    %60 = vst.msk [vmem:[#allocation2 + $0x58] sm:$0x3] %vm50, 0.0
    %61 = vst.msk [vmem:[#allocation2 + $0x60] sm:$0xff] %vm47, 0.0
    %62 = vst.msk [vmem:[#allocation2 + $0x68] sm:$0xff] %vm47, 0.0
    %63 = vst.msk [vmem:[#allocation2 + $0x70] sm:$0x3] %vm50, 0.0
    %64 = vst.msk [vmem:[#allocation2 + $0x78] sm:$0xff] %vm47, 0.0
    %65 = vst.msk [vmem:[#allocation2 + $0x80] sm:$0xff] %vm47, 0.0
    %66 = vst.msk [vmem:[#allocation2 + $0x88] sm:$0x3] %vm50, 0.0
    %67 = vst.msk [vmem:[#allocation2 + $0x90] sm:$0xff] %vm47, 0.0
    %68 = vst.msk [vmem:[#allocation2 + $0x98] sm:$0xff] %vm47, 0.0
    %69 = vst.msk [vmem:[#allocation2 + $0xa0] sm:$0x3] %vm50, 0.0
    %70 = vst.msk [vmem:[#allocation2 + $0xa8] sm:$0xff] %vm47, 0.0
    %71 = vst.msk [vmem:[#allocation2 + $0xb0] sm:$0xff] %vm47, 0.0
    %72 = vst.msk [vmem:[#allocation2 + $0xb8] sm:$0x3] %vm50, 0.0
    %vm73 = vcmask 146568
    %74 = vst.msk [vmem:[#allocation2] sm:$0xff] %vm73, 0.0
    %75 = vst.msk [vmem:[#allocation2 + $0x8] sm:$0xff] %vm73, 0.0
    %vm76 = vcmask 140424
    %77 = vst.msk [vmem:[#allocation2 + $0x10] sm:$0x3] %vm76, 0.0
    %78 = vst.msk [vmem:[#allocation2 + $0x18] sm:$0xff] %vm73, 0.0
    %79 = vst.msk [vmem:[#allocation2 + $0x20] sm:$0xff] %vm73, 0.0
    %80 = vst.msk [vmem:[#allocation2 + $0x28] sm:$0x3] %vm76, 0.0
    %81 = vst.msk [vmem:[#allocation2 + $0x30] sm:$0xff] %vm73, 0.0
    %82 = vst.msk [vmem:[#allocation2 + $0x38] sm:$0xff] %vm73, 0.0
    %83 = vst.msk [vmem:[#allocation2 + $0x40] sm:$0x3] %vm76, 0.0
    %84 = vst.msk [vmem:[#allocation2 + $0x48] sm:$0xff] %vm73, 0.0
    %85 = vst.msk [vmem:[#allocation2 + $0x50] sm:$0xff] %vm73, 0.0
    %86 = vst.msk [vmem:[#allocation2 + $0x58] sm:$0x3] %vm76, 0.0
    %87 = vst.msk [vmem:[#allocation2 + $0x60] sm:$0xff] %vm73, 0.0
    %88 = vst.msk [vmem:[#allocation2 + $0x68] sm:$0xff] %vm73, 0.0
    %89 = vst.msk [vmem:[#allocation2 + $0x70] sm:$0x3] %vm76, 0.0
    %90 = vst.msk [vmem:[#allocation2 + $0x78] sm:$0xff] %vm73, 0.0
    %91 = vst.msk [vmem:[#allocation2 + $0x80] sm:$0xff] %vm73, 0.0
    %92 = vst.msk [vmem:[#allocation2 + $0x88] sm:$0x3] %vm76, 0.0
    %93 = vst.msk [vmem:[#allocation2 + $0x90] sm:$0xff] %vm73, 0.0
    %94 = vst.msk [vmem:[#allocation2 + $0x98] sm:$0xff] %vm73, 0.0
    %95 = vst.msk [vmem:[#allocation2 + $0xa0] sm:$0x3] %vm76, 0.0
    %96 = vst.msk [vmem:[#allocation2 + $0xa8] sm:$0xff] %vm73, 0.0
    %97 = vst.msk [vmem:[#allocation2 + $0xb0] sm:$0xff] %vm73, 0.0
    %98 = vst.msk [vmem:[#allocation2 + $0xb8] sm:$0x3] %vm76, 0.0
    %v99 = vld [vmem:[#allocation3] sm:$0xff]
    %v100 = vld [vmem:[#allocation3 + $0x8] sm:$0xff]
    %v101 = vld [vmem:[#allocation3 + $0x10] sm:$0xff]
    %v102 = vld [vmem:[#allocation3 + $0x18] sm:$0xff]
    %v103 = vld [vmem:[#allocation3 + $0x20] sm:$0xff]
    %v104 = vld [vmem:[#allocation3 + $0x28] sm:$0xff]
    %v105 = vld [vmem:[#allocation3 + $0x30] sm:$0xff]
    %v106 = vld [vmem:[#allocation3 + $0x38] sm:$0xff]
    %v107 = vld [vmem:[#allocation3 + $0x40] sm:$0xff]
    %v108 = vld [vmem:[#allocation3 + $0x48] sm:$0xff]
    %v109 = vld [vmem:[#allocation3 + $0x50] sm:$0xff]
    %v110 = vld [vmem:[#allocation3 + $0x58] sm:$0xff]
    %v111 = vld [vmem:[#allocation3 + $0x60] sm:$0xff]
    %v112 = vld [vmem:[#allocation3 + $0x68] sm:$0xff]
    %v113 = vld [vmem:[#allocation3 + $0x70] sm:$0xff]
    %v114 = vld [vmem:[#allocation3 + $0x78] sm:$0xff]
    %v115 = vmax.f32 %v99, 0.0
    %v116 = vmax.f32 %v100, 0.0
    %v117 = vmax.f32 %v101, 0.0
    %v118 = vmax.f32 %v102, 0.0
    %v119 = vmax.f32 %v103, 0.0
    %v120 = vmax.f32 %v104, 0.0
    %v121 = vmax.f32 %v105, 0.0
    %v122 = vmax.f32 %v106, 0.0
    %v123 = vmax.f32 %v107, 0.0
    %v124 = vmax.f32 %v108, 0.0
    %v125 = vmax.f32 %v109, 0.0
    %v126 = vmax.f32 %v110, 0.0
    %v127 = vmax.f32 %v111, 0.0
    %v128 = vmax.f32 %v112, 0.0
    %v129 = vmax.f32 %v113, 0.0
    %v130 = vmax.f32 %v114, 0.0
    %147 = vrot.lane.b32.xlu0 %v115, 1
    %v148 = vpop.permute.xlu0 %147
    %149 = vrot.lane.b32.xlu0 %v116, 1
    %v150 = vpop.permute.xlu0 %149
    %151 = vrot.lane.b32.xlu0 %v117, 1
    %v152 = vpop.permute.xlu0 %151
    %153 = vrot.lane.b32.xlu0 %v118, 1
    %v154 = vpop.permute.xlu0 %153
    %155 = vrot.lane.b32.xlu0 %v119, 1
    %v156 = vpop.permute.xlu0 %155
    %157 = vrot.lane.b32.xlu0 %v120, 1
    %v158 = vpop.permute.xlu0 %157
    %159 = vrot.lane.b32.xlu0 %v121, 1
    %v160 = vpop.permute.xlu0 %159
    %161 = vrot.lane.b32.xlu0 %v122, 1
    %v162 = vpop.permute.xlu0 %161
    %163 = vrot.lane.b32.xlu0 %v123, 1
    %v164 = vpop.permute.xlu0 %163
    %165 = vrot.lane.b32.xlu0 %v124, 1
    %v166 = vpop.permute.xlu0 %165
    %167 = vrot.lane.b32.xlu0 %v125, 1
    %v168 = vpop.permute.xlu0 %167
    %169 = vrot.lane.b32.xlu0 %v126, 1
    %v170 = vpop.permute.xlu0 %169
    %171 = vrot.lane.b32.xlu0 %v127, 1
    %v172 = vpop.permute.xlu0 %171
    %173 = vrot.lane.b32.xlu0 %v128, 1
    %v174 = vpop.permute.xlu0 %173
    %175 = vrot.lane.b32.xlu0 %v129, 1
    %v176 = vpop.permute.xlu0 %175
    %177 = vrot.lane.b32.xlu0 %v130, 1
    %v178 = vpop.permute.xlu0 %177
    %vm195 = vcmask 138248
    %196 = vst.msk [vmem:[#allocation2 + $0x1] sm:$0xff] %vm195, %v148
    %197 = vst.msk [vmem:[#allocation2 + $0x9] sm:$0xff] %vm195, %v150
    %198 = vst.msk [vmem:[#allocation2 + $0x19] sm:$0xff] %vm195, %v152
    %199 = vst.msk [vmem:[#allocation2 + $0x21] sm:$0xff] %vm195, %v154
    %200 = vst.msk [vmem:[#allocation2 + $0x31] sm:$0xff] %vm195, %v156
    %201 = vst.msk [vmem:[#allocation2 + $0x39] sm:$0xff] %vm195, %v158
    %202 = vst.msk [vmem:[#allocation2 + $0x49] sm:$0xff] %vm195, %v160
    %203 = vst.msk [vmem:[#allocation2 + $0x51] sm:$0xff] %vm195, %v162
    %204 = vst.msk [vmem:[#allocation2 + $0x61] sm:$0xff] %vm195, %v164
    %205 = vst.msk [vmem:[#allocation2 + $0x69] sm:$0xff] %vm195, %v166
    %206 = vst.msk [vmem:[#allocation2 + $0x79] sm:$0xff] %vm195, %v168
    %207 = vst.msk [vmem:[#allocation2 + $0x81] sm:$0xff] %vm195, %v170
    %208 = vst.msk [vmem:[#allocation2 + $0x91] sm:$0xff] %vm195, %v172
    %209 = vst.msk [vmem:[#allocation2 + $0x99] sm:$0xff] %vm195, %v174
    %210 = vst.msk [vmem:[#allocation2 + $0xa9] sm:$0xff] %vm195, %v176
    %211 = vst.msk [vmem:[#allocation2 + $0xb1] sm:$0xff] %vm195, %v178
    %v212 = vld [vmem:[#allocation2] sm:$0xff]
    %v213 = vld [vmem:[#allocation2 + $0x8] sm:$0xff]
    %v214 = vld [vmem:[#allocation2 + $0x10] sm:$0x3]
    %v215 = vld [vmem:[#allocation2 + $0x18] sm:$0xff]
    %v216 = vld [vmem:[#allocation2 + $0x20] sm:$0xff]
    %v217 = vld [vmem:[#allocation2 + $0x28] sm:$0x3]
    %v218 = vld [vmem:[#allocation2 + $0x30] sm:$0xff]
    %v219 = vld [vmem:[#allocation2 + $0x38] sm:$0xff]
    %v220 = vld [vmem:[#allocation2 + $0x40] sm:$0x3]
    %v221 = vld [vmem:[#allocation2 + $0x48] sm:$0xff]
    %v222 = vld [vmem:[#allocation2 + $0x50] sm:$0xff]
    %v223 = vld [vmem:[#allocation2 + $0x58] sm:$0x3]
    %v224 = vld [vmem:[#allocation2 + $0x60] sm:$0xff]
    %v225 = vld [vmem:[#allocation2 + $0x68] sm:$0xff]
    %v226 = vld [vmem:[#allocation2 + $0x70] sm:$0x3]
    %v227 = vld [vmem:[#allocation2 + $0x78] sm:$0xff]
    %v228 = vld [vmem:[#allocation2 + $0x80] sm:$0xff]
    %v229 = vld [vmem:[#allocation2 + $0x88] sm:$0x3]
    %v230 = vld [vmem:[#allocation2 + $0x90] sm:$0xff]
    %v231 = vld [vmem:[#allocation2 + $0x98] sm:$0xff]
    %v232 = vld [vmem:[#allocation2 + $0xa0] sm:$0x3]
    %v233 = vld [vmem:[#allocation2 + $0xa8] sm:$0xff]
    %v234 = vld [vmem:[#allocation2 + $0xb0] sm:$0xff]
    %v235 = vld [vmem:[#allocation2 + $0xb8] sm:$0x3]
    %v236 = vld [vmem:[%s2] sm:$0xff]
    %v237 = vcombine.low %v212, %v218
    %v238 = vcombine.high %v212, %v218
    %v240 = vunpack.c.l.s4 1983009808
    %v241 = vunpack.c.0.s8 %v240
    %v242 = vlaneseq
    %v243 = vshrl.u32 %v242, 7
    %v244 = vsub.s32 %v241, %v243
    %v245 = vrot.slane %v237, %v244
    %v247 = vunpack.c.l.s4 1983009808
    %v248 = vunpack.c.0.s8 %v247
    %v249 = vlaneseq
    %v250 = vshrl.u32 %v249, 7
    %v251 = vsub.s32 %v248, %v250
    %v252 = vrot.slane %v238, %v251
    %v253 = vcombine.low %v215, %v221
    %v254 = vcombine.high %v215, %v221
    %v256 = vunpack.c.l.s4 1983009808
    %v257 = vunpack.c.0.s8 %v256
    %v258 = vlaneseq
    %v259 = vshrl.u32 %v258, 7
    %v260 = vsub.s32 %v257, %v259
    %v261 = vrot.slane %v253, %v260
    %v263 = vunpack.c.l.s4 1983009808
    %v264 = vunpack.c.0.s8 %v263
    %v265 = vlaneseq
    %v266 = vshrl.u32 %v265, 7
    %v267 = vsub.s32 %v264, %v266
    %v268 = vrot.slane %v254, %v267
    %v269 = vcombine.low %v245, %v261
    %v270 = vcombine.high %v245, %v261
    %v272 = vunpack.c.l.s4 1934713408
    %v273 = vunpack.c.0.s8 %v272
    %v274 = vlaneseq
    %v275 = vshrl.u32 %v274, 7
    %v276 = vsub.s32 %v273, %v275
    %v277 = vrot.slane %v269, %v276
    %v279 = vunpack.c.l.s4 1934713408
    %v280 = vunpack.c.0.s8 %v279
    %v281 = vlaneseq
    %v282 = vshrl.u32 %v281, 7
    %v283 = vsub.s32 %v280, %v282
    %v284 = vrot.slane %v270, %v283
    %v285 = vcombine.low %v252, %v268
    %v286 = vcombine.high %v252, %v268
    %v288 = vunpack.c.l.s4 1934713408
    %v289 = vunpack.c.0.s8 %v288
    %v290 = vlaneseq
    %v291 = vshrl.u32 %v290, 7
    %v292 = vsub.s32 %v289, %v291
    %v293 = vrot.slane %v285, %v292
    %v295 = vunpack.c.l.s4 1934713408
    %v296 = vunpack.c.0.s8 %v295
    %v297 = vlaneseq
    %v298 = vshrl.u32 %v297, 7
    %v299 = vsub.s32 %v296, %v298
    %v300 = vrot.slane %v286, %v299
    %v301 = vcombine.high %v277, 0.0
    %v302 = vcombine.high %v284, 0.0
    %v303 = vcombine.high %v293, 0.0
    %v304 = vcombine.high %v300, 0.0
    %v305 = vcombine.low %v213, %v219
    %v306 = vcombine.high %v213, %v219
    %v308 = vunpack.c.l.s4 1983009808
    %v309 = vunpack.c.0.s8 %v308
    %v310 = vlaneseq
    %v311 = vshrl.u32 %v310, 7
    %v312 = vsub.s32 %v309, %v311
    %v313 = vrot.slane %v305, %v312
    %v315 = vunpack.c.l.s4 1983009808
    %v316 = vunpack.c.0.s8 %v315
    %v317 = vlaneseq
    %v318 = vshrl.u32 %v317, 7
    %v319 = vsub.s32 %v316, %v318
    %v320 = vrot.slane %v306, %v319
    %v321 = vcombine.low %v216, %v222
    %v322 = vcombine.high %v216, %v222
    %v324 = vunpack.c.l.s4 1983009808
    %v325 = vunpack.c.0.s8 %v324
    %v326 = vlaneseq
    %v327 = vshrl.u32 %v326, 7
    %v328 = vsub.s32 %v325, %v327
    %v329 = vrot.slane %v321, %v328
    %v331 = vunpack.c.l.s4 1983009808
    %v332 = vunpack.c.0.s8 %v331
    %v333 = vlaneseq
    %v334 = vshrl.u32 %v333, 7
    %v335 = vsub.s32 %v332, %v334
    %v336 = vrot.slane %v322, %v335
    %v337 = vcombine.low %v313, %v329
    %v338 = vcombine.high %v313, %v329
    %v340 = vunpack.c.l.s4 1934713408
    %v341 = vunpack.c.0.s8 %v340
    %v342 = vlaneseq
    %v343 = vshrl.u32 %v342, 7
    %v344 = vsub.s32 %v341, %v343
    %v345 = vrot.slane %v337, %v344
    %v347 = vunpack.c.l.s4 1934713408
    %v348 = vunpack.c.0.s8 %v347
    %v349 = vlaneseq
    %v350 = vshrl.u32 %v349, 7
    %v351 = vsub.s32 %v348, %v350
    %v352 = vrot.slane %v338, %v351
    %v353 = vcombine.low %v320, %v336
    %v354 = vcombine.high %v320, %v336
    %v356 = vunpack.c.l.s4 1934713408
    %v357 = vunpack.c.0.s8 %v356
    %v358 = vlaneseq
    %v359 = vshrl.u32 %v358, 7
    %v360 = vsub.s32 %v357, %v359
    %v361 = vrot.slane %v353, %v360
    %v363 = vunpack.c.l.s4 1934713408
    %v364 = vunpack.c.0.s8 %v363
    %v365 = vlaneseq
    %v366 = vshrl.u32 %v365, 7
    %v367 = vsub.s32 %v364, %v366
    %v368 = vrot.slane %v354, %v367
    %v369 = vcombine.high %v345, 0.0
    %v370 = vcombine.high %v352, 0.0
    %v371 = vcombine.high %v361, 0.0
    %v372 = vcombine.high %v368, 0.0
    %374 = vrot.lane.b32.xlu0 %v301, 16
    %v375 = vpop.permute.xlu0 %374
    %378 = vrot.lane.b32.xlu0 %v284, 32
    %v379 = vpop.permute.xlu0 %378
    %382 = vrot.lane.b32.xlu0 %v302, 48
    %v383 = vpop.permute.xlu0 %382
    %386 = vrot.lane.b32.xlu0 %v293, 64
    %v387 = vpop.permute.xlu0 %386
    %390 = vrot.lane.b32.xlu0 %v303, 80
    %v391 = vpop.permute.xlu0 %390
    %394 = vrot.lane.b32.xlu0 %v300, 96
    %v395 = vpop.permute.xlu0 %394
    %398 = vrot.lane.b32.xlu0 %v304, 112
    %v399 = vpop.permute.xlu0 %398
    %402 = vrot.lane.b32.xlu0 %v369, 16
    %v403 = vpop.permute.xlu0 %402
    %406 = vrot.lane.b32.xlu0 %v352, 32
    %v407 = vpop.permute.xlu0 %406
    %410 = vrot.lane.b32.xlu0 %v370, 48
    %v411 = vpop.permute.xlu0 %410
    %414 = vrot.lane.b32.xlu0 %v361, 64
    %v415 = vpop.permute.xlu0 %414
    %418 = vrot.lane.b32.xlu0 %v371, 80
    %v419 = vpop.permute.xlu0 %418
    %422 = vrot.lane.b32.xlu0 %v368, 96
    %v423 = vpop.permute.xlu0 %422
    %426 = vrot.lane.b32.xlu0 %v372, 112
    %v427 = vpop.permute.xlu0 %426
    %vm429 = vcmask 130048
    %v430 = vsel %vm429, %v277, %v375
    %vm431 = vcmask 261120
    %v432 = vsel %vm431, %v430, %v379
    %vm433 = vcmask 392192
    %v434 = vsel %vm433, %v432, %v383
    %vm435 = vcmask 523264
    %v436 = vsel %vm435, %v434, %v387
    %vm437 = vcmask 654336
    %v438 = vsel %vm437, %v436, %v391
    %vm439 = vcmask 785408
    %v440 = vsel %vm439, %v438, %v395
    %vm441 = vcmask 916480
    %v442 = vsel %vm441, %v440, %v399
    %v443 = vsel %vm429, %v345, %v403
    %v444 = vsel %vm431, %v443, %v407
    %v445 = vsel %vm433, %v444, %v411
    %v446 = vsel %vm435, %v445, %v415
    %v447 = vsel %vm437, %v446, %v419
    %v448 = vsel %vm439, %v447, %v423
    %v449 = vsel %vm441, %v448, %v427
    %v450 = vpack.c.bf16 %v442, %v442
    %v451 = vpack.c.bf16 %v449, %v449
    %v452 = vld [vmem:[%s1] sm:$0xf]
    %461 = vrot.lane.b32.xlu0 %v212, 127
    %v462 = vpop.permute.xlu0 %461
    %463 = vrot.lane.b32.xlu0 %v213, 127
    %v464 = vpop.permute.xlu0 %463
    %465 = vrot.lane.b32.xlu0 %v215, 127
    %v466 = vpop.permute.xlu0 %465
    %467 = vrot.lane.b32.xlu0 %v216, 127
    %v468 = vpop.permute.xlu0 %467
    %469 = vrot.lane.b32.xlu0 %v218, 127
    %v470 = vpop.permute.xlu0 %469
    %471 = vrot.lane.b32.xlu0 %v219, 127
    %v472 = vpop.permute.xlu0 %471
    %473 = vrot.lane.b32.xlu0 %v221, 127
    %v474 = vpop.permute.xlu0 %473
    %475 = vrot.lane.b32.xlu0 %v222, 127
    %v476 = vpop.permute.xlu0 %475
    %v485 = vcombine.low %v462, %v470
    %v486 = vcombine.high %v462, %v470
    %v488 = vunpack.c.l.s4 1983009808
    %v489 = vunpack.c.0.s8 %v488
    %v490 = vlaneseq
    %v491 = vshrl.u32 %v490, 7
    %v492 = vsub.s32 %v489, %v491
    %v493 = vrot.slane %v485, %v492
    %v495 = vunpack.c.l.s4 1983009808
    %v496 = vunpack.c.0.s8 %v495
    %v497 = vlaneseq
    %v498 = vshrl.u32 %v497, 7
    %v499 = vsub.s32 %v496, %v498
    %v500 = vrot.slane %v486, %v499
    %v501 = vcombine.low %v466, %v474
    %v502 = vcombine.high %v466, %v474
    %v504 = vunpack.c.l.s4 1983009808
    %v505 = vunpack.c.0.s8 %v504
    %v506 = vlaneseq
    %v507 = vshrl.u32 %v506, 7
    %v508 = vsub.s32 %v505, %v507
    %v509 = vrot.slane %v501, %v508
    %v511 = vunpack.c.l.s4 1983009808
    %v512 = vunpack.c.0.s8 %v511
    %v513 = vlaneseq
    %v514 = vshrl.u32 %v513, 7
    %v515 = vsub.s32 %v512, %v514
    %v516 = vrot.slane %v502, %v515
    %v517 = vcombine.low %v493, %v509
    %v518 = vcombine.high %v493, %v509
    %v520 = vunpack.c.l.s4 1934713408
    %v521 = vunpack.c.0.s8 %v520
    %v522 = vlaneseq
    %v523 = vshrl.u32 %v522, 7
    %v524 = vsub.s32 %v521, %v523
    %v525 = vrot.slane %v517, %v524
    %v527 = vunpack.c.l.s4 1934713408
    %v528 = vunpack.c.0.s8 %v527
    %v529 = vlaneseq
    %v530 = vshrl.u32 %v529, 7
    %v531 = vsub.s32 %v528, %v530
    %v532 = vrot.slane %v518, %v531
    %v533 = vcombine.low %v500, %v516
    %v534 = vcombine.high %v500, %v516
    %v536 = vunpack.c.l.s4 1934713408
    %v537 = vunpack.c.0.s8 %v536
    %v538 = vlaneseq
    %v539 = vshrl.u32 %v538, 7
    %v540 = vsub.s32 %v537, %v539
    %v541 = vrot.slane %v533, %v540
    %v543 = vunpack.c.l.s4 1934713408
    %v544 = vunpack.c.0.s8 %v543
    %v545 = vlaneseq
    %v546 = vshrl.u32 %v545, 7
    %v547 = vsub.s32 %v544, %v546
    %v548 = vrot.slane %v534, %v547
    %v549 = vcombine.high %v525, 0.0
    %v550 = vcombine.high %v532, 0.0
    %v551 = vcombine.high %v541, 0.0
    %v552 = vcombine.high %v548, 0.0
    %v553 = vcombine.low %v464, %v472
    %v554 = vcombine.high %v464, %v472
    %v556 = vunpack.c.l.s4 1983009808
    %v557 = vunpack.c.0.s8 %v556
    %v558 = vlaneseq
    %v559 = vshrl.u32 %v558, 7
    %v560 = vsub.s32 %v557, %v559
    %v561 = vrot.slane %v553, %v560
    %v563 = vunpack.c.l.s4 1983009808
    %v564 = vunpack.c.0.s8 %v563
    %v565 = vlaneseq
    %v566 = vshrl.u32 %v565, 7
    %v567 = vsub.s32 %v564, %v566
    %v568 = vrot.slane %v554, %v567
    %v569 = vcombine.low %v468, %v476
    %v570 = vcombine.high %v468, %v476
    %v572 = vunpack.c.l.s4 1983009808
    %v573 = vunpack.c.0.s8 %v572
    %v574 = vlaneseq
    %v575 = vshrl.u32 %v574, 7
    %v576 = vsub.s32 %v573, %v575
    %v577 = vrot.slane %v569, %v576
    %v579 = vunpack.c.l.s4 1983009808
    %v580 = vunpack.c.0.s8 %v579
    %v581 = vlaneseq
    %v582 = vshrl.u32 %v581, 7
    %v583 = vsub.s32 %v580, %v582
    %v584 = vrot.slane %v570, %v583
    %v585 = vcombine.low %v561, %v577
    %v586 = vcombine.high %v561, %v577
    %v588 = vunpack.c.l.s4 1934713408
    %v589 = vunpack.c.0.s8 %v588
    %v590 = vlaneseq
    %v591 = vshrl.u32 %v590, 7
    %v592 = vsub.s32 %v589, %v591
    %v593 = vrot.slane %v585, %v592
    %v595 = vunpack.c.l.s4 1934713408
    %v596 = vunpack.c.0.s8 %v595
    %v597 = vlaneseq
    %v598 = vshrl.u32 %v597, 7
    %v599 = vsub.s32 %v596, %v598
    %v600 = vrot.slane %v586, %v599
    %v601 = vcombine.low %v568, %v584
    %v602 = vcombine.high %v568, %v584
    %v604 = vunpack.c.l.s4 1934713408
    %v605 = vunpack.c.0.s8 %v604
    %v606 = vlaneseq
    %v607 = vshrl.u32 %v606, 7
    %v608 = vsub.s32 %v605, %v607
    %v609 = vrot.slane %v601, %v608
    %v611 = vunpack.c.l.s4 1934713408
    %v612 = vunpack.c.0.s8 %v611
    %v613 = vlaneseq
    %v614 = vshrl.u32 %v613, 7
    %v615 = vsub.s32 %v612, %v614
    %v616 = vrot.slane %v602, %v615
    %v617 = vcombine.high %v593, 0.0
    %v618 = vcombine.high %v600, 0.0
    %v619 = vcombine.high %v609, 0.0
    %v620 = vcombine.high %v616, 0.0
    %622 = vrot.lane.b32.xlu0 %v549, 16
    %v623 = vpop.permute.xlu0 %622
    %626 = vrot.lane.b32.xlu0 %v532, 32
    %v627 = vpop.permute.xlu0 %626
    %630 = vrot.lane.b32.xlu0 %v550, 48
    %v631 = vpop.permute.xlu0 %630
    %634 = vrot.lane.b32.xlu0 %v541, 64
    %v635 = vpop.permute.xlu0 %634
    %638 = vrot.lane.b32.xlu0 %v551, 80
    %v639 = vpop.permute.xlu0 %638
    %642 = vrot.lane.b32.xlu0 %v548, 96
    %v643 = vpop.permute.xlu0 %642
    %646 = vrot.lane.b32.xlu0 %v552, 112
    %v647 = vpop.permute.xlu0 %646
    %650 = vrot.lane.b32.xlu0 %v617, 16
    %v651 = vpop.permute.xlu0 %650
    %654 = vrot.lane.b32.xlu0 %v600, 32
    %v655 = vpop.permute.xlu0 %654
    %658 = vrot.lane.b32.xlu0 %v618, 48
    %v659 = vpop.permute.xlu0 %658
    %662 = vrot.lane.b32.xlu0 %v609, 64
    %v663 = vpop.permute.xlu0 %662
    %666 = vrot.lane.b32.xlu0 %v619, 80
    %v667 = vpop.permute.xlu0 %666
    %670 = vrot.lane.b32.xlu0 %v616, 96
    %v671 = vpop.permute.xlu0 %670
    %674 = vrot.lane.b32.xlu0 %v620, 112
    %v675 = vpop.permute.xlu0 %674
    %v677 = vsel %vm429, %v525, %v623
    %v678 = vsel %vm431, %v677, %v627
    %v679 = vsel %vm433, %v678, %v631
    %v680 = vsel %vm435, %v679, %v635
    %v681 = vsel %vm437, %v680, %v639
    %v682 = vsel %vm439, %v681, %v643
    %v683 = vsel %vm441, %v682, %v647
    %v684 = vsel %vm429, %v593, %v651
    %v685 = vsel %vm431, %v684, %v655
    %v686 = vsel %vm433, %v685, %v659
    %v687 = vsel %vm435, %v686, %v663
    %v688 = vsel %vm437, %v687, %v667
    %v689 = vsel %vm439, %v688, %v671
    %v690 = vsel %vm441, %v689, %v675
    %v691 = vpack.c.bf16 %v683, %v683
    %v692 = vpack.c.bf16 %v690, %v690
    %s693 = scalar_lea.vmem %s1, 4
    %v694 = vld [vmem:[%s693] sm:$0xf]
    %vm695 = vcmask 31744
    %v697 = vsel %vm695, %v694, 0
    %vm699 = vcmask 1041408
    %v701 = vsel %vm699, %v691, 0
    %v704 = vsel %vm699, %v692, 0
    %706 = vmatprep.subr.bf16.mxu0 %v704
    %707 = vmatpush1.bf16.msra.mxu0 %v701
    %708 = vmatprep.subr.bf16.mxu0 0
    %709 = vmatpush1.bf16.msra.mxu0 0
    %710 = vmatprep.subr.bf16.mxu0 0
    %711 = vmatpush1.bf16.msra.mxu0 0
    %712 = vmatprep.subr.bf16.mxu0 0
    %713 = vmatpush1.bf16.msra.mxu0 0
    %714 = vmatprep.subr.bf16.mxu0 0
    %715 = vmatpush1.bf16.msra.mxu0 0
    %716 = vmatprep.subr.bf16.mxu0 0
    %717 = vmatpush1.bf16.msra.mxu0 0
    %718 = vmatprep.subr.bf16.mxu0 0
    %719 = vmatpush1.bf16.msra.mxu0 0
    %720 = vmatprep.subr.bf16.mxu0 0
    %721 = vmatpush1.bf16.msra.mxu0 0
    %722 = vmatprep.subr.bf16.mxu0 0
    %723 = vmatpush1.bf16.msra.mxu0 0
    %724 = vmatprep.subr.bf16.mxu0 0
    %725 = vmatpush1.bf16.msra.mxu0 0
    %726 = vmatprep.subr.bf16.mxu0 0
    %727 = vmatpush1.bf16.msra.mxu0 0
    %728 = vmatprep.subr.bf16.mxu0 0
    %729 = vmatpush1.bf16.msra.mxu0 0
    %730 = vmatprep.subr.bf16.mxu0 0
    %731 = vmatpush1.bf16.msra.mxu0 0
    %732 = vmatprep.subr.bf16.mxu0 0
    %733 = vmatpush1.bf16.msra.mxu0 0
    %734 = vmatprep.subr.bf16.mxu0 0
    %735 = vmatpush1.bf16.msra.mxu0 0
    %736 = vmatprep.subr.bf16.mxu0 0
    %737 = vmatpush1.bf16.msra.mxu0 0
    %738 = vmatprep.mubr.bf16.mxu0 0
    %739 = vmatmul.mubr.bf16.gmra.mrb[0].mxu0 %v697
    %v740 = vpop.f32.mrb[0].mxu0
    %v741 = vadd.f32 0.0, %v740
    %v742 = vpop.f32.mrb[0].mxu0
    %v743 = vadd.f32 0.0, %v742
    %v744 = vpop.f32.mrb[0].mxu0
    %v745 = vpop.f32.mrb[0].mxu0
    %746 = vdwg.mxu0
    %v748 = vsel %vm695, %v452, 0
    %v751 = vsel %vm699, %v450, 0
    %v754 = vsel %vm699, %v451, 0
    %756 = vmatprep.subr.bf16.mxu0 %v754
    %757 = vmatpush1.bf16.msra.mxu0 %v751
    %758 = vmatprep.subr.bf16.mxu0 0
    %759 = vmatpush1.bf16.msra.mxu0 0
    %760 = vmatprep.subr.bf16.mxu0 0
    %761 = vmatpush1.bf16.msra.mxu0 0
    %762 = vmatprep.subr.bf16.mxu0 0
    %763 = vmatpush1.bf16.msra.mxu0 0
    %764 = vmatprep.subr.bf16.mxu0 0
    %765 = vmatpush1.bf16.msra.mxu0 0
    %766 = vmatprep.subr.bf16.mxu0 0
    %767 = vmatpush1.bf16.msra.mxu0 0
    %768 = vmatprep.subr.bf16.mxu0 0
    %769 = vmatpush1.bf16.msra.mxu0 0
    %770 = vmatprep.subr.bf16.mxu0 0
    %771 = vmatpush1.bf16.msra.mxu0 0
    %772 = vmatprep.subr.bf16.mxu0 0
    %773 = vmatpush1.bf16.msra.mxu0 0
    %774 = vmatprep.subr.bf16.mxu0 0
    %775 = vmatpush1.bf16.msra.mxu0 0
    %776 = vmatprep.subr.bf16.mxu0 0
    %777 = vmatpush1.bf16.msra.mxu0 0
    %778 = vmatprep.subr.bf16.mxu0 0
    %779 = vmatpush1.bf16.msra.mxu0 0
    %780 = vmatprep.subr.bf16.mxu0 0
    %781 = vmatpush1.bf16.msra.mxu0 0
    %782 = vmatprep.subr.bf16.mxu0 0
    %783 = vmatpush1.bf16.msra.mxu0 0
    %784 = vmatprep.subr.bf16.mxu0 0
    %785 = vmatpush1.bf16.msra.mxu0 0
    %786 = vmatprep.subr.bf16.mxu0 0
    %787 = vmatpush1.bf16.msra.mxu0 0
    %788 = vmatprep.mubr.bf16.mxu0 0
    %789 = vmatmul.mubr.bf16.gmra.mrb[0].mxu0 %v748
    %v790 = vpop.f32.mrb[0].mxu0
    %v791 = vadd.f32 %v741, %v790
    %v792 = vpop.f32.mrb[0].mxu0
    %v793 = vadd.f32 %v743, %v792
    %v794 = vpop.f32.mrb[0].mxu0
    %v795 = vpop.f32.mrb[0].mxu0
    %796 = vdwg.mxu0
    %797 = vrot.lane.b32.xlu0 %v212, 126
    %v798 = vpop.permute.xlu0 %797
    %799 = vrot.lane.b32.xlu0 %v213, 126
    %v800 = vpop.permute.xlu0 %799
    %801 = vrot.lane.b32.xlu0 %v215, 126
    %v802 = vpop.permute.xlu0 %801
    %803 = vrot.lane.b32.xlu0 %v216, 126
    %v804 = vpop.permute.xlu0 %803
    %805 = vrot.lane.b32.xlu0 %v218, 126
    %v806 = vpop.permute.xlu0 %805
    %807 = vrot.lane.b32.xlu0 %v219, 126
    %v808 = vpop.permute.xlu0 %807
    %809 = vrot.lane.b32.xlu0 %v221, 126
    %v810 = vpop.permute.xlu0 %809
    %811 = vrot.lane.b32.xlu0 %v222, 126
    %v812 = vpop.permute.xlu0 %811
    %v821 = vcombine.low %v798, %v806
    %v822 = vcombine.high %v798, %v806
    %v824 = vunpack.c.l.s4 1983009808
    %v825 = vunpack.c.0.s8 %v824
    %v826 = vlaneseq
    %v827 = vshrl.u32 %v826, 7
    %v828 = vsub.s32 %v825, %v827
    %v829 = vrot.slane %v821, %v828
    %v831 = vunpack.c.l.s4 1983009808
    %v832 = vunpack.c.0.s8 %v831
    %v833 = vlaneseq
    %v834 = vshrl.u32 %v833, 7
    %v835 = vsub.s32 %v832, %v834
    %v836 = vrot.slane %v822, %v835
    %v837 = vcombine.low %v802, %v810
    %v838 = vcombine.high %v802, %v810
    %v840 = vunpack.c.l.s4 1983009808
    %v841 = vunpack.c.0.s8 %v840
    %v842 = vlaneseq
    %v843 = vshrl.u32 %v842, 7
    %v844 = vsub.s32 %v841, %v843
    %v845 = vrot.slane %v837, %v844
    %v847 = vunpack.c.l.s4 1983009808
    %v848 = vunpack.c.0.s8 %v847
    %v849 = vlaneseq
    %v850 = vshrl.u32 %v849, 7
    %v851 = vsub.s32 %v848, %v850
    %v852 = vrot.slane %v838, %v851
    %v853 = vcombine.low %v829, %v845
    %v854 = vcombine.high %v829, %v845
    %v856 = vunpack.c.l.s4 1934713408
    %v857 = vunpack.c.0.s8 %v856
    %v858 = vlaneseq
    %v859 = vshrl.u32 %v858, 7
    %v860 = vsub.s32 %v857, %v859
    %v861 = vrot.slane %v853, %v860
    %v863 = vunpack.c.l.s4 1934713408
    %v864 = vunpack.c.0.s8 %v863
    %v865 = vlaneseq
    %v866 = vshrl.u32 %v865, 7
    %v867 = vsub.s32 %v864, %v866
    %v868 = vrot.slane %v854, %v867
    %v869 = vcombine.low %v836, %v852
    %v870 = vcombine.high %v836, %v852
    %v872 = vunpack.c.l.s4 1934713408
    %v873 = vunpack.c.0.s8 %v872
    %v874 = vlaneseq
    %v875 = vshrl.u32 %v874, 7
    %v876 = vsub.s32 %v873, %v875
    %v877 = vrot.slane %v869, %v876
    %v879 = vunpack.c.l.s4 1934713408
    %v880 = vunpack.c.0.s8 %v879
    %v881 = vlaneseq
    %v882 = vshrl.u32 %v881, 7
    %v883 = vsub.s32 %v880, %v882
    %v884 = vrot.slane %v870, %v883
    %v885 = vcombine.high %v861, 0.0
    %v886 = vcombine.high %v868, 0.0
    %v887 = vcombine.high %v877, 0.0
    %v888 = vcombine.high %v884, 0.0
    %v889 = vcombine.low %v800, %v808
    %v890 = vcombine.high %v800, %v808
    %v892 = vunpack.c.l.s4 1983009808
    %v893 = vunpack.c.0.s8 %v892
    %v894 = vlaneseq
    %v895 = vshrl.u32 %v894, 7
    %v896 = vsub.s32 %v893, %v895
    %v897 = vrot.slane %v889, %v896
    %v899 = vunpack.c.l.s4 1983009808
    %v900 = vunpack.c.0.s8 %v899
    %v901 = vlaneseq
    %v902 = vshrl.u32 %v901, 7
    %v903 = vsub.s32 %v900, %v902
    %v904 = vrot.slane %v890, %v903
    %v905 = vcombine.low %v804, %v812
    %v906 = vcombine.high %v804, %v812
    %v908 = vunpack.c.l.s4 1983009808
    %v909 = vunpack.c.0.s8 %v908
    %v910 = vlaneseq
    %v911 = vshrl.u32 %v910, 7
    %v912 = vsub.s32 %v909, %v911
    %v913 = vrot.slane %v905, %v912
    %v915 = vunpack.c.l.s4 1983009808
    %v916 = vunpack.c.0.s8 %v915
    %v917 = vlaneseq
    %v918 = vshrl.u32 %v917, 7
    %v919 = vsub.s32 %v916, %v918
    %v920 = vrot.slane %v906, %v919
    %v921 = vcombine.low %v897, %v913
    %v922 = vcombine.high %v897, %v913
    %v924 = vunpack.c.l.s4 1934713408
    %v925 = vunpack.c.0.s8 %v924
    %v926 = vlaneseq
    %v927 = vshrl.u32 %v926, 7
    %v928 = vsub.s32 %v925, %v927
    %v929 = vrot.slane %v921, %v928
    %v931 = vunpack.c.l.s4 1934713408
    %v932 = vunpack.c.0.s8 %v931
    %v933 = vlaneseq
    %v934 = vshrl.u32 %v933, 7
    %v935 = vsub.s32 %v932, %v934
    %v936 = vrot.slane %v922, %v935
    %v937 = vcombine.low %v904, %v920
    %v938 = vcombine.high %v904, %v920
    %v940 = vunpack.c.l.s4 1934713408
    %v941 = vunpack.c.0.s8 %v940
    %v942 = vlaneseq
    %v943 = vshrl.u32 %v942, 7
    %v944 = vsub.s32 %v941, %v943
    %v945 = vrot.slane %v937, %v944
    %v947 = vunpack.c.l.s4 1934713408
    %v948 = vunpack.c.0.s8 %v947
    %v949 = vlaneseq
    %v950 = vshrl.u32 %v949, 7
    %v951 = vsub.s32 %v948, %v950
    %v952 = vrot.slane %v938, %v951
    %v953 = vcombine.high %v929, 0.0
    %v954 = vcombine.high %v936, 0.0
    %v955 = vcombine.high %v945, 0.0
    %v956 = vcombine.high %v952, 0.0
    %958 = vrot.lane.b32.xlu0 %v885, 16
    %v959 = vpop.permute.xlu0 %958
    %962 = vrot.lane.b32.xlu0 %v868, 32
    %v963 = vpop.permute.xlu0 %962
    %966 = vrot.lane.b32.xlu0 %v886, 48
    %v967 = vpop.permute.xlu0 %966
    %970 = vrot.lane.b32.xlu0 %v877, 64
    %v971 = vpop.permute.xlu0 %970
    %974 = vrot.lane.b32.xlu0 %v887, 80
    %v975 = vpop.permute.xlu0 %974
    %978 = vrot.lane.b32.xlu0 %v884, 96
    %v979 = vpop.permute.xlu0 %978
    %982 = vrot.lane.b32.xlu0 %v888, 112
    %v983 = vpop.permute.xlu0 %982
    %986 = vrot.lane.b32.xlu0 %v953, 16
    %v987 = vpop.permute.xlu0 %986
    %990 = vrot.lane.b32.xlu0 %v936, 32
    %v991 = vpop.permute.xlu0 %990
    %994 = vrot.lane.b32.xlu0 %v954, 48
    %v995 = vpop.permute.xlu0 %994
    %998 = vrot.lane.b32.xlu0 %v945, 64
    %v999 = vpop.permute.xlu0 %998
    %1002 = vrot.lane.b32.xlu0 %v955, 80
    %v1003 = vpop.permute.xlu0 %1002
    %1006 = vrot.lane.b32.xlu0 %v952, 96
    %v1007 = vpop.permute.xlu0 %1006
    %1010 = vrot.lane.b32.xlu0 %v956, 112
    %v1011 = vpop.permute.xlu0 %1010
    %v1013 = vsel %vm429, %v861, %v959
    %v1014 = vsel %vm431, %v1013, %v963
    %v1015 = vsel %vm433, %v1014, %v967
    %v1016 = vsel %vm435, %v1015, %v971
    %v1017 = vsel %vm437, %v1016, %v975
    %v1018 = vsel %vm439, %v1017, %v979
    %v1019 = vsel %vm441, %v1018, %v983
    %v1020 = vsel %vm429, %v929, %v987
    %v1021 = vsel %vm431, %v1020, %v991
    %v1022 = vsel %vm433, %v1021, %v995
    %v1023 = vsel %vm435, %v1022, %v999
    %v1024 = vsel %vm437, %v1023, %v1003
    %v1025 = vsel %vm439, %v1024, %v1007
    %v1026 = vsel %vm441, %v1025, %v1011
    %v1027 = vpack.c.bf16 %v1019, %v1019
    %v1028 = vpack.c.bf16 %v1026, %v1026
    %s1029 = scalar_lea.vmem %s1, 8
    %v1030 = vld [vmem:[%s1029] sm:$0xf]
    %v1032 = vsel %vm695, %v1030, 0
    %v1035 = vsel %vm699, %v1027, 0
    %v1038 = vsel %vm699, %v1028, 0
    %1040 = vmatprep.subr.bf16.mxu0 %v1038
    %1041 = vmatpush1.bf16.msra.mxu0 %v1035
    %1042 = vmatprep.subr.bf16.mxu0 0
    %1043 = vmatpush1.bf16.msra.mxu0 0
    %1044 = vmatprep.subr.bf16.mxu0 0
    %1045 = vmatpush1.bf16.msra.mxu0 0
    %1046 = vmatprep.subr.bf16.mxu0 0
    %1047 = vmatpush1.bf16.msra.mxu0 0
    %1048 = vmatprep.subr.bf16.mxu0 0
    %1049 = vmatpush1.bf16.msra.mxu0 0
    %1050 = vmatprep.subr.bf16.mxu0 0
    %1051 = vmatpush1.bf16.msra.mxu0 0
    %1052 = vmatprep.subr.bf16.mxu0 0
    %1053 = vmatpush1.bf16.msra.mxu0 0
    %1054 = vmatprep.subr.bf16.mxu0 0
    %1055 = vmatpush1.bf16.msra.mxu0 0
    %1056 = vmatprep.subr.bf16.mxu0 0
    %1057 = vmatpush1.bf16.msra.mxu0 0
    %1058 = vmatprep.subr.bf16.mxu0 0
    %1059 = vmatpush1.bf16.msra.mxu0 0
    %1060 = vmatprep.subr.bf16.mxu0 0
    %1061 = vmatpush1.bf16.msra.mxu0 0
    %1062 = vmatprep.subr.bf16.mxu0 0
    %1063 = vmatpush1.bf16.msra.mxu0 0
    %1064 = vmatprep.subr.bf16.mxu0 0
    %1065 = vmatpush1.bf16.msra.mxu0 0
    %1066 = vmatprep.subr.bf16.mxu0 0
    %1067 = vmatpush1.bf16.msra.mxu0 0
    %1068 = vmatprep.subr.bf16.mxu0 0
    %1069 = vmatpush1.bf16.msra.mxu0 0
    %1070 = vmatprep.subr.bf16.mxu0 0
    %1071 = vmatpush1.bf16.msra.mxu0 0
    %1072 = vmatprep.mubr.bf16.mxu0 0
    %1073 = vmatmul.mubr.bf16.gmra.mrb[0].mxu0 %v1032
    %v1074 = vpop.f32.mrb[0].mxu0
    %v1075 = vadd.f32 0.0, %v1074
    %v1076 = vpop.f32.mrb[0].mxu0
    %v1077 = vadd.f32 0.0, %v1076
    %v1078 = vpop.f32.mrb[0].mxu0
    %v1079 = vpop.f32.mrb[0].mxu0
    %1080 = vdwg.mxu0
    %v1081 = vadd.f32 %v791, %v1075
    %v1082 = vadd.f32 %v793, %v1077
    %vm1087 = vcmask 1046528
    %v1088 = vrot.slane %v212, 1
    %v1089 = vrot.slane %v213, 1
    %v1090 = vsel %vm1087, %v1088, %v1089
    %v1091 = vrot.slane %v214, 1
    %v1092 = vsel %vm1087, %v1089, %v1091
    %v1093 = vrot.slane %v215, 1
    %v1094 = vrot.slane %v216, 1
    %v1095 = vsel %vm1087, %v1093, %v1094
    %v1096 = vrot.slane %v217, 1
    %v1097 = vsel %vm1087, %v1094, %v1096
    %v1098 = vrot.slane %v218, 1
    %v1099 = vrot.slane %v219, 1
    %v1100 = vsel %vm1087, %v1098, %v1099
    %v1101 = vrot.slane %v220, 1
    %v1102 = vsel %vm1087, %v1099, %v1101
    %v1103 = vrot.slane %v221, 1
    %v1104 = vrot.slane %v222, 1
    %v1105 = vsel %vm1087, %v1103, %v1104
    %v1106 = vrot.slane %v223, 1
    %v1107 = vsel %vm1087, %v1104, %v1106
    %v1116 = vcombine.low %v1090, %v1100
    %v1117 = vcombine.high %v1090, %v1100
    %v1119 = vunpack.c.l.s4 1983009808
    %v1120 = vunpack.c.0.s8 %v1119
    %v1121 = vlaneseq
    %v1122 = vshrl.u32 %v1121, 7
    %v1123 = vsub.s32 %v1120, %v1122
    %v1124 = vrot.slane %v1116, %v1123
    %v1126 = vunpack.c.l.s4 1983009808
    %v1127 = vunpack.c.0.s8 %v1126
    %v1128 = vlaneseq
    %v1129 = vshrl.u32 %v1128, 7
    %v1130 = vsub.s32 %v1127, %v1129
    %v1131 = vrot.slane %v1117, %v1130
    %v1132 = vcombine.low %v1095, %v1105
    %v1133 = vcombine.high %v1095, %v1105
    %v1135 = vunpack.c.l.s4 1983009808
    %v1136 = vunpack.c.0.s8 %v1135
    %v1137 = vlaneseq
    %v1138 = vshrl.u32 %v1137, 7
    %v1139 = vsub.s32 %v1136, %v1138
    %v1140 = vrot.slane %v1132, %v1139
    %v1142 = vunpack.c.l.s4 1983009808
    %v1143 = vunpack.c.0.s8 %v1142
    %v1144 = vlaneseq
    %v1145 = vshrl.u32 %v1144, 7
    %v1146 = vsub.s32 %v1143, %v1145
    %v1147 = vrot.slane %v1133, %v1146
    %v1148 = vcombine.low %v1124, %v1140
    %v1149 = vcombine.high %v1124, %v1140
    %v1151 = vunpack.c.l.s4 1934713408
    %v1152 = vunpack.c.0.s8 %v1151
    %v1153 = vlaneseq
    %v1154 = vshrl.u32 %v1153, 7
    %v1155 = vsub.s32 %v1152, %v1154
    %v1156 = vrot.slane %v1148, %v1155
    %v1158 = vunpack.c.l.s4 1934713408
    %v1159 = vunpack.c.0.s8 %v1158
    %v1160 = vlaneseq
    %v1161 = vshrl.u32 %v1160, 7
    %v1162 = vsub.s32 %v1159, %v1161
    %v1163 = vrot.slane %v1149, %v1162
    %v1164 = vcombine.low %v1131, %v1147
    %v1165 = vcombine.high %v1131, %v1147
    %v1167 = vunpack.c.l.s4 1934713408
    %v1168 = vunpack.c.0.s8 %v1167
    %v1169 = vlaneseq
    %v1170 = vshrl.u32 %v1169, 7
    %v1171 = vsub.s32 %v1168, %v1170
    %v1172 = vrot.slane %v1164, %v1171
    %v1174 = vunpack.c.l.s4 1934713408
    %v1175 = vunpack.c.0.s8 %v1174
    %v1176 = vlaneseq
    %v1177 = vshrl.u32 %v1176, 7
    %v1178 = vsub.s32 %v1175, %v1177
    %v1179 = vrot.slane %v1165, %v1178
    %v1180 = vcombine.high %v1156, 0.0
    %v1181 = vcombine.high %v1163, 0.0
    %v1182 = vcombine.high %v1172, 0.0
    %v1183 = vcombine.high %v1179, 0.0
    %v1184 = vcombine.low %v1092, %v1102
    %v1185 = vcombine.high %v1092, %v1102
    %v1187 = vunpack.c.l.s4 1983009808
    %v1188 = vunpack.c.0.s8 %v1187
    %v1189 = vlaneseq
    %v1190 = vshrl.u32 %v1189, 7
    %v1191 = vsub.s32 %v1188, %v1190
    %v1192 = vrot.slane %v1184, %v1191
    %v1194 = vunpack.c.l.s4 1983009808
    %v1195 = vunpack.c.0.s8 %v1194
    %v1196 = vlaneseq
    %v1197 = vshrl.u32 %v1196, 7
    %v1198 = vsub.s32 %v1195, %v1197
    %v1199 = vrot.slane %v1185, %v1198
    %v1200 = vcombine.low %v1097, %v1107
    %v1201 = vcombine.high %v1097, %v1107
    %v1203 = vunpack.c.l.s4 1983009808
    %v1204 = vunpack.c.0.s8 %v1203
    %v1205 = vlaneseq
    %v1206 = vshrl.u32 %v1205, 7
    %v1207 = vsub.s32 %v1204, %v1206
    %v1208 = vrot.slane %v1200, %v1207
    %v1210 = vunpack.c.l.s4 1983009808
    %v1211 = vunpack.c.0.s8 %v1210
    %v1212 = vlaneseq
    %v1213 = vshrl.u32 %v1212, 7
    %v1214 = vsub.s32 %v1211, %v1213
    %v1215 = vrot.slane %v1201, %v1214
    %v1216 = vcombine.low %v1192, %v1208
    %v1217 = vcombine.high %v1192, %v1208
    %v1219 = vunpack.c.l.s4 1934713408
    %v1220 = vunpack.c.0.s8 %v1219
    %v1221 = vlaneseq
    %v1222 = vshrl.u32 %v1221, 7
    %v1223 = vsub.s32 %v1220, %v1222
    %v1224 = vrot.slane %v1216, %v1223
    %v1226 = vunpack.c.l.s4 1934713408
    %v1227 = vunpack.c.0.s8 %v1226
    %v1228 = vlaneseq
    %v1229 = vshrl.u32 %v1228, 7
    %v1230 = vsub.s32 %v1227, %v1229
    %v1231 = vrot.slane %v1217, %v1230
    %v1232 = vcombine.low %v1199, %v1215
    %v1233 = vcombine.high %v1199, %v1215
    %v1235 = vunpack.c.l.s4 1934713408
    %v1236 = vunpack.c.0.s8 %v1235
    %v1237 = vlaneseq
    %v1238 = vshrl.u32 %v1237, 7
    %v1239 = vsub.s32 %v1236, %v1238
    %v1240 = vrot.slane %v1232, %v1239
    %v1242 = vunpack.c.l.s4 1934713408
    %v1243 = vunpack.c.0.s8 %v1242
    %v1244 = vlaneseq
    %v1245 = vshrl.u32 %v1244, 7
    %v1246 = vsub.s32 %v1243, %v1245
    %v1247 = vrot.slane %v1233, %v1246
    %v1248 = vcombine.high %v1224, 0.0
    %v1249 = vcombine.high %v1231, 0.0
    %v1250 = vcombine.high %v1240, 0.0
    %v1251 = vcombine.high %v1247, 0.0
    %1253 = vrot.lane.b32.xlu0 %v1180, 16
    %v1254 = vpop.permute.xlu0 %1253
    %1257 = vrot.lane.b32.xlu0 %v1163, 32
    %v1258 = vpop.permute.xlu0 %1257
    %1261 = vrot.lane.b32.xlu0 %v1181, 48
    %v1262 = vpop.permute.xlu0 %1261
    %1265 = vrot.lane.b32.xlu0 %v1172, 64
    %v1266 = vpop.permute.xlu0 %1265
    %1269 = vrot.lane.b32.xlu0 %v1182, 80
    %v1270 = vpop.permute.xlu0 %1269
    %1273 = vrot.lane.b32.xlu0 %v1179, 96
    %v1274 = vpop.permute.xlu0 %1273
    %1277 = vrot.lane.b32.xlu0 %v1183, 112
    %v1278 = vpop.permute.xlu0 %1277
    %1281 = vrot.lane.b32.xlu0 %v1248, 16
    %v1282 = vpop.permute.xlu0 %1281
    %1285 = vrot.lane.b32.xlu0 %v1231, 32
    %v1286 = vpop.permute.xlu0 %1285
    %1289 = vrot.lane.b32.xlu0 %v1249, 48
    %v1290 = vpop.permute.xlu0 %1289
    %1293 = vrot.lane.b32.xlu0 %v1240, 64
    %v1294 = vpop.permute.xlu0 %1293
    %1297 = vrot.lane.b32.xlu0 %v1250, 80
    %v1298 = vpop.permute.xlu0 %1297
    %1301 = vrot.lane.b32.xlu0 %v1247, 96
    %v1302 = vpop.permute.xlu0 %1301
    %1305 = vrot.lane.b32.xlu0 %v1251, 112
    %v1306 = vpop.permute.xlu0 %1305
    %v1308 = vsel %vm429, %v1156, %v1254
    %v1309 = vsel %vm431, %v1308, %v1258
    %v1310 = vsel %vm433, %v1309, %v1262
    %v1311 = vsel %vm435, %v1310, %v1266
    %v1312 = vsel %vm437, %v1311, %v1270
    %v1313 = vsel %vm439, %v1312, %v1274
    %v1314 = vsel %vm441, %v1313, %v1278
    %v1315 = vsel %vm429, %v1224, %v1282
    %v1316 = vsel %vm431, %v1315, %v1286
    %v1317 = vsel %vm433, %v1316, %v1290
    %v1318 = vsel %vm435, %v1317, %v1294
    %v1319 = vsel %vm437, %v1318, %v1298
    %v1320 = vsel %vm439, %v1319, %v1302
    %v1321 = vsel %vm441, %v1320, %v1306
    %v1322 = vpack.c.bf16 %v1314, %v1314
    %v1323 = vpack.c.bf16 %v1321, %v1321
    %s1324 = scalar_lea.vmem %s1, 12
    %v1325 = vld [vmem:[%s1324] sm:$0xf]
    %v1327 = vsel %vm695, %v1325, 0
    %v1330 = vsel %vm699, %v1322, 0
    %v1333 = vsel %vm699, %v1323, 0
    %1335 = vmatprep.subr.bf16.mxu0 %v1333
    %1336 = vmatpush1.bf16.msra.mxu0 %v1330
    %1337 = vmatprep.subr.bf16.mxu0 0
    %1338 = vmatpush1.bf16.msra.mxu0 0
    %1339 = vmatprep.subr.bf16.mxu0 0
    %1340 = vmatpush1.bf16.msra.mxu0 0
    %1341 = vmatprep.subr.bf16.mxu0 0
    %1342 = vmatpush1.bf16.msra.mxu0 0
    %1343 = vmatprep.subr.bf16.mxu0 0
    %1344 = vmatpush1.bf16.msra.mxu0 0
    %1345 = vmatprep.subr.bf16.mxu0 0
    %1346 = vmatpush1.bf16.msra.mxu0 0
    %1347 = vmatprep.subr.bf16.mxu0 0
    %1348 = vmatpush1.bf16.msra.mxu0 0
    %1349 = vmatprep.subr.bf16.mxu0 0
    %1350 = vmatpush1.bf16.msra.mxu0 0
    %1351 = vmatprep.subr.bf16.mxu0 0
    %1352 = vmatpush1.bf16.msra.mxu0 0
    %1353 = vmatprep.subr.bf16.mxu0 0
    %1354 = vmatpush1.bf16.msra.mxu0 0
    %1355 = vmatprep.subr.bf16.mxu0 0
    %1356 = vmatpush1.bf16.msra.mxu0 0
    %1357 = vmatprep.subr.bf16.mxu0 0
    %1358 = vmatpush1.bf16.msra.mxu0 0
    %1359 = vmatprep.subr.bf16.mxu0 0
    %1360 = vmatpush1.bf16.msra.mxu0 0
    %1361 = vmatprep.subr.bf16.mxu0 0
    %1362 = vmatpush1.bf16.msra.mxu0 0
    %1363 = vmatprep.subr.bf16.mxu0 0
    %1364 = vmatpush1.bf16.msra.mxu0 0
    %1365 = vmatprep.subr.bf16.mxu0 0
    %1366 = vmatpush1.bf16.msra.mxu0 0
    %1367 = vmatprep.mubr.bf16.mxu0 0
    %1368 = vmatmul.mubr.bf16.gmra.mrb[0].mxu0 %v1327
    %v1369 = vpop.f32.mrb[0].mxu0
    %v1370 = vadd.f32 0.0, %v1369
    %v1371 = vpop.f32.mrb[0].mxu0
    %v1372 = vadd.f32 0.0, %v1371
    %v1373 = vpop.f32.mrb[0].mxu0
    %v1374 = vpop.f32.mrb[0].mxu0
    %1375 = vdwg.mxu0
    %v1376 = vadd.f32 %v1081, %v1370
    %v1377 = vadd.f32 %v1082, %v1372
    %1378 = vrot.lane.b32.xlu0 %v1090, 127
    %v1379 = vpop.permute.xlu0 %1378
    %1380 = vrot.lane.b32.xlu0 %v1092, 127
    %v1381 = vpop.permute.xlu0 %1380
    %1382 = vrot.lane.b32.xlu0 %v1095, 127
    %v1383 = vpop.permute.xlu0 %1382
    %1384 = vrot.lane.b32.xlu0 %v1097, 127
    %v1385 = vpop.permute.xlu0 %1384
    %1386 = vrot.lane.b32.xlu0 %v1100, 127
    %v1387 = vpop.permute.xlu0 %1386
    %1388 = vrot.lane.b32.xlu0 %v1102, 127
    %v1389 = vpop.permute.xlu0 %1388
    %1390 = vrot.lane.b32.xlu0 %v1105, 127
    %v1391 = vpop.permute.xlu0 %1390
    %1392 = vrot.lane.b32.xlu0 %v1107, 127
    %v1393 = vpop.permute.xlu0 %1392
    %v1402 = vcombine.low %v1379, %v1387
    %v1403 = vcombine.high %v1379, %v1387
    %v1405 = vunpack.c.l.s4 1983009808
    %v1406 = vunpack.c.0.s8 %v1405
    %v1407 = vlaneseq
    %v1408 = vshrl.u32 %v1407, 7
    %v1409 = vsub.s32 %v1406, %v1408
    %v1410 = vrot.slane %v1402, %v1409
    %v1412 = vunpack.c.l.s4 1983009808
    %v1413 = vunpack.c.0.s8 %v1412
    %v1414 = vlaneseq
    %v1415 = vshrl.u32 %v1414, 7
    %v1416 = vsub.s32 %v1413, %v1415
    %v1417 = vrot.slane %v1403, %v1416
    %v1418 = vcombine.low %v1383, %v1391
    %v1419 = vcombine.high %v1383, %v1391
    %v1421 = vunpack.c.l.s4 1983009808
    %v1422 = vunpack.c.0.s8 %v1421
    %v1423 = vlaneseq
    %v1424 = vshrl.u32 %v1423, 7
    %v1425 = vsub.s32 %v1422, %v1424
    %v1426 = vrot.slane %v1418, %v1425
    %v1428 = vunpack.c.l.s4 1983009808
    %v1429 = vunpack.c.0.s8 %v1428
    %v1430 = vlaneseq
    %v1431 = vshrl.u32 %v1430, 7
    %v1432 = vsub.s32 %v1429, %v1431
    %v1433 = vrot.slane %v1419, %v1432
    %v1434 = vcombine.low %v1410, %v1426
    %v1435 = vcombine.high %v1410, %v1426
    %v1437 = vunpack.c.l.s4 1934713408
    %v1438 = vunpack.c.0.s8 %v1437
    %v1439 = vlaneseq
    %v1440 = vshrl.u32 %v1439, 7
    %v1441 = vsub.s32 %v1438, %v1440
    %v1442 = vrot.slane %v1434, %v1441
    %v1444 = vunpack.c.l.s4 1934713408
    %v1445 = vunpack.c.0.s8 %v1444
    %v1446 = vlaneseq
    %v1447 = vshrl.u32 %v1446, 7
    %v1448 = vsub.s32 %v1445, %v1447
    %v1449 = vrot.slane %v1435, %v1448
    %v1450 = vcombine.low %v1417, %v1433
    %v1451 = vcombine.high %v1417, %v1433
    %v1453 = vunpack.c.l.s4 1934713408
    %v1454 = vunpack.c.0.s8 %v1453
    %v1455 = vlaneseq
    %v1456 = vshrl.u32 %v1455, 7
    %v1457 = vsub.s32 %v1454, %v1456
    %v1458 = vrot.slane %v1450, %v1457
    %v1460 = vunpack.c.l.s4 1934713408
    %v1461 = vunpack.c.0.s8 %v1460
    %v1462 = vlaneseq
    %v1463 = vshrl.u32 %v1462, 7
    %v1464 = vsub.s32 %v1461, %v1463
    %v1465 = vrot.slane %v1451, %v1464
    %v1466 = vcombine.high %v1442, 0.0
    %v1467 = vcombine.high %v1449, 0.0
    %v1468 = vcombine.high %v1458, 0.0
    %v1469 = vcombine.high %v1465, 0.0
    %v1470 = vcombine.low %v1381, %v1389
    %v1471 = vcombine.high %v1381, %v1389
    %v1473 = vunpack.c.l.s4 1983009808
    %v1474 = vunpack.c.0.s8 %v1473
    %v1475 = vlaneseq
    %v1476 = vshrl.u32 %v1475, 7
    %v1477 = vsub.s32 %v1474, %v1476
    %v1478 = vrot.slane %v1470, %v1477
    %v1480 = vunpack.c.l.s4 1983009808
    %v1481 = vunpack.c.0.s8 %v1480
    %v1482 = vlaneseq
    %v1483 = vshrl.u32 %v1482, 7
    %v1484 = vsub.s32 %v1481, %v1483
    %v1485 = vrot.slane %v1471, %v1484
    %v1486 = vcombine.low %v1385, %v1393
    %v1487 = vcombine.high %v1385, %v1393
    %v1489 = vunpack.c.l.s4 1983009808
    %v1490 = vunpack.c.0.s8 %v1489
    %v1491 = vlaneseq
    %v1492 = vshrl.u32 %v1491, 7
    %v1493 = vsub.s32 %v1490, %v1492
    %v1494 = vrot.slane %v1486, %v1493
    %v1496 = vunpack.c.l.s4 1983009808
    %v1497 = vunpack.c.0.s8 %v1496
    %v1498 = vlaneseq
    %v1499 = vshrl.u32 %v1498, 7
    %v1500 = vsub.s32 %v1497, %v1499
    %v1501 = vrot.slane %v1487, %v1500
    %v1502 = vcombine.low %v1478, %v1494
    %v1503 = vcombine.high %v1478, %v1494
    %v1505 = vunpack.c.l.s4 1934713408
    %v1506 = vunpack.c.0.s8 %v1505
    %v1507 = vlaneseq
    %v1508 = vshrl.u32 %v1507, 7
    %v1509 = vsub.s32 %v1506, %v1508
    %v1510 = vrot.slane %v1502, %v1509
    %v1512 = vunpack.c.l.s4 1934713408
    %v1513 = vunpack.c.0.s8 %v1512
    %v1514 = vlaneseq
    %v1515 = vshrl.u32 %v1514, 7
    %v1516 = vsub.s32 %v1513, %v1515
    %v1517 = vrot.slane %v1503, %v1516
    %v1518 = vcombine.low %v1485, %v1501
    %v1519 = vcombine.high %v1485, %v1501
    %v1521 = vunpack.c.l.s4 1934713408
    %v1522 = vunpack.c.0.s8 %v1521
    %v1523 = vlaneseq
    %v1524 = vshrl.u32 %v1523, 7
    %v1525 = vsub.s32 %v1522, %v1524
    %v1526 = vrot.slane %v1518, %v1525
    %v1528 = vunpack.c.l.s4 1934713408
    %v1529 = vunpack.c.0.s8 %v1528
    %v1530 = vlaneseq
    %v1531 = vshrl.u32 %v1530, 7
    %v1532 = vsub.s32 %v1529, %v1531
    %v1533 = vrot.slane %v1519, %v1532
    %v1534 = vcombine.high %v1510, 0.0
    %v1535 = vcombine.high %v1517, 0.0
    %v1536 = vcombine.high %v1526, 0.0
    %v1537 = vcombine.high %v1533, 0.0
    %1539 = vrot.lane.b32.xlu0 %v1466, 16
    %v1540 = vpop.permute.xlu0 %1539
    %1543 = vrot.lane.b32.xlu0 %v1449, 32
    %v1544 = vpop.permute.xlu0 %1543
    %1547 = vrot.lane.b32.xlu0 %v1467, 48
    %v1548 = vpop.permute.xlu0 %1547
    %1551 = vrot.lane.b32.xlu0 %v1458, 64
    %v1552 = vpop.permute.xlu0 %1551
    %1555 = vrot.lane.b32.xlu0 %v1468, 80
    %v1556 = vpop.permute.xlu0 %1555
    %1559 = vrot.lane.b32.xlu0 %v1465, 96
    %v1560 = vpop.permute.xlu0 %1559
    %1563 = vrot.lane.b32.xlu0 %v1469, 112
    %v1564 = vpop.permute.xlu0 %1563
    %1567 = vrot.lane.b32.xlu0 %v1534, 16
    %v1568 = vpop.permute.xlu0 %1567
    %1571 = vrot.lane.b32.xlu0 %v1517, 32
    %v1572 = vpop.permute.xlu0 %1571
    %1575 = vrot.lane.b32.xlu0 %v1535, 48
    %v1576 = vpop.permute.xlu0 %1575
    %1579 = vrot.lane.b32.xlu0 %v1526, 64
    %v1580 = vpop.permute.xlu0 %1579
    %1583 = vrot.lane.b32.xlu0 %v1536, 80
    %v1584 = vpop.permute.xlu0 %1583
    %1587 = vrot.lane.b32.xlu0 %v1533, 96
    %v1588 = vpop.permute.xlu0 %1587
    %1591 = vrot.lane.b32.xlu0 %v1537, 112
    %v1592 = vpop.permute.xlu0 %1591
    %v1594 = vsel %vm429, %v1442, %v1540
    %v1595 = vsel %vm431, %v1594, %v1544
    %v1596 = vsel %vm433, %v1595, %v1548
    %v1597 = vsel %vm435, %v1596, %v1552
    %v1598 = vsel %vm437, %v1597, %v1556
    %v1599 = vsel %vm439, %v1598, %v1560
    %v1600 = vsel %vm441, %v1599, %v1564
    %v1601 = vsel %vm429, %v1510, %v1568
    %v1602 = vsel %vm431, %v1601, %v1572
    %v1603 = vsel %vm433, %v1602, %v1576
    %v1604 = vsel %vm435, %v1603, %v1580
    %v1605 = vsel %vm437, %v1604, %v1584
    %v1606 = vsel %vm439, %v1605, %v1588
    %v1607 = vsel %vm441, %v1606, %v1592
    %v1608 = vpack.c.bf16 %v1600, %v1600
    %v1609 = vpack.c.bf16 %v1607, %v1607
    %s1610 = scalar_lea.vmem %s1, 16
    %v1611 = vld [vmem:[%s1610] sm:$0xf]
    %v1613 = vsel %vm695, %v1611, 0
    %v1616 = vsel %vm699, %v1608, 0
    %v1619 = vsel %vm699, %v1609, 0
    %1621 = vmatprep.subr.bf16.mxu0 %v1619
    %1622 = vmatpush1.bf16.msra.mxu0 %v1616
    %1623 = vmatprep.subr.bf16.mxu0 0
    %1624 = vmatpush1.bf16.msra.mxu0 0
    %1625 = vmatprep.subr.bf16.mxu0 0
    %1626 = vmatpush1.bf16.msra.mxu0 0
    %1627 = vmatprep.subr.bf16.mxu0 0
    %1628 = vmatpush1.bf16.msra.mxu0 0
    %1629 = vmatprep.subr.bf16.mxu0 0
    %1630 = vmatpush1.bf16.msra.mxu0 0
    %1631 = vmatprep.subr.bf16.mxu0 0
    %1632 = vmatpush1.bf16.msra.mxu0 0
    %1633 = vmatprep.subr.bf16.mxu0 0
    %1634 = vmatpush1.bf16.msra.mxu0 0
    %1635 = vmatprep.subr.bf16.mxu0 0
    %1636 = vmatpush1.bf16.msra.mxu0 0
    %1637 = vmatprep.subr.bf16.mxu0 0
    %1638 = vmatpush1.bf16.msra.mxu0 0
    %1639 = vmatprep.subr.bf16.mxu0 0
    %1640 = vmatpush1.bf16.msra.mxu0 0
    %1641 = vmatprep.subr.bf16.mxu0 0
    %1642 = vmatpush1.bf16.msra.mxu0 0
    %1643 = vmatprep.subr.bf16.mxu0 0
    %1644 = vmatpush1.bf16.msra.mxu0 0
    %1645 = vmatprep.subr.bf16.mxu0 0
    %1646 = vmatpush1.bf16.msra.mxu0 0
    %1647 = vmatprep.subr.bf16.mxu0 0
    %1648 = vmatpush1.bf16.msra.mxu0 0
    %1649 = vmatprep.subr.bf16.mxu0 0
    %1650 = vmatpush1.bf16.msra.mxu0 0
    %1651 = vmatprep.subr.bf16.mxu0 0
    %1652 = vmatpush1.bf16.msra.mxu0 0
    %1653 = vmatprep.mubr.bf16.mxu0 0
    %1654 = vmatmul.mubr.bf16.gmra.mrb[0].mxu0 %v1613
    %v1655 = vpop.f32.mrb[0].mxu0
    %v1656 = vadd.f32 0.0, %v1655
    %v1657 = vpop.f32.mrb[0].mxu0
    %v1658 = vadd.f32 0.0, %v1657
    %v1659 = vpop.f32.mrb[0].mxu0
    %v1660 = vpop.f32.mrb[0].mxu0
    %1661 = vdwg.mxu0
    %v1662 = vadd.f32 %v1376, %v1656
    %v1663 = vadd.f32 %v1377, %v1658
    %1664 = vrot.lane.b32.xlu0 %v1090, 126
    %v1665 = vpop.permute.xlu0 %1664
    %1666 = vrot.lane.b32.xlu0 %v1092, 126
    %v1667 = vpop.permute.xlu0 %1666
    %1668 = vrot.lane.b32.xlu0 %v1095, 126
    %v1669 = vpop.permute.xlu0 %1668
    %1670 = vrot.lane.b32.xlu0 %v1097, 126
    %v1671 = vpop.permute.xlu0 %1670
    %1672 = vrot.lane.b32.xlu0 %v1100, 126
    %v1673 = vpop.permute.xlu0 %1672
    %1674 = vrot.lane.b32.xlu0 %v1102, 126
    %v1675 = vpop.permute.xlu0 %1674
    %1676 = vrot.lane.b32.xlu0 %v1105, 126
    %v1677 = vpop.permute.xlu0 %1676
    %1678 = vrot.lane.b32.xlu0 %v1107, 126
    %v1679 = vpop.permute.xlu0 %1678
    %v1688 = vcombine.low %v1665, %v1673
    %v1689 = vcombine.high %v1665, %v1673
    %v1691 = vunpack.c.l.s4 1983009808
    %v1692 = vunpack.c.0.s8 %v1691
    %v1693 = vlaneseq
    %v1694 = vshrl.u32 %v1693, 7
    %v1695 = vsub.s32 %v1692, %v1694
    %v1696 = vrot.slane %v1688, %v1695
    %v1698 = vunpack.c.l.s4 1983009808
    %v1699 = vunpack.c.0.s8 %v1698
    %v1700 = vlaneseq
    %v1701 = vshrl.u32 %v1700, 7
    %v1702 = vsub.s32 %v1699, %v1701
    %v1703 = vrot.slane %v1689, %v1702
    %v1704 = vcombine.low %v1669, %v1677
    %v1705 = vcombine.high %v1669, %v1677
    %v1707 = vunpack.c.l.s4 1983009808
    %v1708 = vunpack.c.0.s8 %v1707
    %v1709 = vlaneseq
    %v1710 = vshrl.u32 %v1709, 7
    %v1711 = vsub.s32 %v1708, %v1710
    %v1712 = vrot.slane %v1704, %v1711
    %v1714 = vunpack.c.l.s4 1983009808
    %v1715 = vunpack.c.0.s8 %v1714
    %v1716 = vlaneseq
    %v1717 = vshrl.u32 %v1716, 7
    %v1718 = vsub.s32 %v1715, %v1717
    %v1719 = vrot.slane %v1705, %v1718
    %v1720 = vcombine.low %v1696, %v1712
    %v1721 = vcombine.high %v1696, %v1712
    %v1723 = vunpack.c.l.s4 1934713408
    %v1724 = vunpack.c.0.s8 %v1723
    %v1725 = vlaneseq
    %v1726 = vshrl.u32 %v1725, 7
    %v1727 = vsub.s32 %v1724, %v1726
    %v1728 = vrot.slane %v1720, %v1727
    %v1730 = vunpack.c.l.s4 1934713408
    %v1731 = vunpack.c.0.s8 %v1730
    %v1732 = vlaneseq
    %v1733 = vshrl.u32 %v1732, 7
    %v1734 = vsub.s32 %v1731, %v1733
    %v1735 = vrot.slane %v1721, %v1734
    %v1736 = vcombine.low %v1703, %v1719
    %v1737 = vcombine.high %v1703, %v1719
    %v1739 = vunpack.c.l.s4 1934713408
    %v1740 = vunpack.c.0.s8 %v1739
    %v1741 = vlaneseq
    %v1742 = vshrl.u32 %v1741, 7
    %v1743 = vsub.s32 %v1740, %v1742
    %v1744 = vrot.slane %v1736, %v1743
    %v1746 = vunpack.c.l.s4 1934713408
    %v1747 = vunpack.c.0.s8 %v1746
    %v1748 = vlaneseq
    %v1749 = vshrl.u32 %v1748, 7
    %v1750 = vsub.s32 %v1747, %v1749
    %v1751 = vrot.slane %v1737, %v1750
    %v1752 = vcombine.high %v1728, 0.0
    %v1753 = vcombine.high %v1735, 0.0
    %v1754 = vcombine.high %v1744, 0.0
    %v1755 = vcombine.high %v1751, 0.0
    %v1756 = vcombine.low %v1667, %v1675
    %v1757 = vcombine.high %v1667, %v1675
    %v1759 = vunpack.c.l.s4 1983009808
    %v1760 = vunpack.c.0.s8 %v1759
    %v1761 = vlaneseq
    %v1762 = vshrl.u32 %v1761, 7
    %v1763 = vsub.s32 %v1760, %v1762
    %v1764 = vrot.slane %v1756, %v1763
    %v1766 = vunpack.c.l.s4 1983009808
    %v1767 = vunpack.c.0.s8 %v1766
    %v1768 = vlaneseq
    %v1769 = vshrl.u32 %v1768, 7
    %v1770 = vsub.s32 %v1767, %v1769
    %v1771 = vrot.slane %v1757, %v1770
    %v1772 = vcombine.low %v1671, %v1679
    %v1773 = vcombine.high %v1671, %v1679
    %v1775 = vunpack.c.l.s4 1983009808
    %v1776 = vunpack.c.0.s8 %v1775
    %v1777 = vlaneseq
    %v1778 = vshrl.u32 %v1777, 7
    %v1779 = vsub.s32 %v1776, %v1778
    %v1780 = vrot.slane %v1772, %v1779
    %v1782 = vunpack.c.l.s4 1983009808
    %v1783 = vunpack.c.0.s8 %v1782
    %v1784 = vlaneseq
    %v1785 = vshrl.u32 %v1784, 7
    %v1786 = vsub.s32 %v1783, %v1785
    %v1787 = vrot.slane %v1773, %v1786
    %v1788 = vcombine.low %v1764, %v1780
    %v1789 = vcombine.high %v1764, %v1780
    %v1791 = vunpack.c.l.s4 1934713408
    %v1792 = vunpack.c.0.s8 %v1791
    %v1793 = vlaneseq
    %v1794 = vshrl.u32 %v1793, 7
    %v1795 = vsub.s32 %v1792, %v1794
    %v1796 = vrot.slane %v1788, %v1795
    %v1798 = vunpack.c.l.s4 1934713408
    %v1799 = vunpack.c.0.s8 %v1798
    %v1800 = vlaneseq
    %v1801 = vshrl.u32 %v1800, 7
    %v1802 = vsub.s32 %v1799, %v1801
    %v1803 = vrot.slane %v1789, %v1802
    %v1804 = vcombine.low %v1771, %v1787
    %v1805 = vcombine.high %v1771, %v1787
    %v1807 = vunpack.c.l.s4 1934713408
    %v1808 = vunpack.c.0.s8 %v1807
    %v1809 = vlaneseq
    %v1810 = vshrl.u32 %v1809, 7
    %v1811 = vsub.s32 %v1808, %v1810
    %v1812 = vrot.slane %v1804, %v1811
    %v1814 = vunpack.c.l.s4 1934713408
    %v1815 = vunpack.c.0.s8 %v1814
    %v1816 = vlaneseq
    %v1817 = vshrl.u32 %v1816, 7
    %v1818 = vsub.s32 %v1815, %v1817
    %v1819 = vrot.slane %v1805, %v1818
    %v1820 = vcombine.high %v1796, 0.0
    %v1821 = vcombine.high %v1803, 0.0
    %v1822 = vcombine.high %v1812, 0.0
    %v1823 = vcombine.high %v1819, 0.0
    %1825 = vrot.lane.b32.xlu0 %v1752, 16
    %v1826 = vpop.permute.xlu0 %1825
    %1829 = vrot.lane.b32.xlu0 %v1735, 32
    %v1830 = vpop.permute.xlu0 %1829
    %1833 = vrot.lane.b32.xlu0 %v1753, 48
    %v1834 = vpop.permute.xlu0 %1833
    %1837 = vrot.lane.b32.xlu0 %v1744, 64
    %v1838 = vpop.permute.xlu0 %1837
    %1841 = vrot.lane.b32.xlu0 %v1754, 80
    %v1842 = vpop.permute.xlu0 %1841
    %1845 = vrot.lane.b32.xlu0 %v1751, 96
    %v1846 = vpop.permute.xlu0 %1845
    %1849 = vrot.lane.b32.xlu0 %v1755, 112
    %v1850 = vpop.permute.xlu0 %1849
    %1853 = vrot.lane.b32.xlu0 %v1820, 16
    %v1854 = vpop.permute.xlu0 %1853
    %1857 = vrot.lane.b32.xlu0 %v1803, 32
    %v1858 = vpop.permute.xlu0 %1857
    %1861 = vrot.lane.b32.xlu0 %v1821, 48
    %v1862 = vpop.permute.xlu0 %1861
    %1865 = vrot.lane.b32.xlu0 %v1812, 64
    %v1866 = vpop.permute.xlu0 %1865
    %1869 = vrot.lane.b32.xlu0 %v1822, 80
    %v1870 = vpop.permute.xlu0 %1869
    %1873 = vrot.lane.b32.xlu0 %v1819, 96
    %v1874 = vpop.permute.xlu0 %1873
    %1877 = vrot.lane.b32.xlu0 %v1823, 112
    %v1878 = vpop.permute.xlu0 %1877
    %v1880 = vsel %vm429, %v1728, %v1826
    %v1881 = vsel %vm431, %v1880, %v1830
    %v1882 = vsel %vm433, %v1881, %v1834
    %v1883 = vsel %vm435, %v1882, %v1838
    %v1884 = vsel %vm437, %v1883, %v1842
    %v1885 = vsel %vm439, %v1884, %v1846
    %v1886 = vsel %vm441, %v1885, %v1850
    %v1887 = vsel %vm429, %v1796, %v1854
    %v1888 = vsel %vm431, %v1887, %v1858
    %v1889 = vsel %vm433, %v1888, %v1862
    %v1890 = vsel %vm435, %v1889, %v1866
    %v1891 = vsel %vm437, %v1890, %v1870
    %v1892 = vsel %vm439, %v1891, %v1874
    %v1893 = vsel %vm441, %v1892, %v1878
    %v1894 = vpack.c.bf16 %v1886, %v1886
    %v1895 = vpack.c.bf16 %v1893, %v1893
    %s1896 = scalar_lea.vmem %s1, 20
    %v1897 = vld [vmem:[%s1896] sm:$0xf]
    %v1899 = vsel %vm695, %v1897, 0
    %v1902 = vsel %vm699, %v1894, 0
    %v1905 = vsel %vm699, %v1895, 0
    %1907 = vmatprep.subr.bf16.mxu0 %v1905
    %1908 = vmatpush1.bf16.msra.mxu0 %v1902
    %1909 = vmatprep.subr.bf16.mxu0 0
    %1910 = vmatpush1.bf16.msra.mxu0 0
    %1911 = vmatprep.subr.bf16.mxu0 0
    %1912 = vmatpush1.bf16.msra.mxu0 0
    %1913 = vmatprep.subr.bf16.mxu0 0
    %1914 = vmatpush1.bf16.msra.mxu0 0
    %1915 = vmatprep.subr.bf16.mxu0 0
    %1916 = vmatpush1.bf16.msra.mxu0 0
    %1917 = vmatprep.subr.bf16.mxu0 0
    %1918 = vmatpush1.bf16.msra.mxu0 0
    %1919 = vmatprep.subr.bf16.mxu0 0
    %1920 = vmatpush1.bf16.msra.mxu0 0
    %1921 = vmatprep.subr.bf16.mxu0 0
    %1922 = vmatpush1.bf16.msra.mxu0 0
    %1923 = vmatprep.subr.bf16.mxu0 0
    %1924 = vmatpush1.bf16.msra.mxu0 0
    %1925 = vmatprep.subr.bf16.mxu0 0
    %1926 = vmatpush1.bf16.msra.mxu0 0
    %1927 = vmatprep.subr.bf16.mxu0 0
    %1928 = vmatpush1.bf16.msra.mxu0 0
    %1929 = vmatprep.subr.bf16.mxu0 0
    %1930 = vmatpush1.bf16.msra.mxu0 0
    %1931 = vmatprep.subr.bf16.mxu0 0
    %1932 = vmatpush1.bf16.msra.mxu0 0
    %1933 = vmatprep.subr.bf16.mxu0 0
    %1934 = vmatpush1.bf16.msra.mxu0 0
    %1935 = vmatprep.subr.bf16.mxu0 0
    %1936 = vmatpush1.bf16.msra.mxu0 0
    %1937 = vmatprep.subr.bf16.mxu0 0
    %1938 = vmatpush1.bf16.msra.mxu0 0
    %1939 = vmatprep.mubr.bf16.mxu0 0
    %1940 = vmatmul.mubr.bf16.gmra.mrb[0].mxu0 %v1899
    %v1941 = vpop.f32.mrb[0].mxu0
    %v1942 = vadd.f32 0.0, %v1941
    %v1943 = vpop.f32.mrb[0].mxu0
    %v1944 = vadd.f32 0.0, %v1943
    %v1945 = vpop.f32.mrb[0].mxu0
    %v1946 = vpop.f32.mrb[0].mxu0
    %1947 = vdwg.mxu0
    %v1948 = vadd.f32 %v1662, %v1942
    %v1949 = vadd.f32 %v1663, %v1944
    %vm1950 = vcmask 1045504
    %v1951 = vrot.slane %v212, 2
    %v1952 = vrot.slane %v213, 2
    %v1953 = vsel %vm1950, %v1951, %v1952
    %v1954 = vrot.slane %v214, 2
    %v1955 = vsel %vm1950, %v1952, %v1954
    %v1956 = vrot.slane %v215, 2
    %v1957 = vrot.slane %v216, 2
    %v1958 = vsel %vm1950, %v1956, %v1957
    %v1959 = vrot.slane %v217, 2
    %v1960 = vsel %vm1950, %v1957, %v1959
    %v1961 = vrot.slane %v218, 2
    %v1962 = vrot.slane %v219, 2
    %v1963 = vsel %vm1950, %v1961, %v1962
    %v1964 = vrot.slane %v220, 2
    %v1965 = vsel %vm1950, %v1962, %v1964
    %v1966 = vrot.slane %v221, 2
    %v1967 = vrot.slane %v222, 2
    %v1968 = vsel %vm1950, %v1966, %v1967
    %v1969 = vrot.slane %v223, 2
    %v1970 = vsel %vm1950, %v1967, %v1969
    %v1979 = vcombine.low %v1953, %v1963
    %v1980 = vcombine.high %v1953, %v1963
    %v1982 = vunpack.c.l.s4 1983009808
    %v1983 = vunpack.c.0.s8 %v1982
    %v1984 = vlaneseq
    %v1985 = vshrl.u32 %v1984, 7
    %v1986 = vsub.s32 %v1983, %v1985
    %v1987 = vrot.slane %v1979, %v1986
    %v1989 = vunpack.c.l.s4 1983009808
    %v1990 = vunpack.c.0.s8 %v1989
    %v1991 = vlaneseq
    %v1992 = vshrl.u32 %v1991, 7
    %v1993 = vsub.s32 %v1990, %v1992
    %v1994 = vrot.slane %v1980, %v1993
    %v1995 = vcombine.low %v1958, %v1968
    %v1996 = vcombine.high %v1958, %v1968
    %v1998 = vunpack.c.l.s4 1983009808
    %v1999 = vunpack.c.0.s8 %v1998
    %v2000 = vlaneseq
    %v2001 = vshrl.u32 %v2000, 7
    %v2002 = vsub.s32 %v1999, %v2001
    %v2003 = vrot.slane %v1995, %v2002
    %v2005 = vunpack.c.l.s4 1983009808
    %v2006 = vunpack.c.0.s8 %v2005
    %v2007 = vlaneseq
    %v2008 = vshrl.u32 %v2007, 7
    %v2009 = vsub.s32 %v2006, %v2008
    %v2010 = vrot.slane %v1996, %v2009
    %v2011 = vcombine.low %v1987, %v2003
    %v2012 = vcombine.high %v1987, %v2003
    %v2014 = vunpack.c.l.s4 1934713408
    %v2015 = vunpack.c.0.s8 %v2014
    %v2016 = vlaneseq
    %v2017 = vshrl.u32 %v2016, 7
    %v2018 = vsub.s32 %v2015, %v2017
    %v2019 = vrot.slane %v2011, %v2018
    %v2021 = vunpack.c.l.s4 1934713408
    %v2022 = vunpack.c.0.s8 %v2021
    %v2023 = vlaneseq
    %v2024 = vshrl.u32 %v2023, 7
    %v2025 = vsub.s32 %v2022, %v2024
    %v2026 = vrot.slane %v2012, %v2025
    %v2027 = vcombine.low %v1994, %v2010
    %v2028 = vcombine.high %v1994, %v2010
    %v2030 = vunpack.c.l.s4 1934713408
    %v2031 = vunpack.c.0.s8 %v2030
    %v2032 = vlaneseq
    %v2033 = vshrl.u32 %v2032, 7
    %v2034 = vsub.s32 %v2031, %v2033
    %v2035 = vrot.slane %v2027, %v2034
    %v2037 = vunpack.c.l.s4 1934713408
    %v2038 = vunpack.c.0.s8 %v2037
    %v2039 = vlaneseq
    %v2040 = vshrl.u32 %v2039, 7
    %v2041 = vsub.s32 %v2038, %v2040
    %v2042 = vrot.slane %v2028, %v2041
    %v2043 = vcombine.high %v2019, 0.0
    %v2044 = vcombine.high %v2026, 0.0
    %v2045 = vcombine.high %v2035, 0.0
    %v2046 = vcombine.high %v2042, 0.0
    %v2047 = vcombine.low %v1955, %v1965
    %v2048 = vcombine.high %v1955, %v1965
    %v2050 = vunpack.c.l.s4 1983009808
    %v2051 = vunpack.c.0.s8 %v2050
    %v2052 = vlaneseq
    %v2053 = vshrl.u32 %v2052, 7
    %v2054 = vsub.s32 %v2051, %v2053
    %v2055 = vrot.slane %v2047, %v2054
    %v2057 = vunpack.c.l.s4 1983009808
    %v2058 = vunpack.c.0.s8 %v2057
    %v2059 = vlaneseq
    %v2060 = vshrl.u32 %v2059, 7
    %v2061 = vsub.s32 %v2058, %v2060
    %v2062 = vrot.slane %v2048, %v2061
    %v2063 = vcombine.low %v1960, %v1970
    %v2064 = vcombine.high %v1960, %v1970
    %v2066 = vunpack.c.l.s4 1983009808
    %v2067 = vunpack.c.0.s8 %v2066
    %v2068 = vlaneseq
    %v2069 = vshrl.u32 %v2068, 7
    %v2070 = vsub.s32 %v2067, %v2069
    %v2071 = vrot.slane %v2063, %v2070
    %v2073 = vunpack.c.l.s4 1983009808
    %v2074 = vunpack.c.0.s8 %v2073
    %v2075 = vlaneseq
    %v2076 = vshrl.u32 %v2075, 7
    %v2077 = vsub.s32 %v2074, %v2076
    %v2078 = vrot.slane %v2064, %v2077
    %v2079 = vcombine.low %v2055, %v2071
    %v2080 = vcombine.high %v2055, %v2071
    %v2082 = vunpack.c.l.s4 1934713408
    %v2083 = vunpack.c.0.s8 %v2082
    %v2084 = vlaneseq
    %v2085 = vshrl.u32 %v2084, 7
    %v2086 = vsub.s32 %v2083, %v2085
    %v2087 = vrot.slane %v2079, %v2086
    %v2089 = vunpack.c.l.s4 1934713408
    %v2090 = vunpack.c.0.s8 %v2089
    %v2091 = vlaneseq
    %v2092 = vshrl.u32 %v2091, 7
    %v2093 = vsub.s32 %v2090, %v2092
    %v2094 = vrot.slane %v2080, %v2093
    %v2095 = vcombine.low %v2062, %v2078
    %v2096 = vcombine.high %v2062, %v2078
    %v2098 = vunpack.c.l.s4 1934713408
    %v2099 = vunpack.c.0.s8 %v2098
    %v2100 = vlaneseq
    %v2101 = vshrl.u32 %v2100, 7
    %v2102 = vsub.s32 %v2099, %v2101
    %v2103 = vrot.slane %v2095, %v2102
    %v2105 = vunpack.c.l.s4 1934713408
    %v2106 = vunpack.c.0.s8 %v2105
    %v2107 = vlaneseq
    %v2108 = vshrl.u32 %v2107, 7
    %v2109 = vsub.s32 %v2106, %v2108
    %v2110 = vrot.slane %v2096, %v2109
    %v2111 = vcombine.high %v2087, 0.0
    %v2112 = vcombine.high %v2094, 0.0
    %v2113 = vcombine.high %v2103, 0.0
    %v2114 = vcombine.high %v2110, 0.0
    %2116 = vrot.lane.b32.xlu0 %v2043, 16
    %v2117 = vpop.permute.xlu0 %2116
    %2120 = vrot.lane.b32.xlu0 %v2026, 32
    %v2121 = vpop.permute.xlu0 %2120
    %2124 = vrot.lane.b32.xlu0 %v2044, 48
    %v2125 = vpop.permute.xlu0 %2124
    %2128 = vrot.lane.b32.xlu0 %v2035, 64
    %v2129 = vpop.permute.xlu0 %2128
    %2132 = vrot.lane.b32.xlu0 %v2045, 80
    %v2133 = vpop.permute.xlu0 %2132
    %2136 = vrot.lane.b32.xlu0 %v2042, 96
    %v2137 = vpop.permute.xlu0 %2136
    %2140 = vrot.lane.b32.xlu0 %v2046, 112
    %v2141 = vpop.permute.xlu0 %2140
    %2144 = vrot.lane.b32.xlu0 %v2111, 16
    %v2145 = vpop.permute.xlu0 %2144
    %2148 = vrot.lane.b32.xlu0 %v2094, 32
    %v2149 = vpop.permute.xlu0 %2148
    %2152 = vrot.lane.b32.xlu0 %v2112, 48
    %v2153 = vpop.permute.xlu0 %2152
    %2156 = vrot.lane.b32.xlu0 %v2103, 64
    %v2157 = vpop.permute.xlu0 %2156
    %2160 = vrot.lane.b32.xlu0 %v2113, 80
    %v2161 = vpop.permute.xlu0 %2160
    %2164 = vrot.lane.b32.xlu0 %v2110, 96
    %v2165 = vpop.permute.xlu0 %2164
    %2168 = vrot.lane.b32.xlu0 %v2114, 112
    %v2169 = vpop.permute.xlu0 %2168
    %v2171 = vsel %vm429, %v2019, %v2117
    %v2172 = vsel %vm431, %v2171, %v2121
    %v2173 = vsel %vm433, %v2172, %v2125
    %v2174 = vsel %vm435, %v2173, %v2129
    %v2175 = vsel %vm437, %v2174, %v2133
    %v2176 = vsel %vm439, %v2175, %v2137
    %v2177 = vsel %vm441, %v2176, %v2141
    %v2178 = vsel %vm429, %v2087, %v2145
    %v2179 = vsel %vm431, %v2178, %v2149
    %v2180 = vsel %vm433, %v2179, %v2153
    %v2181 = vsel %vm435, %v2180, %v2157
    %v2182 = vsel %vm437, %v2181, %v2161
    %v2183 = vsel %vm439, %v2182, %v2165
    %v2184 = vsel %vm441, %v2183, %v2169
    %v2185 = vpack.c.bf16 %v2177, %v2177
    %v2186 = vpack.c.bf16 %v2184, %v2184
    %s2187 = scalar_lea.vmem %s1, 24
    %v2188 = vld [vmem:[%s2187] sm:$0xf]
    %v2190 = vsel %vm695, %v2188, 0
    %v2193 = vsel %vm699, %v2185, 0
    %v2196 = vsel %vm699, %v2186, 0
    %2198 = vmatprep.subr.bf16.mxu0 %v2196
    %2199 = vmatpush1.bf16.msra.mxu0 %v2193
    %2200 = vmatprep.subr.bf16.mxu0 0
    %2201 = vmatpush1.bf16.msra.mxu0 0
    %2202 = vmatprep.subr.bf16.mxu0 0
    %2203 = vmatpush1.bf16.msra.mxu0 0
    %2204 = vmatprep.subr.bf16.mxu0 0
    %2205 = vmatpush1.bf16.msra.mxu0 0
    %2206 = vmatprep.subr.bf16.mxu0 0
    %2207 = vmatpush1.bf16.msra.mxu0 0
    %2208 = vmatprep.subr.bf16.mxu0 0
    %2209 = vmatpush1.bf16.msra.mxu0 0
    %2210 = vmatprep.subr.bf16.mxu0 0
    %2211 = vmatpush1.bf16.msra.mxu0 0
    %2212 = vmatprep.subr.bf16.mxu0 0
    %2213 = vmatpush1.bf16.msra.mxu0 0
    %2214 = vmatprep.subr.bf16.mxu0 0
    %2215 = vmatpush1.bf16.msra.mxu0 0
    %2216 = vmatprep.subr.bf16.mxu0 0
    %2217 = vmatpush1.bf16.msra.mxu0 0
    %2218 = vmatprep.subr.bf16.mxu0 0
    %2219 = vmatpush1.bf16.msra.mxu0 0
    %2220 = vmatprep.subr.bf16.mxu0 0
    %2221 = vmatpush1.bf16.msra.mxu0 0
    %2222 = vmatprep.subr.bf16.mxu0 0
    %2223 = vmatpush1.bf16.msra.mxu0 0
    %2224 = vmatprep.subr.bf16.mxu0 0
    %2225 = vmatpush1.bf16.msra.mxu0 0
    %2226 = vmatprep.subr.bf16.mxu0 0
    %2227 = vmatpush1.bf16.msra.mxu0 0
    %2228 = vmatprep.subr.bf16.mxu0 0
    %2229 = vmatpush1.bf16.msra.mxu0 0
    %2230 = vmatprep.mubr.bf16.mxu0 0
    %2231 = vmatmul.mubr.bf16.gmra.mrb[0].mxu0 %v2190
    %v2232 = vpop.f32.mrb[0].mxu0
    %v2233 = vadd.f32 0.0, %v2232
    %v2234 = vpop.f32.mrb[0].mxu0
    %v2235 = vadd.f32 0.0, %v2234
    %v2236 = vpop.f32.mrb[0].mxu0
    %v2237 = vpop.f32.mrb[0].mxu0
    %2238 = vdwg.mxu0
    %v2239 = vadd.f32 %v1948, %v2233
    %v2240 = vadd.f32 %v1949, %v2235
    %2241 = vrot.lane.b32.xlu0 %v1953, 127
    %v2242 = vpop.permute.xlu0 %2241
    %2243 = vrot.lane.b32.xlu0 %v1955, 127
    %v2244 = vpop.permute.xlu0 %2243
    %2245 = vrot.lane.b32.xlu0 %v1958, 127
    %v2246 = vpop.permute.xlu0 %2245
    %2247 = vrot.lane.b32.xlu0 %v1960, 127
    %v2248 = vpop.permute.xlu0 %2247
    %2249 = vrot.lane.b32.xlu0 %v1963, 127
    %v2250 = vpop.permute.xlu0 %2249
    %2251 = vrot.lane.b32.xlu0 %v1965, 127
    %v2252 = vpop.permute.xlu0 %2251
    %2253 = vrot.lane.b32.xlu0 %v1968, 127
    %v2254 = vpop.permute.xlu0 %2253
    %2255 = vrot.lane.b32.xlu0 %v1970, 127
    %v2256 = vpop.permute.xlu0 %2255
    %v2265 = vcombine.low %v2242, %v2250
    %v2266 = vcombine.high %v2242, %v2250
    %v2268 = vunpack.c.l.s4 1983009808
    %v2269 = vunpack.c.0.s8 %v2268
    %v2270 = vlaneseq
    %v2271 = vshrl.u32 %v2270, 7
    %v2272 = vsub.s32 %v2269, %v2271
    %v2273 = vrot.slane %v2265, %v2272
    %v2275 = vunpack.c.l.s4 1983009808
    %v2276 = vunpack.c.0.s8 %v2275
    %v2277 = vlaneseq
    %v2278 = vshrl.u32 %v2277, 7
    %v2279 = vsub.s32 %v2276, %v2278
    %v2280 = vrot.slane %v2266, %v2279
    %v2281 = vcombine.low %v2246, %v2254
    %v2282 = vcombine.high %v2246, %v2254
    %v2284 = vunpack.c.l.s4 1983009808
    %v2285 = vunpack.c.0.s8 %v2284
    %v2286 = vlaneseq
    %v2287 = vshrl.u32 %v2286, 7
    %v2288 = vsub.s32 %v2285, %v2287
    %v2289 = vrot.slane %v2281, %v2288
    %v2291 = vunpack.c.l.s4 1983009808
    %v2292 = vunpack.c.0.s8 %v2291
    %v2293 = vlaneseq
    %v2294 = vshrl.u32 %v2293, 7
    %v2295 = vsub.s32 %v2292, %v2294
    %v2296 = vrot.slane %v2282, %v2295
    %v2297 = vcombine.low %v2273, %v2289
    %v2298 = vcombine.high %v2273, %v2289
    %v2300 = vunpack.c.l.s4 1934713408
    %v2301 = vunpack.c.0.s8 %v2300
    %v2302 = vlaneseq
    %v2303 = vshrl.u32 %v2302, 7
    %v2304 = vsub.s32 %v2301, %v2303
    %v2305 = vrot.slane %v2297, %v2304
    %v2307 = vunpack.c.l.s4 1934713408
    %v2308 = vunpack.c.0.s8 %v2307
    %v2309 = vlaneseq
    %v2310 = vshrl.u32 %v2309, 7
    %v2311 = vsub.s32 %v2308, %v2310
    %v2312 = vrot.slane %v2298, %v2311
    %v2313 = vcombine.low %v2280, %v2296
    %v2314 = vcombine.high %v2280, %v2296
    %v2316 = vunpack.c.l.s4 1934713408
    %v2317 = vunpack.c.0.s8 %v2316
    %v2318 = vlaneseq
    %v2319 = vshrl.u32 %v2318, 7
    %v2320 = vsub.s32 %v2317, %v2319
    %v2321 = vrot.slane %v2313, %v2320
    %v2323 = vunpack.c.l.s4 1934713408
    %v2324 = vunpack.c.0.s8 %v2323
    %v2325 = vlaneseq
    %v2326 = vshrl.u32 %v2325, 7
    %v2327 = vsub.s32 %v2324, %v2326
    %v2328 = vrot.slane %v2314, %v2327
    %v2329 = vcombine.high %v2305, 0.0
    %v2330 = vcombine.high %v2312, 0.0
    %v2331 = vcombine.high %v2321, 0.0
    %v2332 = vcombine.high %v2328, 0.0
    %v2333 = vcombine.low %v2244, %v2252
    %v2334 = vcombine.high %v2244, %v2252
    %v2336 = vunpack.c.l.s4 1983009808
    %v2337 = vunpack.c.0.s8 %v2336
    %v2338 = vlaneseq
    %v2339 = vshrl.u32 %v2338, 7
    %v2340 = vsub.s32 %v2337, %v2339
    %v2341 = vrot.slane %v2333, %v2340
    %v2343 = vunpack.c.l.s4 1983009808
    %v2344 = vunpack.c.0.s8 %v2343
    %v2345 = vlaneseq
    %v2346 = vshrl.u32 %v2345, 7
    %v2347 = vsub.s32 %v2344, %v2346
    %v2348 = vrot.slane %v2334, %v2347
    %v2349 = vcombine.low %v2248, %v2256
    %v2350 = vcombine.high %v2248, %v2256
    %v2352 = vunpack.c.l.s4 1983009808
    %v2353 = vunpack.c.0.s8 %v2352
    %v2354 = vlaneseq
    %v2355 = vshrl.u32 %v2354, 7
    %v2356 = vsub.s32 %v2353, %v2355
    %v2357 = vrot.slane %v2349, %v2356
    %v2359 = vunpack.c.l.s4 1983009808
    %v2360 = vunpack.c.0.s8 %v2359
    %v2361 = vlaneseq
    %v2362 = vshrl.u32 %v2361, 7
    %v2363 = vsub.s32 %v2360, %v2362
    %v2364 = vrot.slane %v2350, %v2363
    %v2365 = vcombine.low %v2341, %v2357
    %v2366 = vcombine.high %v2341, %v2357
    %v2368 = vunpack.c.l.s4 1934713408
    %v2369 = vunpack.c.0.s8 %v2368
    %v2370 = vlaneseq
    %v2371 = vshrl.u32 %v2370, 7
    %v2372 = vsub.s32 %v2369, %v2371
    %v2373 = vrot.slane %v2365, %v2372
    %v2375 = vunpack.c.l.s4 1934713408
    %v2376 = vunpack.c.0.s8 %v2375
    %v2377 = vlaneseq
    %v2378 = vshrl.u32 %v2377, 7
    %v2379 = vsub.s32 %v2376, %v2378
    %v2380 = vrot.slane %v2366, %v2379
    %v2381 = vcombine.low %v2348, %v2364
    %v2382 = vcombine.high %v2348, %v2364
    %v2384 = vunpack.c.l.s4 1934713408
    %v2385 = vunpack.c.0.s8 %v2384
    %v2386 = vlaneseq
    %v2387 = vshrl.u32 %v2386, 7
    %v2388 = vsub.s32 %v2385, %v2387
    %v2389 = vrot.slane %v2381, %v2388
    %v2391 = vunpack.c.l.s4 1934713408
    %v2392 = vunpack.c.0.s8 %v2391
    %v2393 = vlaneseq
    %v2394 = vshrl.u32 %v2393, 7
    %v2395 = vsub.s32 %v2392, %v2394
    %v2396 = vrot.slane %v2382, %v2395
    %v2397 = vcombine.high %v2373, 0.0
    %v2398 = vcombine.high %v2380, 0.0
    %v2399 = vcombine.high %v2389, 0.0
    %v2400 = vcombine.high %v2396, 0.0
    %2402 = vrot.lane.b32.xlu0 %v2329, 16
    %v2403 = vpop.permute.xlu0 %2402
    %2406 = vrot.lane.b32.xlu0 %v2312, 32
    %v2407 = vpop.permute.xlu0 %2406
    %2410 = vrot.lane.b32.xlu0 %v2330, 48
    %v2411 = vpop.permute.xlu0 %2410
    %2414 = vrot.lane.b32.xlu0 %v2321, 64
    %v2415 = vpop.permute.xlu0 %2414
    %2418 = vrot.lane.b32.xlu0 %v2331, 80
    %v2419 = vpop.permute.xlu0 %2418
    %2422 = vrot.lane.b32.xlu0 %v2328, 96
    %v2423 = vpop.permute.xlu0 %2422
    %2426 = vrot.lane.b32.xlu0 %v2332, 112
    %v2427 = vpop.permute.xlu0 %2426
    %2430 = vrot.lane.b32.xlu0 %v2397, 16
    %v2431 = vpop.permute.xlu0 %2430
    %2434 = vrot.lane.b32.xlu0 %v2380, 32
    %v2435 = vpop.permute.xlu0 %2434
    %2438 = vrot.lane.b32.xlu0 %v2398, 48
    %v2439 = vpop.permute.xlu0 %2438
    %2442 = vrot.lane.b32.xlu0 %v2389, 64
    %v2443 = vpop.permute.xlu0 %2442
    %2446 = vrot.lane.b32.xlu0 %v2399, 80
    %v2447 = vpop.permute.xlu0 %2446
    %2450 = vrot.lane.b32.xlu0 %v2396, 96
    %v2451 = vpop.permute.xlu0 %2450
    %2454 = vrot.lane.b32.xlu0 %v2400, 112
    %v2455 = vpop.permute.xlu0 %2454
    %v2457 = vsel %vm429, %v2305, %v2403
    %v2458 = vsel %vm431, %v2457, %v2407
    %v2459 = vsel %vm433, %v2458, %v2411
    %v2460 = vsel %vm435, %v2459, %v2415
    %v2461 = vsel %vm437, %v2460, %v2419
    %v2462 = vsel %vm439, %v2461, %v2423
    %v2463 = vsel %vm441, %v2462, %v2427
    %v2464 = vsel %vm429, %v2373, %v2431
    %v2465 = vsel %vm431, %v2464, %v2435
    %v2466 = vsel %vm433, %v2465, %v2439
    %v2467 = vsel %vm435, %v2466, %v2443
    %v2468 = vsel %vm437, %v2467, %v2447
    %v2469 = vsel %vm439, %v2468, %v2451
    %v2470 = vsel %vm441, %v2469, %v2455
    %v2471 = vpack.c.bf16 %v2463, %v2463
    %v2472 = vpack.c.bf16 %v2470, %v2470
    %s2473 = scalar_lea.vmem %s1, 28
    %v2474 = vld [vmem:[%s2473] sm:$0xf]
    %v2476 = vsel %vm695, %v2474, 0
    %v2479 = vsel %vm699, %v2471, 0
    %v2482 = vsel %vm699, %v2472, 0
    %2484 = vmatprep.subr.bf16.mxu0 %v2482
    %2485 = vmatpush1.bf16.msra.mxu0 %v2479
    %2486 = vmatprep.subr.bf16.mxu0 0
    %2487 = vmatpush1.bf16.msra.mxu0 0
    %2488 = vmatprep.subr.bf16.mxu0 0
    %2489 = vmatpush1.bf16.msra.mxu0 0
    %2490 = vmatprep.subr.bf16.mxu0 0
    %2491 = vmatpush1.bf16.msra.mxu0 0
    %2492 = vmatprep.subr.bf16.mxu0 0
    %2493 = vmatpush1.bf16.msra.mxu0 0
    %2494 = vmatprep.subr.bf16.mxu0 0
    %2495 = vmatpush1.bf16.msra.mxu0 0
    %2496 = vmatprep.subr.bf16.mxu0 0
    %2497 = vmatpush1.bf16.msra.mxu0 0
    %2498 = vmatprep.subr.bf16.mxu0 0
    %2499 = vmatpush1.bf16.msra.mxu0 0
    %2500 = vmatprep.subr.bf16.mxu0 0
    %2501 = vmatpush1.bf16.msra.mxu0 0
    %2502 = vmatprep.subr.bf16.mxu0 0
    %2503 = vmatpush1.bf16.msra.mxu0 0
    %2504 = vmatprep.subr.bf16.mxu0 0
    %2505 = vmatpush1.bf16.msra.mxu0 0
    %2506 = vmatprep.subr.bf16.mxu0 0
    %2507 = vmatpush1.bf16.msra.mxu0 0
    %2508 = vmatprep.subr.bf16.mxu0 0
    %2509 = vmatpush1.bf16.msra.mxu0 0
    %2510 = vmatprep.subr.bf16.mxu0 0
    %2511 = vmatpush1.bf16.msra.mxu0 0
    %2512 = vmatprep.subr.bf16.mxu0 0
    %2513 = vmatpush1.bf16.msra.mxu0 0
    %2514 = vmatprep.subr.bf16.mxu0 0
    %2515 = vmatpush1.bf16.msra.mxu0 0
    %2516 = vmatprep.mubr.bf16.mxu0 0
    %2517 = vmatmul.mubr.bf16.gmra.mrb[0].mxu0 %v2476
    %v2518 = vpop.f32.mrb[0].mxu0
    %v2519 = vadd.f32 0.0, %v2518
    %v2520 = vpop.f32.mrb[0].mxu0
    %v2521 = vadd.f32 0.0, %v2520
    %v2522 = vpop.f32.mrb[0].mxu0
    %v2523 = vpop.f32.mrb[0].mxu0
    %2524 = vdwg.mxu0
    %v2525 = vadd.f32 %v2239, %v2519
    %v2526 = vadd.f32 %v2240, %v2521
    %2527 = vrot.lane.b32.xlu0 %v1953, 126
    %v2528 = vpop.permute.xlu0 %2527
    %2529 = vrot.lane.b32.xlu0 %v1955, 126
    %v2530 = vpop.permute.xlu0 %2529
    %2531 = vrot.lane.b32.xlu0 %v1958, 126
    %v2532 = vpop.permute.xlu0 %2531
    %2533 = vrot.lane.b32.xlu0 %v1960, 126
    %v2534 = vpop.permute.xlu0 %2533
    %2535 = vrot.lane.b32.xlu0 %v1963, 126
    %v2536 = vpop.permute.xlu0 %2535
    %2537 = vrot.lane.b32.xlu0 %v1965, 126
    %v2538 = vpop.permute.xlu0 %2537
    %2539 = vrot.lane.b32.xlu0 %v1968, 126
    %v2540 = vpop.permute.xlu0 %2539
    %2541 = vrot.lane.b32.xlu0 %v1970, 126
    %v2542 = vpop.permute.xlu0 %2541
    %v2551 = vcombine.low %v2528, %v2536
    %v2552 = vcombine.high %v2528, %v2536
    %v2554 = vunpack.c.l.s4 1983009808
    %v2555 = vunpack.c.0.s8 %v2554
    %v2556 = vlaneseq
    %v2557 = vshrl.u32 %v2556, 7
    %v2558 = vsub.s32 %v2555, %v2557
    %v2559 = vrot.slane %v2551, %v2558
    %v2561 = vunpack.c.l.s4 1983009808
    %v2562 = vunpack.c.0.s8 %v2561
    %v2563 = vlaneseq
    %v2564 = vshrl.u32 %v2563, 7
    %v2565 = vsub.s32 %v2562, %v2564
    %v2566 = vrot.slane %v2552, %v2565
    %v2567 = vcombine.low %v2532, %v2540
    %v2568 = vcombine.high %v2532, %v2540
    %v2570 = vunpack.c.l.s4 1983009808
    %v2571 = vunpack.c.0.s8 %v2570
    %v2572 = vlaneseq
    %v2573 = vshrl.u32 %v2572, 7
    %v2574 = vsub.s32 %v2571, %v2573
    %v2575 = vrot.slane %v2567, %v2574
    %v2577 = vunpack.c.l.s4 1983009808
    %v2578 = vunpack.c.0.s8 %v2577
    %v2579 = vlaneseq
    %v2580 = vshrl.u32 %v2579, 7
    %v2581 = vsub.s32 %v2578, %v2580
    %v2582 = vrot.slane %v2568, %v2581
    %v2583 = vcombine.low %v2559, %v2575
    %v2584 = vcombine.high %v2559, %v2575
    %v2586 = vunpack.c.l.s4 1934713408
    %v2587 = vunpack.c.0.s8 %v2586
    %v2588 = vlaneseq
    %v2589 = vshrl.u32 %v2588, 7
    %v2590 = vsub.s32 %v2587, %v2589
    %v2591 = vrot.slane %v2583, %v2590
    %v2593 = vunpack.c.l.s4 1934713408
    %v2594 = vunpack.c.0.s8 %v2593
    %v2595 = vlaneseq
    %v2596 = vshrl.u32 %v2595, 7
    %v2597 = vsub.s32 %v2594, %v2596
    %v2598 = vrot.slane %v2584, %v2597
    %v2599 = vcombine.low %v2566, %v2582
    %v2600 = vcombine.high %v2566, %v2582
    %v2602 = vunpack.c.l.s4 1934713408
    %v2603 = vunpack.c.0.s8 %v2602
    %v2604 = vlaneseq
    %v2605 = vshrl.u32 %v2604, 7
    %v2606 = vsub.s32 %v2603, %v2605
    %v2607 = vrot.slane %v2599, %v2606
    %v2609 = vunpack.c.l.s4 1934713408
    %v2610 = vunpack.c.0.s8 %v2609
    %v2611 = vlaneseq
    %v2612 = vshrl.u32 %v2611, 7
    %v2613 = vsub.s32 %v2610, %v2612
    %v2614 = vrot.slane %v2600, %v2613
    %v2615 = vcombine.high %v2591, 0.0
    %v2616 = vcombine.high %v2598, 0.0
    %v2617 = vcombine.high %v2607, 0.0
    %v2618 = vcombine.high %v2614, 0.0
    %v2619 = vcombine.low %v2530, %v2538
    %v2620 = vcombine.high %v2530, %v2538
    %v2622 = vunpack.c.l.s4 1983009808
    %v2623 = vunpack.c.0.s8 %v2622
    %v2624 = vlaneseq
    %v2625 = vshrl.u32 %v2624, 7
    %v2626 = vsub.s32 %v2623, %v2625
    %v2627 = vrot.slane %v2619, %v2626
    %v2629 = vunpack.c.l.s4 1983009808
    %v2630 = vunpack.c.0.s8 %v2629
    %v2631 = vlaneseq
    %v2632 = vshrl.u32 %v2631, 7
    %v2633 = vsub.s32 %v2630, %v2632
    %v2634 = vrot.slane %v2620, %v2633
    %v2635 = vcombine.low %v2534, %v2542
    %v2636 = vcombine.high %v2534, %v2542
    %v2638 = vunpack.c.l.s4 1983009808
    %v2639 = vunpack.c.0.s8 %v2638
    %v2640 = vlaneseq
    %v2641 = vshrl.u32 %v2640, 7
    %v2642 = vsub.s32 %v2639, %v2641
    %v2643 = vrot.slane %v2635, %v2642
    %v2645 = vunpack.c.l.s4 1983009808
    %v2646 = vunpack.c.0.s8 %v2645
    %v2647 = vlaneseq
    %v2648 = vshrl.u32 %v2647, 7
    %v2649 = vsub.s32 %v2646, %v2648
    %v2650 = vrot.slane %v2636, %v2649
    %v2651 = vcombine.low %v2627, %v2643
    %v2652 = vcombine.high %v2627, %v2643
    %v2654 = vunpack.c.l.s4 1934713408
    %v2655 = vunpack.c.0.s8 %v2654
    %v2656 = vlaneseq
    %v2657 = vshrl.u32 %v2656, 7
    %v2658 = vsub.s32 %v2655, %v2657
    %v2659 = vrot.slane %v2651, %v2658
    %v2661 = vunpack.c.l.s4 1934713408
    %v2662 = vunpack.c.0.s8 %v2661
    %v2663 = vlaneseq
    %v2664 = vshrl.u32 %v2663, 7
    %v2665 = vsub.s32 %v2662, %v2664
    %v2666 = vrot.slane %v2652, %v2665
    %v2667 = vcombine.low %v2634, %v2650
    %v2668 = vcombine.high %v2634, %v2650
    %v2670 = vunpack.c.l.s4 1934713408
    %v2671 = vunpack.c.0.s8 %v2670
    %v2672 = vlaneseq
    %v2673 = vshrl.u32 %v2672, 7
    %v2674 = vsub.s32 %v2671, %v2673
    %v2675 = vrot.slane %v2667, %v2674
    %v2677 = vunpack.c.l.s4 1934713408
    %v2678 = vunpack.c.0.s8 %v2677
    %v2679 = vlaneseq
    %v2680 = vshrl.u32 %v2679, 7
    %v2681 = vsub.s32 %v2678, %v2680
    %v2682 = vrot.slane %v2668, %v2681
    %v2683 = vcombine.high %v2659, 0.0
    %v2684 = vcombine.high %v2666, 0.0
    %v2685 = vcombine.high %v2675, 0.0
    %v2686 = vcombine.high %v2682, 0.0
    %2688 = vrot.lane.b32.xlu0 %v2615, 16
    %v2689 = vpop.permute.xlu0 %2688
    %2692 = vrot.lane.b32.xlu0 %v2598, 32
    %v2693 = vpop.permute.xlu0 %2692
    %2696 = vrot.lane.b32.xlu0 %v2616, 48
    %v2697 = vpop.permute.xlu0 %2696
    %2700 = vrot.lane.b32.xlu0 %v2607, 64
    %v2701 = vpop.permute.xlu0 %2700
    %2704 = vrot.lane.b32.xlu0 %v2617, 80
    %v2705 = vpop.permute.xlu0 %2704
    %2708 = vrot.lane.b32.xlu0 %v2614, 96
    %v2709 = vpop.permute.xlu0 %2708
    %2712 = vrot.lane.b32.xlu0 %v2618, 112
    %v2713 = vpop.permute.xlu0 %2712
    %2716 = vrot.lane.b32.xlu0 %v2683, 16
    %v2717 = vpop.permute.xlu0 %2716
    %2720 = vrot.lane.b32.xlu0 %v2666, 32
    %v2721 = vpop.permute.xlu0 %2720
    %2724 = vrot.lane.b32.xlu0 %v2684, 48
    %v2725 = vpop.permute.xlu0 %2724
    %2728 = vrot.lane.b32.xlu0 %v2675, 64
    %v2729 = vpop.permute.xlu0 %2728
    %2732 = vrot.lane.b32.xlu0 %v2685, 80
    %v2733 = vpop.permute.xlu0 %2732
    %2736 = vrot.lane.b32.xlu0 %v2682, 96
    %v2737 = vpop.permute.xlu0 %2736
    %2740 = vrot.lane.b32.xlu0 %v2686, 112
    %v2741 = vpop.permute.xlu0 %2740
    %v2743 = vsel %vm429, %v2591, %v2689
    %v2744 = vsel %vm431, %v2743, %v2693
    %v2745 = vsel %vm433, %v2744, %v2697
    %v2746 = vsel %vm435, %v2745, %v2701
    %v2747 = vsel %vm437, %v2746, %v2705
    %v2748 = vsel %vm439, %v2747, %v2709
    %v2749 = vsel %vm441, %v2748, %v2713
    %v2750 = vsel %vm429, %v2659, %v2717
    %v2751 = vsel %vm431, %v2750, %v2721
    %v2752 = vsel %vm433, %v2751, %v2725
    %v2753 = vsel %vm435, %v2752, %v2729
    %v2754 = vsel %vm437, %v2753, %v2733
    %v2755 = vsel %vm439, %v2754, %v2737
    %v2756 = vsel %vm441, %v2755, %v2741
    %v2757 = vpack.c.bf16 %v2749, %v2749
    %v2758 = vpack.c.bf16 %v2756, %v2756
    %s2759 = scalar_lea.vmem %s1, 32
    %v2760 = vld [vmem:[%s2759] sm:$0xf]
    %v2762 = vsel %vm695, %v2760, 0
    %v2765 = vsel %vm699, %v2757, 0
    %v2768 = vsel %vm699, %v2758, 0
    %2770 = vmatprep.subr.bf16.mxu0 %v2768
    %2771 = vmatpush1.bf16.msra.mxu0 %v2765
    %2772 = vmatprep.subr.bf16.mxu0 0
    %2773 = vmatpush1.bf16.msra.mxu0 0
    %2774 = vmatprep.subr.bf16.mxu0 0
    %2775 = vmatpush1.bf16.msra.mxu0 0
    %2776 = vmatprep.subr.bf16.mxu0 0
    %2777 = vmatpush1.bf16.msra.mxu0 0
    %2778 = vmatprep.subr.bf16.mxu0 0
    %2779 = vmatpush1.bf16.msra.mxu0 0
    %2780 = vmatprep.subr.bf16.mxu0 0
    %2781 = vmatpush1.bf16.msra.mxu0 0
    %2782 = vmatprep.subr.bf16.mxu0 0
    %2783 = vmatpush1.bf16.msra.mxu0 0
    %2784 = vmatprep.subr.bf16.mxu0 0
    %2785 = vmatpush1.bf16.msra.mxu0 0
    %2786 = vmatprep.subr.bf16.mxu0 0
    %2787 = vmatpush1.bf16.msra.mxu0 0
    %2788 = vmatprep.subr.bf16.mxu0 0
    %2789 = vmatpush1.bf16.msra.mxu0 0
    %2790 = vmatprep.subr.bf16.mxu0 0
    %2791 = vmatpush1.bf16.msra.mxu0 0
    %2792 = vmatprep.subr.bf16.mxu0 0
    %2793 = vmatpush1.bf16.msra.mxu0 0
    %2794 = vmatprep.subr.bf16.mxu0 0
    %2795 = vmatpush1.bf16.msra.mxu0 0
    %2796 = vmatprep.subr.bf16.mxu0 0
    %2797 = vmatpush1.bf16.msra.mxu0 0
    %2798 = vmatprep.subr.bf16.mxu0 0
    %2799 = vmatpush1.bf16.msra.mxu0 0
    %2800 = vmatprep.subr.bf16.mxu0 0
    %2801 = vmatpush1.bf16.msra.mxu0 0
    %2802 = vmatprep.mubr.bf16.mxu0 0
    %2803 = vmatmul.mubr.bf16.gmra.mrb[0].mxu0 %v2762
    %v2804 = vpop.f32.mrb[0].mxu0
    %v2805 = vadd.f32 0.0, %v2804
    %v2806 = vpop.f32.mrb[0].mxu0
    %v2807 = vadd.f32 0.0, %v2806
    %v2808 = vpop.f32.mrb[0].mxu0
    %v2809 = vpop.f32.mrb[0].mxu0
    %2810 = vdwg.mxu0
    %v2811 = vadd.f32 %v2525, %v2805
    %v2812 = vadd.f32 %v2526, %v2807
    %2814 = vset.pattern.permute.xlu0 0
    %2815 = vperm.xlu0 %2814, %v236
    %v2816 = vpop.permute.xlu0 %2815
    %v2818 = vadd.f32 %v2811, %v2816
    %v2819 = vadd.f32 %v2812, %v2816
    %2820 = vst [vmem:[#allocation6] sm:$0xff] %v2818
    %2821 = vst [vmem:[#allocation6 + $0x8] sm:$0xff] %v2819
    %v2822 = vcombine.low %v224, %v230
    %v2823 = vcombine.high %v224, %v230
    %v2825 = vunpack.c.l.s4 1983009808
    %v2826 = vunpack.c.0.s8 %v2825
    %v2827 = vlaneseq
    %v2828 = vshrl.u32 %v2827, 7
    %v2829 = vsub.s32 %v2826, %v2828
    %v2830 = vrot.slane %v2822, %v2829
    %v2832 = vunpack.c.l.s4 1983009808
    %v2833 = vunpack.c.0.s8 %v2832
    %v2834 = vlaneseq
    %v2835 = vshrl.u32 %v2834, 7
    %v2836 = vsub.s32 %v2833, %v2835
    %v2837 = vrot.slane %v2823, %v2836
    %v2838 = vcombine.low %v227, %v233
    %v2839 = vcombine.high %v227, %v233
    %v2841 = vunpack.c.l.s4 1983009808
    %v2842 = vunpack.c.0.s8 %v2841
    %v2843 = vlaneseq
    %v2844 = vshrl.u32 %v2843, 7
    %v2845 = vsub.s32 %v2842, %v2844
    %v2846 = vrot.slane %v2838, %v2845
    %v2848 = vunpack.c.l.s4 1983009808
    %v2849 = vunpack.c.0.s8 %v2848
    %v2850 = vlaneseq
    %v2851 = vshrl.u32 %v2850, 7
    %v2852 = vsub.s32 %v2849, %v2851
    %v2853 = vrot.slane %v2839, %v2852
    %v2854 = vcombine.low %v2830, %v2846
    %v2855 = vcombine.high %v2830, %v2846
    %v2857 = vunpack.c.l.s4 1934713408
    %v2858 = vunpack.c.0.s8 %v2857
    %v2859 = vlaneseq
    %v2860 = vshrl.u32 %v2859, 7
    %v2861 = vsub.s32 %v2858, %v2860
    %v2862 = vrot.slane %v2854, %v2861
    %v2864 = vunpack.c.l.s4 1934713408
    %v2865 = vunpack.c.0.s8 %v2864
    %v2866 = vlaneseq
    %v2867 = vshrl.u32 %v2866, 7
    %v2868 = vsub.s32 %v2865, %v2867
    %v2869 = vrot.slane %v2855, %v2868
    %v2870 = vcombine.low %v2837, %v2853
    %v2871 = vcombine.high %v2837, %v2853
    %v2873 = vunpack.c.l.s4 1934713408
    %v2874 = vunpack.c.0.s8 %v2873
    %v2875 = vlaneseq
    %v2876 = vshrl.u32 %v2875, 7
    %v2877 = vsub.s32 %v2874, %v2876
    %v2878 = vrot.slane %v2870, %v2877
    %v2880 = vunpack.c.l.s4 1934713408
    %v2881 = vunpack.c.0.s8 %v2880
    %v2882 = vlaneseq
    %v2883 = vshrl.u32 %v2882, 7
    %v2884 = vsub.s32 %v2881, %v2883
    %v2885 = vrot.slane %v2871, %v2884
    %v2886 = vcombine.high %v2862, 0.0
    %v2887 = vcombine.high %v2869, 0.0
    %v2888 = vcombine.high %v2878, 0.0
    %v2889 = vcombine.high %v2885, 0.0
    %v2890 = vcombine.low %v225, %v231
    %v2891 = vcombine.high %v225, %v231
    %v2893 = vunpack.c.l.s4 1983009808
    %v2894 = vunpack.c.0.s8 %v2893
    %v2895 = vlaneseq
    %v2896 = vshrl.u32 %v2895, 7
    %v2897 = vsub.s32 %v2894, %v2896
    %v2898 = vrot.slane %v2890, %v2897
    %v2900 = vunpack.c.l.s4 1983009808
    %v2901 = vunpack.c.0.s8 %v2900
    %v2902 = vlaneseq
    %v2903 = vshrl.u32 %v2902, 7
    %v2904 = vsub.s32 %v2901, %v2903
    %v2905 = vrot.slane %v2891, %v2904
    %v2906 = vcombine.low %v228, %v234
    %v2907 = vcombine.high %v228, %v234
    %v2909 = vunpack.c.l.s4 1983009808
    %v2910 = vunpack.c.0.s8 %v2909
    %v2911 = vlaneseq
    %v2912 = vshrl.u32 %v2911, 7
    %v2913 = vsub.s32 %v2910, %v2912
    %v2914 = vrot.slane %v2906, %v2913
    %v2916 = vunpack.c.l.s4 1983009808
    %v2917 = vunpack.c.0.s8 %v2916
    %v2918 = vlaneseq
    %v2919 = vshrl.u32 %v2918, 7
    %v2920 = vsub.s32 %v2917, %v2919
    %v2921 = vrot.slane %v2907, %v2920
    %v2922 = vcombine.low %v2898, %v2914
    %v2923 = vcombine.high %v2898, %v2914
    %v2925 = vunpack.c.l.s4 1934713408
    %v2926 = vunpack.c.0.s8 %v2925
    %v2927 = vlaneseq
    %v2928 = vshrl.u32 %v2927, 7
    %v2929 = vsub.s32 %v2926, %v2928
    %v2930 = vrot.slane %v2922, %v2929
    %v2932 = vunpack.c.l.s4 1934713408
    %v2933 = vunpack.c.0.s8 %v2932
    %v2934 = vlaneseq
    %v2935 = vshrl.u32 %v2934, 7
    %v2936 = vsub.s32 %v2933, %v2935
    %v2937 = vrot.slane %v2923, %v2936
    %v2938 = vcombine.low %v2905, %v2921
    %v2939 = vcombine.high %v2905, %v2921
    %v2941 = vunpack.c.l.s4 1934713408
    %v2942 = vunpack.c.0.s8 %v2941
    %v2943 = vlaneseq
    %v2944 = vshrl.u32 %v2943, 7
    %v2945 = vsub.s32 %v2942, %v2944
    %v2946 = vrot.slane %v2938, %v2945
    %v2948 = vunpack.c.l.s4 1934713408
    %v2949 = vunpack.c.0.s8 %v2948
    %v2950 = vlaneseq
    %v2951 = vshrl.u32 %v2950, 7
    %v2952 = vsub.s32 %v2949, %v2951
    %v2953 = vrot.slane %v2939, %v2952
    %v2954 = vcombine.high %v2930, 0.0
    %v2955 = vcombine.high %v2937, 0.0
    %v2956 = vcombine.high %v2946, 0.0
    %v2957 = vcombine.high %v2953, 0.0
    %2959 = vrot.lane.b32.xlu0 %v2886, 16
    %v2960 = vpop.permute.xlu0 %2959
    %2963 = vrot.lane.b32.xlu0 %v2869, 32
    %v2964 = vpop.permute.xlu0 %2963
    %2967 = vrot.lane.b32.xlu0 %v2887, 48
    %v2968 = vpop.permute.xlu0 %2967
    %2971 = vrot.lane.b32.xlu0 %v2878, 64
    %v2972 = vpop.permute.xlu0 %2971
    %2975 = vrot.lane.b32.xlu0 %v2888, 80
    %v2976 = vpop.permute.xlu0 %2975
    %2979 = vrot.lane.b32.xlu0 %v2885, 96
    %v2980 = vpop.permute.xlu0 %2979
    %2983 = vrot.lane.b32.xlu0 %v2889, 112
    %v2984 = vpop.permute.xlu0 %2983
    %2987 = vrot.lane.b32.xlu0 %v2954, 16
    %v2988 = vpop.permute.xlu0 %2987
    %2991 = vrot.lane.b32.xlu0 %v2937, 32
    %v2992 = vpop.permute.xlu0 %2991
    %2995 = vrot.lane.b32.xlu0 %v2955, 48
    %v2996 = vpop.permute.xlu0 %2995
    %2999 = vrot.lane.b32.xlu0 %v2946, 64
    %v3000 = vpop.permute.xlu0 %2999
    %3003 = vrot.lane.b32.xlu0 %v2956, 80
    %v3004 = vpop.permute.xlu0 %3003
    %3007 = vrot.lane.b32.xlu0 %v2953, 96
    %v3008 = vpop.permute.xlu0 %3007
    %3011 = vrot.lane.b32.xlu0 %v2957, 112
    %v3012 = vpop.permute.xlu0 %3011
    %v3014 = vsel %vm429, %v2862, %v2960
    %v3015 = vsel %vm431, %v3014, %v2964
    %v3016 = vsel %vm433, %v3015, %v2968
    %v3017 = vsel %vm435, %v3016, %v2972
    %v3018 = vsel %vm437, %v3017, %v2976
    %v3019 = vsel %vm439, %v3018, %v2980
    %v3020 = vsel %vm441, %v3019, %v2984
    %v3021 = vsel %vm429, %v2930, %v2988
    %v3022 = vsel %vm431, %v3021, %v2992
    %v3023 = vsel %vm433, %v3022, %v2996
    %v3024 = vsel %vm435, %v3023, %v3000
    %v3025 = vsel %vm437, %v3024, %v3004
    %v3026 = vsel %vm439, %v3025, %v3008
    %v3027 = vsel %vm441, %v3026, %v3012
    %v3028 = vpack.c.bf16 %v3020, %v3020
    %v3029 = vpack.c.bf16 %v3027, %v3027
    %v3030 = vld [vmem:[%s1] sm:$0xf]
    %3039 = vrot.lane.b32.xlu0 %v224, 127
    %v3040 = vpop.permute.xlu0 %3039
    %3041 = vrot.lane.b32.xlu0 %v225, 127
    %v3042 = vpop.permute.xlu0 %3041
    %3043 = vrot.lane.b32.xlu0 %v227, 127
    %v3044 = vpop.permute.xlu0 %3043
    %3045 = vrot.lane.b32.xlu0 %v228, 127
    %v3046 = vpop.permute.xlu0 %3045
    %3047 = vrot.lane.b32.xlu0 %v230, 127
    %v3048 = vpop.permute.xlu0 %3047
    %3049 = vrot.lane.b32.xlu0 %v231, 127
    %v3050 = vpop.permute.xlu0 %3049
    %3051 = vrot.lane.b32.xlu0 %v233, 127
    %v3052 = vpop.permute.xlu0 %3051
    %3053 = vrot.lane.b32.xlu0 %v234, 127
    %v3054 = vpop.permute.xlu0 %3053
    %v3063 = vcombine.low %v3040, %v3048
    %v3064 = vcombine.high %v3040, %v3048
    %v3066 = vunpack.c.l.s4 1983009808
    %v3067 = vunpack.c.0.s8 %v3066
    %v3068 = vlaneseq
    %v3069 = vshrl.u32 %v3068, 7
    %v3070 = vsub.s32 %v3067, %v3069
    %v3071 = vrot.slane %v3063, %v3070
    %v3073 = vunpack.c.l.s4 1983009808
    %v3074 = vunpack.c.0.s8 %v3073
    %v3075 = vlaneseq
    %v3076 = vshrl.u32 %v3075, 7
    %v3077 = vsub.s32 %v3074, %v3076
    %v3078 = vrot.slane %v3064, %v3077
    %v3079 = vcombine.low %v3044, %v3052
    %v3080 = vcombine.high %v3044, %v3052
    %v3082 = vunpack.c.l.s4 1983009808
    %v3083 = vunpack.c.0.s8 %v3082
    %v3084 = vlaneseq
    %v3085 = vshrl.u32 %v3084, 7
    %v3086 = vsub.s32 %v3083, %v3085
    %v3087 = vrot.slane %v3079, %v3086
    %v3089 = vunpack.c.l.s4 1983009808
    %v3090 = vunpack.c.0.s8 %v3089
    %v3091 = vlaneseq
    %v3092 = vshrl.u32 %v3091, 7
    %v3093 = vsub.s32 %v3090, %v3092
    %v3094 = vrot.slane %v3080, %v3093
    %v3095 = vcombine.low %v3071, %v3087
    %v3096 = vcombine.high %v3071, %v3087
    %v3098 = vunpack.c.l.s4 1934713408
    %v3099 = vunpack.c.0.s8 %v3098
    %v3100 = vlaneseq
    %v3101 = vshrl.u32 %v3100, 7
    %v3102 = vsub.s32 %v3099, %v3101
    %v3103 = vrot.slane %v3095, %v3102
    %v3105 = vunpack.c.l.s4 1934713408
    %v3106 = vunpack.c.0.s8 %v3105
    %v3107 = vlaneseq
    %v3108 = vshrl.u32 %v3107, 7
    %v3109 = vsub.s32 %v3106, %v3108
    %v3110 = vrot.slane %v3096, %v3109
    %v3111 = vcombine.low %v3078, %v3094
    %v3112 = vcombine.high %v3078, %v3094
    %v3114 = vunpack.c.l.s4 1934713408
    %v3115 = vunpack.c.0.s8 %v3114
    %v3116 = vlaneseq
    %v3117 = vshrl.u32 %v3116, 7
    %v3118 = vsub.s32 %v3115, %v3117
    %v3119 = vrot.slane %v3111, %v3118
    %v3121 = vunpack.c.l.s4 1934713408
    %v3122 = vunpack.c.0.s8 %v3121
    %v3123 = vlaneseq
    %v3124 = vshrl.u32 %v3123, 7
    %v3125 = vsub.s32 %v3122, %v3124
    %v3126 = vrot.slane %v3112, %v3125
    %v3127 = vcombine.high %v3103, 0.0
    %v3128 = vcombine.high %v3110, 0.0
    %v3129 = vcombine.high %v3119, 0.0
    %v3130 = vcombine.high %v3126, 0.0
    %v3131 = vcombine.low %v3042, %v3050
    %v3132 = vcombine.high %v3042, %v3050
    %v3134 = vunpack.c.l.s4 1983009808
    %v3135 = vunpack.c.0.s8 %v3134
    %v3136 = vlaneseq
    %v3137 = vshrl.u32 %v3136, 7
    %v3138 = vsub.s32 %v3135, %v3137
    %v3139 = vrot.slane %v3131, %v3138
    %v3141 = vunpack.c.l.s4 1983009808
    %v3142 = vunpack.c.0.s8 %v3141
    %v3143 = vlaneseq
    %v3144 = vshrl.u32 %v3143, 7
    %v3145 = vsub.s32 %v3142, %v3144
    %v3146 = vrot.slane %v3132, %v3145
    %v3147 = vcombine.low %v3046, %v3054
    %v3148 = vcombine.high %v3046, %v3054
    %v3150 = vunpack.c.l.s4 1983009808
    %v3151 = vunpack.c.0.s8 %v3150
    %v3152 = vlaneseq
    %v3153 = vshrl.u32 %v3152, 7
    %v3154 = vsub.s32 %v3151, %v3153
    %v3155 = vrot.slane %v3147, %v3154
    %v3157 = vunpack.c.l.s4 1983009808
    %v3158 = vunpack.c.0.s8 %v3157
    %v3159 = vlaneseq
    %v3160 = vshrl.u32 %v3159, 7
    %v3161 = vsub.s32 %v3158, %v3160
    %v3162 = vrot.slane %v3148, %v3161
    %v3163 = vcombine.low %v3139, %v3155
    %v3164 = vcombine.high %v3139, %v3155
    %v3166 = vunpack.c.l.s4 1934713408
    %v3167 = vunpack.c.0.s8 %v3166
    %v3168 = vlaneseq
    %v3169 = vshrl.u32 %v3168, 7
    %v3170 = vsub.s32 %v3167, %v3169
    %v3171 = vrot.slane %v3163, %v3170
    %v3173 = vunpack.c.l.s4 1934713408
    %v3174 = vunpack.c.0.s8 %v3173
    %v3175 = vlaneseq
    %v3176 = vshrl.u32 %v3175, 7
    %v3177 = vsub.s32 %v3174, %v3176
    %v3178 = vrot.slane %v3164, %v3177
    %v3179 = vcombine.low %v3146, %v3162
    %v3180 = vcombine.high %v3146, %v3162
    %v3182 = vunpack.c.l.s4 1934713408
    %v3183 = vunpack.c.0.s8 %v3182
    %v3184 = vlaneseq
    %v3185 = vshrl.u32 %v3184, 7
    %v3186 = vsub.s32 %v3183, %v3185
    %v3187 = vrot.slane %v3179, %v3186
    %v3189 = vunpack.c.l.s4 1934713408
    %v3190 = vunpack.c.0.s8 %v3189
    %v3191 = vlaneseq
    %v3192 = vshrl.u32 %v3191, 7
    %v3193 = vsub.s32 %v3190, %v3192
    %v3194 = vrot.slane %v3180, %v3193
    %v3195 = vcombine.high %v3171, 0.0
    %v3196 = vcombine.high %v3178, 0.0
    %v3197 = vcombine.high %v3187, 0.0
    %v3198 = vcombine.high %v3194, 0.0
    %3200 = vrot.lane.b32.xlu0 %v3127, 16
    %v3201 = vpop.permute.xlu0 %3200
    %3204 = vrot.lane.b32.xlu0 %v3110, 32
    %v3205 = vpop.permute.xlu0 %3204
    %3208 = vrot.lane.b32.xlu0 %v3128, 48
    %v3209 = vpop.permute.xlu0 %3208
    %3212 = vrot.lane.b32.xlu0 %v3119, 64
    %v3213 = vpop.permute.xlu0 %3212
    %3216 = vrot.lane.b32.xlu0 %v3129, 80
    %v3217 = vpop.permute.xlu0 %3216
    %3220 = vrot.lane.b32.xlu0 %v3126, 96
    %v3221 = vpop.permute.xlu0 %3220
    %3224 = vrot.lane.b32.xlu0 %v3130, 112
    %v3225 = vpop.permute.xlu0 %3224
    %3228 = vrot.lane.b32.xlu0 %v3195, 16
    %v3229 = vpop.permute.xlu0 %3228
    %3232 = vrot.lane.b32.xlu0 %v3178, 32
    %v3233 = vpop.permute.xlu0 %3232
    %3236 = vrot.lane.b32.xlu0 %v3196, 48
    %v3237 = vpop.permute.xlu0 %3236
    %3240 = vrot.lane.b32.xlu0 %v3187, 64
    %v3241 = vpop.permute.xlu0 %3240
    %3244 = vrot.lane.b32.xlu0 %v3197, 80
    %v3245 = vpop.permute.xlu0 %3244
    %3248 = vrot.lane.b32.xlu0 %v3194, 96
    %v3249 = vpop.permute.xlu0 %3248
    %3252 = vrot.lane.b32.xlu0 %v3198, 112
    %v3253 = vpop.permute.xlu0 %3252
    %v3255 = vsel %vm429, %v3103, %v3201
    %v3256 = vsel %vm431, %v3255, %v3205
    %v3257 = vsel %vm433, %v3256, %v3209
    %v3258 = vsel %vm435, %v3257, %v3213
    %v3259 = vsel %vm437, %v3258, %v3217
    %v3260 = vsel %vm439, %v3259, %v3221
    %v3261 = vsel %vm441, %v3260, %v3225
    %v3262 = vsel %vm429, %v3171, %v3229
    %v3263 = vsel %vm431, %v3262, %v3233
    %v3264 = vsel %vm433, %v3263, %v3237
    %v3265 = vsel %vm435, %v3264, %v3241
    %v3266 = vsel %vm437, %v3265, %v3245
    %v3267 = vsel %vm439, %v3266, %v3249
    %v3268 = vsel %vm441, %v3267, %v3253
    %v3269 = vpack.c.bf16 %v3261, %v3261
    %v3270 = vpack.c.bf16 %v3268, %v3268
    %v3271 = vld [vmem:[%s693] sm:$0xf]
    %v3273 = vsel %vm695, %v3271, 0
    %v3276 = vsel %vm699, %v3269, 0
    %v3279 = vsel %vm699, %v3270, 0
    %3281 = vmatprep.subr.bf16.mxu0 %v3279
    %3282 = vmatpush1.bf16.msra.mxu0 %v3276
    %3283 = vmatprep.subr.bf16.mxu0 0
    %3284 = vmatpush1.bf16.msra.mxu0 0
    %3285 = vmatprep.subr.bf16.mxu0 0
    %3286 = vmatpush1.bf16.msra.mxu0 0
    %3287 = vmatprep.subr.bf16.mxu0 0
    %3288 = vmatpush1.bf16.msra.mxu0 0
    %3289 = vmatprep.subr.bf16.mxu0 0
    %3290 = vmatpush1.bf16.msra.mxu0 0
    %3291 = vmatprep.subr.bf16.mxu0 0
    %3292 = vmatpush1.bf16.msra.mxu0 0
    %3293 = vmatprep.subr.bf16.mxu0 0
    %3294 = vmatpush1.bf16.msra.mxu0 0
    %3295 = vmatprep.subr.bf16.mxu0 0
    %3296 = vmatpush1.bf16.msra.mxu0 0
    %3297 = vmatprep.subr.bf16.mxu0 0
    %3298 = vmatpush1.bf16.msra.mxu0 0
    %3299 = vmatprep.subr.bf16.mxu0 0
    %3300 = vmatpush1.bf16.msra.mxu0 0
    %3301 = vmatprep.subr.bf16.mxu0 0
    %3302 = vmatpush1.bf16.msra.mxu0 0
    %3303 = vmatprep.subr.bf16.mxu0 0
    %3304 = vmatpush1.bf16.msra.mxu0 0
    %3305 = vmatprep.subr.bf16.mxu0 0
    %3306 = vmatpush1.bf16.msra.mxu0 0
    %3307 = vmatprep.subr.bf16.mxu0 0
    %3308 = vmatpush1.bf16.msra.mxu0 0
    %3309 = vmatprep.subr.bf16.mxu0 0
    %3310 = vmatpush1.bf16.msra.mxu0 0
    %3311 = vmatprep.subr.bf16.mxu0 0
    %3312 = vmatpush1.bf16.msra.mxu0 0
    %3313 = vmatprep.mubr.bf16.mxu0 0
    %3314 = vmatmul.mubr.bf16.gmra.mrb[0].mxu0 %v3273
    %v3315 = vpop.f32.mrb[0].mxu0
    %v3316 = vadd.f32 0.0, %v3315
    %v3317 = vpop.f32.mrb[0].mxu0
    %v3318 = vadd.f32 0.0, %v3317
    %v3319 = vpop.f32.mrb[0].mxu0
    %v3320 = vpop.f32.mrb[0].mxu0
    %3321 = vdwg.mxu0
    %v3323 = vsel %vm695, %v3030, 0
    %v3326 = vsel %vm699, %v3028, 0
    %v3329 = vsel %vm699, %v3029, 0
    %3331 = vmatprep.subr.bf16.mxu0 %v3329
    %3332 = vmatpush1.bf16.msra.mxu0 %v3326
    %3333 = vmatprep.subr.bf16.mxu0 0
    %3334 = vmatpush1.bf16.msra.mxu0 0
    %3335 = vmatprep.subr.bf16.mxu0 0
    %3336 = vmatpush1.bf16.msra.mxu0 0
    %3337 = vmatprep.subr.bf16.mxu0 0
    %3338 = vmatpush1.bf16.msra.mxu0 0
    %3339 = vmatprep.subr.bf16.mxu0 0
    %3340 = vmatpush1.bf16.msra.mxu0 0
    %3341 = vmatprep.subr.bf16.mxu0 0
    %3342 = vmatpush1.bf16.msra.mxu0 0
    %3343 = vmatprep.subr.bf16.mxu0 0
    %3344 = vmatpush1.bf16.msra.mxu0 0
    %3345 = vmatprep.subr.bf16.mxu0 0
    %3346 = vmatpush1.bf16.msra.mxu0 0
    %3347 = vmatprep.subr.bf16.mxu0 0
    %3348 = vmatpush1.bf16.msra.mxu0 0
    %3349 = vmatprep.subr.bf16.mxu0 0
    %3350 = vmatpush1.bf16.msra.mxu0 0
    %3351 = vmatprep.subr.bf16.mxu0 0
    %3352 = vmatpush1.bf16.msra.mxu0 0
    %3353 = vmatprep.subr.bf16.mxu0 0
    %3354 = vmatpush1.bf16.msra.mxu0 0
    %3355 = vmatprep.subr.bf16.mxu0 0
    %3356 = vmatpush1.bf16.msra.mxu0 0
    %3357 = vmatprep.subr.bf16.mxu0 0
    %3358 = vmatpush1.bf16.msra.mxu0 0
    %3359 = vmatprep.subr.bf16.mxu0 0
    %3360 = vmatpush1.bf16.msra.mxu0 0
    %3361 = vmatprep.subr.bf16.mxu0 0
    %3362 = vmatpush1.bf16.msra.mxu0 0
    %3363 = vmatprep.mubr.bf16.mxu0 0
    %3364 = vmatmul.mubr.bf16.gmra.mrb[0].mxu0 %v3323
    %v3365 = vpop.f32.mrb[0].mxu0
    %v3366 = vadd.f32 %v3316, %v3365
    %v3367 = vpop.f32.mrb[0].mxu0
    %v3368 = vadd.f32 %v3318, %v3367
    %v3369 = vpop.f32.mrb[0].mxu0
    %v3370 = vpop.f32.mrb[0].mxu0
    %3371 = vdwg.mxu0
    %3372 = vrot.lane.b32.xlu0 %v224, 126
    %v3373 = vpop.permute.xlu0 %3372
    %3374 = vrot.lane.b32.xlu0 %v225, 126
    %v3375 = vpop.permute.xlu0 %3374
    %3376 = vrot.lane.b32.xlu0 %v227, 126
    %v3377 = vpop.permute.xlu0 %3376
    %3378 = vrot.lane.b32.xlu0 %v228, 126
    %v3379 = vpop.permute.xlu0 %3378
    %3380 = vrot.lane.b32.xlu0 %v230, 126
    %v3381 = vpop.permute.xlu0 %3380
    %3382 = vrot.lane.b32.xlu0 %v231, 126
    %v3383 = vpop.permute.xlu0 %3382
    %3384 = vrot.lane.b32.xlu0 %v233, 126
    %v3385 = vpop.permute.xlu0 %3384
    %3386 = vrot.lane.b32.xlu0 %v234, 126
    %v3387 = vpop.permute.xlu0 %3386
    %v3396 = vcombine.low %v3373, %v3381
    %v3397 = vcombine.high %v3373, %v3381
    %v3399 = vunpack.c.l.s4 1983009808
    %v3400 = vunpack.c.0.s8 %v3399
    %v3401 = vlaneseq
    %v3402 = vshrl.u32 %v3401, 7
    %v3403 = vsub.s32 %v3400, %v3402
    %v3404 = vrot.slane %v3396, %v3403
    %v3406 = vunpack.c.l.s4 1983009808
    %v3407 = vunpack.c.0.s8 %v3406
    %v3408 = vlaneseq
    %v3409 = vshrl.u32 %v3408, 7
    %v3410 = vsub.s32 %v3407, %v3409
    %v3411 = vrot.slane %v3397, %v3410
    %v3412 = vcombine.low %v3377, %v3385
    %v3413 = vcombine.high %v3377, %v3385
    %v3415 = vunpack.c.l.s4 1983009808
    %v3416 = vunpack.c.0.s8 %v3415
    %v3417 = vlaneseq
    %v3418 = vshrl.u32 %v3417, 7
    %v3419 = vsub.s32 %v3416, %v3418
    %v3420 = vrot.slane %v3412, %v3419
    %v3422 = vunpack.c.l.s4 1983009808
    %v3423 = vunpack.c.0.s8 %v3422
    %v3424 = vlaneseq
    %v3425 = vshrl.u32 %v3424, 7
    %v3426 = vsub.s32 %v3423, %v3425
    %v3427 = vrot.slane %v3413, %v3426
    %v3428 = vcombine.low %v3404, %v3420
    %v3429 = vcombine.high %v3404, %v3420
    %v3431 = vunpack.c.l.s4 1934713408
    %v3432 = vunpack.c.0.s8 %v3431
    %v3433 = vlaneseq
    %v3434 = vshrl.u32 %v3433, 7
    %v3435 = vsub.s32 %v3432, %v3434
    %v3436 = vrot.slane %v3428, %v3435
    %v3438 = vunpack.c.l.s4 1934713408
    %v3439 = vunpack.c.0.s8 %v3438
    %v3440 = vlaneseq
    %v3441 = vshrl.u32 %v3440, 7
    %v3442 = vsub.s32 %v3439, %v3441
    %v3443 = vrot.slane %v3429, %v3442
    %v3444 = vcombine.low %v3411, %v3427
    %v3445 = vcombine.high %v3411, %v3427
    %v3447 = vunpack.c.l.s4 1934713408
    %v3448 = vunpack.c.0.s8 %v3447
    %v3449 = vlaneseq
    %v3450 = vshrl.u32 %v3449, 7
    %v3451 = vsub.s32 %v3448, %v3450
    %v3452 = vrot.slane %v3444, %v3451
    %v3454 = vunpack.c.l.s4 1934713408
    %v3455 = vunpack.c.0.s8 %v3454
    %v3456 = vlaneseq
    %v3457 = vshrl.u32 %v3456, 7
    %v3458 = vsub.s32 %v3455, %v3457
    %v3459 = vrot.slane %v3445, %v3458
    %v3460 = vcombine.high %v3436, 0.0
    %v3461 = vcombine.high %v3443, 0.0
    %v3462 = vcombine.high %v3452, 0.0
    %v3463 = vcombine.high %v3459, 0.0
    %v3464 = vcombine.low %v3375, %v3383
    %v3465 = vcombine.high %v3375, %v3383
    %v3467 = vunpack.c.l.s4 1983009808
    %v3468 = vunpack.c.0.s8 %v3467
    %v3469 = vlaneseq
    %v3470 = vshrl.u32 %v3469, 7
    %v3471 = vsub.s32 %v3468, %v3470
    %v3472 = vrot.slane %v3464, %v3471
    %v3474 = vunpack.c.l.s4 1983009808
    %v3475 = vunpack.c.0.s8 %v3474
    %v3476 = vlaneseq
    %v3477 = vshrl.u32 %v3476, 7
    %v3478 = vsub.s32 %v3475, %v3477
    %v3479 = vrot.slane %v3465, %v3478
    %v3480 = vcombine.low %v3379, %v3387
    %v3481 = vcombine.high %v3379, %v3387
    %v3483 = vunpack.c.l.s4 1983009808
    %v3484 = vunpack.c.0.s8 %v3483
    %v3485 = vlaneseq
    %v3486 = vshrl.u32 %v3485, 7
    %v3487 = vsub.s32 %v3484, %v3486
    %v3488 = vrot.slane %v3480, %v3487
    %v3490 = vunpack.c.l.s4 1983009808
    %v3491 = vunpack.c.0.s8 %v3490
    %v3492 = vlaneseq
    %v3493 = vshrl.u32 %v3492, 7
    %v3494 = vsub.s32 %v3491, %v3493
    %v3495 = vrot.slane %v3481, %v3494
    %v3496 = vcombine.low %v3472, %v3488
    %v3497 = vcombine.high %v3472, %v3488
    %v3499 = vunpack.c.l.s4 1934713408
    %v3500 = vunpack.c.0.s8 %v3499
    %v3501 = vlaneseq
    %v3502 = vshrl.u32 %v3501, 7
    %v3503 = vsub.s32 %v3500, %v3502
    %v3504 = vrot.slane %v3496, %v3503
    %v3506 = vunpack.c.l.s4 1934713408
    %v3507 = vunpack.c.0.s8 %v3506
    %v3508 = vlaneseq
    %v3509 = vshrl.u32 %v3508, 7
    %v3510 = vsub.s32 %v3507, %v3509
    %v3511 = vrot.slane %v3497, %v3510
    %v3512 = vcombine.low %v3479, %v3495
    %v3513 = vcombine.high %v3479, %v3495
    %v3515 = vunpack.c.l.s4 1934713408
    %v3516 = vunpack.c.0.s8 %v3515
    %v3517 = vlaneseq
    %v3518 = vshrl.u32 %v3517, 7
    %v3519 = vsub.s32 %v3516, %v3518
    %v3520 = vrot.slane %v3512, %v3519
    %v3522 = vunpack.c.l.s4 1934713408
    %v3523 = vunpack.c.0.s8 %v3522
    %v3524 = vlaneseq
    %v3525 = vshrl.u32 %v3524, 7
    %v3526 = vsub.s32 %v3523, %v3525
    %v3527 = vrot.slane %v3513, %v3526
    %v3528 = vcombine.high %v3504, 0.0
    %v3529 = vcombine.high %v3511, 0.0
    %v3530 = vcombine.high %v3520, 0.0
    %v3531 = vcombine.high %v3527, 0.0
    %3533 = vrot.lane.b32.xlu0 %v3460, 16
    %v3534 = vpop.permute.xlu0 %3533
    %3537 = vrot.lane.b32.xlu0 %v3443, 32
    %v3538 = vpop.permute.xlu0 %3537
    %3541 = vrot.lane.b32.xlu0 %v3461, 48
    %v3542 = vpop.permute.xlu0 %3541
    %3545 = vrot.lane.b32.xlu0 %v3452, 64
    %v3546 = vpop.permute.xlu0 %3545
    %3549 = vrot.lane.b32.xlu0 %v3462, 80
    %v3550 = vpop.permute.xlu0 %3549
    %3553 = vrot.lane.b32.xlu0 %v3459, 96
    %v3554 = vpop.permute.xlu0 %3553
    %3557 = vrot.lane.b32.xlu0 %v3463, 112
    %v3558 = vpop.permute.xlu0 %3557
    %3561 = vrot.lane.b32.xlu0 %v3528, 16
    %v3562 = vpop.permute.xlu0 %3561
    %3565 = vrot.lane.b32.xlu0 %v3511, 32
    %v3566 = vpop.permute.xlu0 %3565
    %3569 = vrot.lane.b32.xlu0 %v3529, 48
    %v3570 = vpop.permute.xlu0 %3569
    %3573 = vrot.lane.b32.xlu0 %v3520, 64
    %v3574 = vpop.permute.xlu0 %3573
    %3577 = vrot.lane.b32.xlu0 %v3530, 80
    %v3578 = vpop.permute.xlu0 %3577
    %3581 = vrot.lane.b32.xlu0 %v3527, 96
    %v3582 = vpop.permute.xlu0 %3581
    %3585 = vrot.lane.b32.xlu0 %v3531, 112
    %v3586 = vpop.permute.xlu0 %3585
    %v3588 = vsel %vm429, %v3436, %v3534
    %v3589 = vsel %vm431, %v3588, %v3538
    %v3590 = vsel %vm433, %v3589, %v3542
    %v3591 = vsel %vm435, %v3590, %v3546
    %v3592 = vsel %vm437, %v3591, %v3550
    %v3593 = vsel %vm439, %v3592, %v3554
    %v3594 = vsel %vm441, %v3593, %v3558
    %v3595 = vsel %vm429, %v3504, %v3562
    %v3596 = vsel %vm431, %v3595, %v3566
    %v3597 = vsel %vm433, %v3596, %v3570
    %v3598 = vsel %vm435, %v3597, %v3574
    %v3599 = vsel %vm437, %v3598, %v3578
    %v3600 = vsel %vm439, %v3599, %v3582
    %v3601 = vsel %vm441, %v3600, %v3586
    %v3602 = vpack.c.bf16 %v3594, %v3594
    %v3603 = vpack.c.bf16 %v3601, %v3601
    %v3604 = vld [vmem:[%s1029] sm:$0xf]
    %v3606 = vsel %vm695, %v3604, 0
    %v3609 = vsel %vm699, %v3602, 0
    %v3612 = vsel %vm699, %v3603, 0
    %3614 = vmatprep.subr.bf16.mxu0 %v3612
    %3615 = vmatpush1.bf16.msra.mxu0 %v3609
    %3616 = vmatprep.subr.bf16.mxu0 0
    %3617 = vmatpush1.bf16.msra.mxu0 0
    %3618 = vmatprep.subr.bf16.mxu0 0
    %3619 = vmatpush1.bf16.msra.mxu0 0
    %3620 = vmatprep.subr.bf16.mxu0 0
    %3621 = vmatpush1.bf16.msra.mxu0 0
    %3622 = vmatprep.subr.bf16.mxu0 0
    %3623 = vmatpush1.bf16.msra.mxu0 0
    %3624 = vmatprep.subr.bf16.mxu0 0
    %3625 = vmatpush1.bf16.msra.mxu0 0
    %3626 = vmatprep.subr.bf16.mxu0 0
    %3627 = vmatpush1.bf16.msra.mxu0 0
    %3628 = vmatprep.subr.bf16.mxu0 0
    %3629 = vmatpush1.bf16.msra.mxu0 0
    %3630 = vmatprep.subr.bf16.mxu0 0
    %3631 = vmatpush1.bf16.msra.mxu0 0
    %3632 = vmatprep.subr.bf16.mxu0 0
    %3633 = vmatpush1.bf16.msra.mxu0 0
    %3634 = vmatprep.subr.bf16.mxu0 0
    %3635 = vmatpush1.bf16.msra.mxu0 0
    %3636 = vmatprep.subr.bf16.mxu0 0
    %3637 = vmatpush1.bf16.msra.mxu0 0
    %3638 = vmatprep.subr.bf16.mxu0 0
    %3639 = vmatpush1.bf16.msra.mxu0 0
    %3640 = vmatprep.subr.bf16.mxu0 0
    %3641 = vmatpush1.bf16.msra.mxu0 0
    %3642 = vmatprep.subr.bf16.mxu0 0
    %3643 = vmatpush1.bf16.msra.mxu0 0
    %3644 = vmatprep.subr.bf16.mxu0 0
    %3645 = vmatpush1.bf16.msra.mxu0 0
    %3646 = vmatprep.mubr.bf16.mxu0 0
    %3647 = vmatmul.mubr.bf16.gmra.mrb[0].mxu0 %v3606
    %v3648 = vpop.f32.mrb[0].mxu0
    %v3649 = vadd.f32 0.0, %v3648
    %v3650 = vpop.f32.mrb[0].mxu0
    %v3651 = vadd.f32 0.0, %v3650
    %v3652 = vpop.f32.mrb[0].mxu0
    %v3653 = vpop.f32.mrb[0].mxu0
    %3654 = vdwg.mxu0
    %v3655 = vadd.f32 %v3366, %v3649
    %v3656 = vadd.f32 %v3368, %v3651
    %v3661 = vrot.slane %v224, 1
    %v3662 = vrot.slane %v225, 1
    %v3663 = vsel %vm1087, %v3661, %v3662
    %v3664 = vrot.slane %v226, 1
    %v3665 = vsel %vm1087, %v3662, %v3664
    %v3666 = vrot.slane %v227, 1
    %v3667 = vrot.slane %v228, 1
    %v3668 = vsel %vm1087, %v3666, %v3667
    %v3669 = vrot.slane %v229, 1
    %v3670 = vsel %vm1087, %v3667, %v3669
    %v3671 = vrot.slane %v230, 1
    %v3672 = vrot.slane %v231, 1
    %v3673 = vsel %vm1087, %v3671, %v3672
    %v3674 = vrot.slane %v232, 1
    %v3675 = vsel %vm1087, %v3672, %v3674
    %v3676 = vrot.slane %v233, 1
    %v3677 = vrot.slane %v234, 1
    %v3678 = vsel %vm1087, %v3676, %v3677
    %v3679 = vrot.slane %v235, 1
    %v3680 = vsel %vm1087, %v3677, %v3679
    %v3689 = vcombine.low %v3663, %v3673
    %v3690 = vcombine.high %v3663, %v3673
    %v3692 = vunpack.c.l.s4 1983009808
    %v3693 = vunpack.c.0.s8 %v3692
    %v3694 = vlaneseq
    %v3695 = vshrl.u32 %v3694, 7
    %v3696 = vsub.s32 %v3693, %v3695
    %v3697 = vrot.slane %v3689, %v3696
    %v3699 = vunpack.c.l.s4 1983009808
    %v3700 = vunpack.c.0.s8 %v3699
    %v3701 = vlaneseq
    %v3702 = vshrl.u32 %v3701, 7
    %v3703 = vsub.s32 %v3700, %v3702
    %v3704 = vrot.slane %v3690, %v3703
    %v3705 = vcombine.low %v3668, %v3678
    %v3706 = vcombine.high %v3668, %v3678
    %v3708 = vunpack.c.l.s4 1983009808
    %v3709 = vunpack.c.0.s8 %v3708
    %v3710 = vlaneseq
    %v3711 = vshrl.u32 %v3710, 7
    %v3712 = vsub.s32 %v3709, %v3711
    %v3713 = vrot.slane %v3705, %v3712
    %v3715 = vunpack.c.l.s4 1983009808
    %v3716 = vunpack.c.0.s8 %v3715
    %v3717 = vlaneseq
    %v3718 = vshrl.u32 %v3717, 7
    %v3719 = vsub.s32 %v3716, %v3718
    %v3720 = vrot.slane %v3706, %v3719
    %v3721 = vcombine.low %v3697, %v3713
    %v3722 = vcombine.high %v3697, %v3713
    %v3724 = vunpack.c.l.s4 1934713408
    %v3725 = vunpack.c.0.s8 %v3724
    %v3726 = vlaneseq
    %v3727 = vshrl.u32 %v3726, 7
    %v3728 = vsub.s32 %v3725, %v3727
    %v3729 = vrot.slane %v3721, %v3728
    %v3731 = vunpack.c.l.s4 1934713408
    %v3732 = vunpack.c.0.s8 %v3731
    %v3733 = vlaneseq
    %v3734 = vshrl.u32 %v3733, 7
    %v3735 = vsub.s32 %v3732, %v3734
    %v3736 = vrot.slane %v3722, %v3735
    %v3737 = vcombine.low %v3704, %v3720
    %v3738 = vcombine.high %v3704, %v3720
    %v3740 = vunpack.c.l.s4 1934713408
    %v3741 = vunpack.c.0.s8 %v3740
    %v3742 = vlaneseq
    %v3743 = vshrl.u32 %v3742, 7
    %v3744 = vsub.s32 %v3741, %v3743
    %v3745 = vrot.slane %v3737, %v3744
    %v3747 = vunpack.c.l.s4 1934713408
    %v3748 = vunpack.c.0.s8 %v3747
    %v3749 = vlaneseq
    %v3750 = vshrl.u32 %v3749, 7
    %v3751 = vsub.s32 %v3748, %v3750
    %v3752 = vrot.slane %v3738, %v3751
    %v3753 = vcombine.high %v3729, 0.0
    %v3754 = vcombine.high %v3736, 0.0
    %v3755 = vcombine.high %v3745, 0.0
    %v3756 = vcombine.high %v3752, 0.0
    %v3757 = vcombine.low %v3665, %v3675
    %v3758 = vcombine.high %v3665, %v3675
    %v3760 = vunpack.c.l.s4 1983009808
    %v3761 = vunpack.c.0.s8 %v3760
    %v3762 = vlaneseq
    %v3763 = vshrl.u32 %v3762, 7
    %v3764 = vsub.s32 %v3761, %v3763
    %v3765 = vrot.slane %v3757, %v3764
    %v3767 = vunpack.c.l.s4 1983009808
    %v3768 = vunpack.c.0.s8 %v3767
    %v3769 = vlaneseq
    %v3770 = vshrl.u32 %v3769, 7
    %v3771 = vsub.s32 %v3768, %v3770
    %v3772 = vrot.slane %v3758, %v3771
    %v3773 = vcombine.low %v3670, %v3680
    %v3774 = vcombine.high %v3670, %v3680
    %v3776 = vunpack.c.l.s4 1983009808
    %v3777 = vunpack.c.0.s8 %v3776
    %v3778 = vlaneseq
    %v3779 = vshrl.u32 %v3778, 7
    %v3780 = vsub.s32 %v3777, %v3779
    %v3781 = vrot.slane %v3773, %v3780
    %v3783 = vunpack.c.l.s4 1983009808
    %v3784 = vunpack.c.0.s8 %v3783
    %v3785 = vlaneseq
    %v3786 = vshrl.u32 %v3785, 7
    %v3787 = vsub.s32 %v3784, %v3786
    %v3788 = vrot.slane %v3774, %v3787
    %v3789 = vcombine.low %v3765, %v3781
    %v3790 = vcombine.high %v3765, %v3781
    %v3792 = vunpack.c.l.s4 1934713408
    %v3793 = vunpack.c.0.s8 %v3792
    %v3794 = vlaneseq
    %v3795 = vshrl.u32 %v3794, 7
    %v3796 = vsub.s32 %v3793, %v3795
    %v3797 = vrot.slane %v3789, %v3796
    %v3799 = vunpack.c.l.s4 1934713408
    %v3800 = vunpack.c.0.s8 %v3799
    %v3801 = vlaneseq
    %v3802 = vshrl.u32 %v3801, 7
    %v3803 = vsub.s32 %v3800, %v3802
    %v3804 = vrot.slane %v3790, %v3803
    %v3805 = vcombine.low %v3772, %v3788
    %v3806 = vcombine.high %v3772, %v3788
    %v3808 = vunpack.c.l.s4 1934713408
    %v3809 = vunpack.c.0.s8 %v3808
    %v3810 = vlaneseq
    %v3811 = vshrl.u32 %v3810, 7
    %v3812 = vsub.s32 %v3809, %v3811
    %v3813 = vrot.slane %v3805, %v3812
    %v3815 = vunpack.c.l.s4 1934713408
    %v3816 = vunpack.c.0.s8 %v3815
    %v3817 = vlaneseq
    %v3818 = vshrl.u32 %v3817, 7
    %v3819 = vsub.s32 %v3816, %v3818
    %v3820 = vrot.slane %v3806, %v3819
    %v3821 = vcombine.high %v3797, 0.0
    %v3822 = vcombine.high %v3804, 0.0
    %v3823 = vcombine.high %v3813, 0.0
    %v3824 = vcombine.high %v3820, 0.0
    %3826 = vrot.lane.b32.xlu0 %v3753, 16
    %v3827 = vpop.permute.xlu0 %3826
    %3830 = vrot.lane.b32.xlu0 %v3736, 32
    %v3831 = vpop.permute.xlu0 %3830
    %3834 = vrot.lane.b32.xlu0 %v3754, 48
    %v3835 = vpop.permute.xlu0 %3834
    %3838 = vrot.lane.b32.xlu0 %v3745, 64
    %v3839 = vpop.permute.xlu0 %3838
    %3842 = vrot.lane.b32.xlu0 %v3755, 80
    %v3843 = vpop.permute.xlu0 %3842
    %3846 = vrot.lane.b32.xlu0 %v3752, 96
    %v3847 = vpop.permute.xlu0 %3846
    %3850 = vrot.lane.b32.xlu0 %v3756, 112
    %v3851 = vpop.permute.xlu0 %3850
    %3854 = vrot.lane.b32.xlu0 %v3821, 16
    %v3855 = vpop.permute.xlu0 %3854
    %3858 = vrot.lane.b32.xlu0 %v3804, 32
    %v3859 = vpop.permute.xlu0 %3858
    %3862 = vrot.lane.b32.xlu0 %v3822, 48
    %v3863 = vpop.permute.xlu0 %3862
    %3866 = vrot.lane.b32.xlu0 %v3813, 64
    %v3867 = vpop.permute.xlu0 %3866
    %3870 = vrot.lane.b32.xlu0 %v3823, 80
    %v3871 = vpop.permute.xlu0 %3870
    %3874 = vrot.lane.b32.xlu0 %v3820, 96
    %v3875 = vpop.permute.xlu0 %3874
    %3878 = vrot.lane.b32.xlu0 %v3824, 112
    %v3879 = vpop.permute.xlu0 %3878
    %v3881 = vsel %vm429, %v3729, %v3827
    %v3882 = vsel %vm431, %v3881, %v3831
    %v3883 = vsel %vm433, %v3882, %v3835
    %v3884 = vsel %vm435, %v3883, %v3839
    %v3885 = vsel %vm437, %v3884, %v3843
    %v3886 = vsel %vm439, %v3885, %v3847
    %v3887 = vsel %vm441, %v3886, %v3851
    %v3888 = vsel %vm429, %v3797, %v3855
    %v3889 = vsel %vm431, %v3888, %v3859
    %v3890 = vsel %vm433, %v3889, %v3863
    %v3891 = vsel %vm435, %v3890, %v3867
    %v3892 = vsel %vm437, %v3891, %v3871
    %v3893 = vsel %vm439, %v3892, %v3875
    %v3894 = vsel %vm441, %v3893, %v3879
    %v3895 = vpack.c.bf16 %v3887, %v3887
    %v3896 = vpack.c.bf16 %v3894, %v3894
    %v3897 = vld [vmem:[%s1324] sm:$0xf]
    %v3899 = vsel %vm695, %v3897, 0
    %v3902 = vsel %vm699, %v3895, 0
    %v3905 = vsel %vm699, %v3896, 0
    %3907 = vmatprep.subr.bf16.mxu0 %v3905
    %3908 = vmatpush1.bf16.msra.mxu0 %v3902
    %3909 = vmatprep.subr.bf16.mxu0 0
    %3910 = vmatpush1.bf16.msra.mxu0 0
    %3911 = vmatprep.subr.bf16.mxu0 0
    %3912 = vmatpush1.bf16.msra.mxu0 0
    %3913 = vmatprep.subr.bf16.mxu0 0
    %3914 = vmatpush1.bf16.msra.mxu0 0
    %3915 = vmatprep.subr.bf16.mxu0 0
    %3916 = vmatpush1.bf16.msra.mxu0 0
    %3917 = vmatprep.subr.bf16.mxu0 0
    %3918 = vmatpush1.bf16.msra.mxu0 0
    %3919 = vmatprep.subr.bf16.mxu0 0
    %3920 = vmatpush1.bf16.msra.mxu0 0
    %3921 = vmatprep.subr.bf16.mxu0 0
    %3922 = vmatpush1.bf16.msra.mxu0 0
    %3923 = vmatprep.subr.bf16.mxu0 0
    %3924 = vmatpush1.bf16.msra.mxu0 0
    %3925 = vmatprep.subr.bf16.mxu0 0
    %3926 = vmatpush1.bf16.msra.mxu0 0
    %3927 = vmatprep.subr.bf16.mxu0 0
    %3928 = vmatpush1.bf16.msra.mxu0 0
    %3929 = vmatprep.subr.bf16.mxu0 0
    %3930 = vmatpush1.bf16.msra.mxu0 0
    %3931 = vmatprep.subr.bf16.mxu0 0
    %3932 = vmatpush1.bf16.msra.mxu0 0
    %3933 = vmatprep.subr.bf16.mxu0 0
    %3934 = vmatpush1.bf16.msra.mxu0 0
    %3935 = vmatprep.subr.bf16.mxu0 0
    %3936 = vmatpush1.bf16.msra.mxu0 0
    %3937 = vmatprep.subr.bf16.mxu0 0
    %3938 = vmatpush1.bf16.msra.mxu0 0
    %3939 = vmatprep.mubr.bf16.mxu0 0
    %3940 = vmatmul.mubr.bf16.gmra.mrb[0].mxu0 %v3899
    %v3941 = vpop.f32.mrb[0].mxu0
    %v3942 = vadd.f32 0.0, %v3941
    %v3943 = vpop.f32.mrb[0].mxu0
    %v3944 = vadd.f32 0.0, %v3943
    %v3945 = vpop.f32.mrb[0].mxu0
    %v3946 = vpop.f32.mrb[0].mxu0
    %3947 = vdwg.mxu0
    %v3948 = vadd.f32 %v3655, %v3942
    %v3949 = vadd.f32 %v3656, %v3944
    %3950 = vrot.lane.b32.xlu0 %v3663, 127
    %v3951 = vpop.permute.xlu0 %3950
    %3952 = vrot.lane.b32.xlu0 %v3665, 127
    %v3953 = vpop.permute.xlu0 %3952
    %3954 = vrot.lane.b32.xlu0 %v3668, 127
    %v3955 = vpop.permute.xlu0 %3954
    %3956 = vrot.lane.b32.xlu0 %v3670, 127
    %v3957 = vpop.permute.xlu0 %3956
    %3958 = vrot.lane.b32.xlu0 %v3673, 127
    %v3959 = vpop.permute.xlu0 %3958
    %3960 = vrot.lane.b32.xlu0 %v3675, 127
    %v3961 = vpop.permute.xlu0 %3960
    %3962 = vrot.lane.b32.xlu0 %v3678, 127
    %v3963 = vpop.permute.xlu0 %3962
    %3964 = vrot.lane.b32.xlu0 %v3680, 127
    %v3965 = vpop.permute.xlu0 %3964
    %v3974 = vcombine.low %v3951, %v3959
    %v3975 = vcombine.high %v3951, %v3959
    %v3977 = vunpack.c.l.s4 1983009808
    %v3978 = vunpack.c.0.s8 %v3977
    %v3979 = vlaneseq
    %v3980 = vshrl.u32 %v3979, 7
    %v3981 = vsub.s32 %v3978, %v3980
    %v3982 = vrot.slane %v3974, %v3981
    %v3984 = vunpack.c.l.s4 1983009808
    %v3985 = vunpack.c.0.s8 %v3984
    %v3986 = vlaneseq
    %v3987 = vshrl.u32 %v3986, 7
    %v3988 = vsub.s32 %v3985, %v3987
    %v3989 = vrot.slane %v3975, %v3988
    %v3990 = vcombine.low %v3955, %v3963
    %v3991 = vcombine.high %v3955, %v3963
    %v3993 = vunpack.c.l.s4 1983009808
    %v3994 = vunpack.c.0.s8 %v3993
    %v3995 = vlaneseq
    %v3996 = vshrl.u32 %v3995, 7
    %v3997 = vsub.s32 %v3994, %v3996
    %v3998 = vrot.slane %v3990, %v3997
    %v4000 = vunpack.c.l.s4 1983009808
    %v4001 = vunpack.c.0.s8 %v4000
    %v4002 = vlaneseq
    %v4003 = vshrl.u32 %v4002, 7
    %v4004 = vsub.s32 %v4001, %v4003
    %v4005 = vrot.slane %v3991, %v4004
    %v4006 = vcombine.low %v3982, %v3998
    %v4007 = vcombine.high %v3982, %v3998
    %v4009 = vunpack.c.l.s4 1934713408
    %v4010 = vunpack.c.0.s8 %v4009
    %v4011 = vlaneseq
    %v4012 = vshrl.u32 %v4011, 7
    %v4013 = vsub.s32 %v4010, %v4012
    %v4014 = vrot.slane %v4006, %v4013
    %v4016 = vunpack.c.l.s4 1934713408
    %v4017 = vunpack.c.0.s8 %v4016
    %v4018 = vlaneseq
    %v4019 = vshrl.u32 %v4018, 7
    %v4020 = vsub.s32 %v4017, %v4019
    %v4021 = vrot.slane %v4007, %v4020
    %v4022 = vcombine.low %v3989, %v4005
    %v4023 = vcombine.high %v3989, %v4005
    %v4025 = vunpack.c.l.s4 1934713408
    %v4026 = vunpack.c.0.s8 %v4025
    %v4027 = vlaneseq
    %v4028 = vshrl.u32 %v4027, 7
    %v4029 = vsub.s32 %v4026, %v4028
    %v4030 = vrot.slane %v4022, %v4029
    %v4032 = vunpack.c.l.s4 1934713408
    %v4033 = vunpack.c.0.s8 %v4032
    %v4034 = vlaneseq
    %v4035 = vshrl.u32 %v4034, 7
    %v4036 = vsub.s32 %v4033, %v4035
    %v4037 = vrot.slane %v4023, %v4036
    %v4038 = vcombine.high %v4014, 0.0
    %v4039 = vcombine.high %v4021, 0.0
    %v4040 = vcombine.high %v4030, 0.0
    %v4041 = vcombine.high %v4037, 0.0
    %v4042 = vcombine.low %v3953, %v3961
    %v4043 = vcombine.high %v3953, %v3961
    %v4045 = vunpack.c.l.s4 1983009808
    %v4046 = vunpack.c.0.s8 %v4045
    %v4047 = vlaneseq
    %v4048 = vshrl.u32 %v4047, 7
    %v4049 = vsub.s32 %v4046, %v4048
    %v4050 = vrot.slane %v4042, %v4049
    %v4052 = vunpack.c.l.s4 1983009808
    %v4053 = vunpack.c.0.s8 %v4052
    %v4054 = vlaneseq
    %v4055 = vshrl.u32 %v4054, 7
    %v4056 = vsub.s32 %v4053, %v4055
    %v4057 = vrot.slane %v4043, %v4056
    %v4058 = vcombine.low %v3957, %v3965
    %v4059 = vcombine.high %v3957, %v3965
    %v4061 = vunpack.c.l.s4 1983009808
    %v4062 = vunpack.c.0.s8 %v4061
    %v4063 = vlaneseq
    %v4064 = vshrl.u32 %v4063, 7
    %v4065 = vsub.s32 %v4062, %v4064
    %v4066 = vrot.slane %v4058, %v4065
    %v4068 = vunpack.c.l.s4 1983009808
    %v4069 = vunpack.c.0.s8 %v4068
    %v4070 = vlaneseq
    %v4071 = vshrl.u32 %v4070, 7
    %v4072 = vsub.s32 %v4069, %v4071
    %v4073 = vrot.slane %v4059, %v4072
    %v4074 = vcombine.low %v4050, %v4066
    %v4075 = vcombine.high %v4050, %v4066
    %v4077 = vunpack.c.l.s4 1934713408
    %v4078 = vunpack.c.0.s8 %v4077
    %v4079 = vlaneseq
    %v4080 = vshrl.u32 %v4079, 7
    %v4081 = vsub.s32 %v4078, %v4080
    %v4082 = vrot.slane %v4074, %v4081
    %v4084 = vunpack.c.l.s4 1934713408
    %v4085 = vunpack.c.0.s8 %v4084
    %v4086 = vlaneseq
    %v4087 = vshrl.u32 %v4086, 7
    %v4088 = vsub.s32 %v4085, %v4087
    %v4089 = vrot.slane %v4075, %v4088
    %v4090 = vcombine.low %v4057, %v4073
    %v4091 = vcombine.high %v4057, %v4073
    %v4093 = vunpack.c.l.s4 1934713408
    %v4094 = vunpack.c.0.s8 %v4093
    %v4095 = vlaneseq
    %v4096 = vshrl.u32 %v4095, 7
    %v4097 = vsub.s32 %v4094, %v4096
    %v4098 = vrot.slane %v4090, %v4097
    %v4100 = vunpack.c.l.s4 1934713408
    %v4101 = vunpack.c.0.s8 %v4100
    %v4102 = vlaneseq
    %v4103 = vshrl.u32 %v4102, 7
    %v4104 = vsub.s32 %v4101, %v4103
    %v4105 = vrot.slane %v4091, %v4104
    %v4106 = vcombine.high %v4082, 0.0
    %v4107 = vcombine.high %v4089, 0.0
    %v4108 = vcombine.high %v4098, 0.0
    %v4109 = vcombine.high %v4105, 0.0
    %4111 = vrot.lane.b32.xlu0 %v4038, 16
    %v4112 = vpop.permute.xlu0 %4111
    %4115 = vrot.lane.b32.xlu0 %v4021, 32
    %v4116 = vpop.permute.xlu0 %4115
    %4119 = vrot.lane.b32.xlu0 %v4039, 48
    %v4120 = vpop.permute.xlu0 %4119
    %4123 = vrot.lane.b32.xlu0 %v4030, 64
    %v4124 = vpop.permute.xlu0 %4123
    %4127 = vrot.lane.b32.xlu0 %v4040, 80
    %v4128 = vpop.permute.xlu0 %4127
    %4131 = vrot.lane.b32.xlu0 %v4037, 96
    %v4132 = vpop.permute.xlu0 %4131
    %4135 = vrot.lane.b32.xlu0 %v4041, 112
    %v4136 = vpop.permute.xlu0 %4135
    %4139 = vrot.lane.b32.xlu0 %v4106, 16
    %v4140 = vpop.permute.xlu0 %4139
    %4143 = vrot.lane.b32.xlu0 %v4089, 32
    %v4144 = vpop.permute.xlu0 %4143
    %4147 = vrot.lane.b32.xlu0 %v4107, 48
    %v4148 = vpop.permute.xlu0 %4147
    %4151 = vrot.lane.b32.xlu0 %v4098, 64
    %v4152 = vpop.permute.xlu0 %4151
    %4155 = vrot.lane.b32.xlu0 %v4108, 80
    %v4156 = vpop.permute.xlu0 %4155
    %4159 = vrot.lane.b32.xlu0 %v4105, 96
    %v4160 = vpop.permute.xlu0 %4159
    %4163 = vrot.lane.b32.xlu0 %v4109, 112
    %v4164 = vpop.permute.xlu0 %4163
    %v4166 = vsel %vm429, %v4014, %v4112
    %v4167 = vsel %vm431, %v4166, %v4116
    %v4168 = vsel %vm433, %v4167, %v4120
    %v4169 = vsel %vm435, %v4168, %v4124
    %v4170 = vsel %vm437, %v4169, %v4128
    %v4171 = vsel %vm439, %v4170, %v4132
    %v4172 = vsel %vm441, %v4171, %v4136
    %v4173 = vsel %vm429, %v4082, %v4140
    %v4174 = vsel %vm431, %v4173, %v4144
    %v4175 = vsel %vm433, %v4174, %v4148
    %v4176 = vsel %vm435, %v4175, %v4152
    %v4177 = vsel %vm437, %v4176, %v4156
    %v4178 = vsel %vm439, %v4177, %v4160
    %v4179 = vsel %vm441, %v4178, %v4164
    %v4180 = vpack.c.bf16 %v4172, %v4172
    %v4181 = vpack.c.bf16 %v4179, %v4179
    %v4182 = vld [vmem:[%s1610] sm:$0xf]
    %v4184 = vsel %vm695, %v4182, 0
    %v4187 = vsel %vm699, %v4180, 0
    %v4190 = vsel %vm699, %v4181, 0
    %4192 = vmatprep.subr.bf16.mxu0 %v4190
    %4193 = vmatpush1.bf16.msra.mxu0 %v4187
    %4194 = vmatprep.subr.bf16.mxu0 0
    %4195 = vmatpush1.bf16.msra.mxu0 0
    %4196 = vmatprep.subr.bf16.mxu0 0
    %4197 = vmatpush1.bf16.msra.mxu0 0
    %4198 = vmatprep.subr.bf16.mxu0 0
    %4199 = vmatpush1.bf16.msra.mxu0 0
    %4200 = vmatprep.subr.bf16.mxu0 0
    %4201 = vmatpush1.bf16.msra.mxu0 0
    %4202 = vmatprep.subr.bf16.mxu0 0
    %4203 = vmatpush1.bf16.msra.mxu0 0
    %4204 = vmatprep.subr.bf16.mxu0 0
    %4205 = vmatpush1.bf16.msra.mxu0 0
    %4206 = vmatprep.subr.bf16.mxu0 0
    %4207 = vmatpush1.bf16.msra.mxu0 0
    %4208 = vmatprep.subr.bf16.mxu0 0
    %4209 = vmatpush1.bf16.msra.mxu0 0
    %4210 = vmatprep.subr.bf16.mxu0 0
    %4211 = vmatpush1.bf16.msra.mxu0 0
    %4212 = vmatprep.subr.bf16.mxu0 0
    %4213 = vmatpush1.bf16.msra.mxu0 0
    %4214 = vmatprep.subr.bf16.mxu0 0
    %4215 = vmatpush1.bf16.msra.mxu0 0
    %4216 = vmatprep.subr.bf16.mxu0 0
    %4217 = vmatpush1.bf16.msra.mxu0 0
    %4218 = vmatprep.subr.bf16.mxu0 0
    %4219 = vmatpush1.bf16.msra.mxu0 0
    %4220 = vmatprep.subr.bf16.mxu0 0
    %4221 = vmatpush1.bf16.msra.mxu0 0
    %4222 = vmatprep.subr.bf16.mxu0 0
    %4223 = vmatpush1.bf16.msra.mxu0 0
    %4224 = vmatprep.mubr.bf16.mxu0 0
    %4225 = vmatmul.mubr.bf16.gmra.mrb[0].mxu0 %v4184
    %v4226 = vpop.f32.mrb[0].mxu0
    %v4227 = vadd.f32 0.0, %v4226
    %v4228 = vpop.f32.mrb[0].mxu0
    %v4229 = vadd.f32 0.0, %v4228
    %v4230 = vpop.f32.mrb[0].mxu0
    %v4231 = vpop.f32.mrb[0].mxu0
    %4232 = vdwg.mxu0
    %v4233 = vadd.f32 %v3948, %v4227
    %v4234 = vadd.f32 %v3949, %v4229
    %4235 = vrot.lane.b32.xlu0 %v3663, 126
    %v4236 = vpop.permute.xlu0 %4235
    %4237 = vrot.lane.b32.xlu0 %v3665, 126
    %v4238 = vpop.permute.xlu0 %4237
    %4239 = vrot.lane.b32.xlu0 %v3668, 126
    %v4240 = vpop.permute.xlu0 %4239
    %4241 = vrot.lane.b32.xlu0 %v3670, 126
    %v4242 = vpop.permute.xlu0 %4241
    %4243 = vrot.lane.b32.xlu0 %v3673, 126
    %v4244 = vpop.permute.xlu0 %4243
    %4245 = vrot.lane.b32.xlu0 %v3675, 126
    %v4246 = vpop.permute.xlu0 %4245
    %4247 = vrot.lane.b32.xlu0 %v3678, 126
    %v4248 = vpop.permute.xlu0 %4247
    %4249 = vrot.lane.b32.xlu0 %v3680, 126
    %v4250 = vpop.permute.xlu0 %4249
    %v4259 = vcombine.low %v4236, %v4244
    %v4260 = vcombine.high %v4236, %v4244
    %v4262 = vunpack.c.l.s4 1983009808
    %v4263 = vunpack.c.0.s8 %v4262
    %v4264 = vlaneseq
    %v4265 = vshrl.u32 %v4264, 7
    %v4266 = vsub.s32 %v4263, %v4265
    %v4267 = vrot.slane %v4259, %v4266
    %v4269 = vunpack.c.l.s4 1983009808
    %v4270 = vunpack.c.0.s8 %v4269
    %v4271 = vlaneseq
    %v4272 = vshrl.u32 %v4271, 7
    %v4273 = vsub.s32 %v4270, %v4272
    %v4274 = vrot.slane %v4260, %v4273
    %v4275 = vcombine.low %v4240, %v4248
    %v4276 = vcombine.high %v4240, %v4248
    %v4278 = vunpack.c.l.s4 1983009808
    %v4279 = vunpack.c.0.s8 %v4278
    %v4280 = vlaneseq
    %v4281 = vshrl.u32 %v4280, 7
    %v4282 = vsub.s32 %v4279, %v4281
    %v4283 = vrot.slane %v4275, %v4282
    %v4285 = vunpack.c.l.s4 1983009808
    %v4286 = vunpack.c.0.s8 %v4285
    %v4287 = vlaneseq
    %v4288 = vshrl.u32 %v4287, 7
    %v4289 = vsub.s32 %v4286, %v4288
    %v4290 = vrot.slane %v4276, %v4289
    %v4291 = vcombine.low %v4267, %v4283
    %v4292 = vcombine.high %v4267, %v4283
    %v4294 = vunpack.c.l.s4 1934713408
    %v4295 = vunpack.c.0.s8 %v4294
    %v4296 = vlaneseq
    %v4297 = vshrl.u32 %v4296, 7
    %v4298 = vsub.s32 %v4295, %v4297
    %v4299 = vrot.slane %v4291, %v4298
    %v4301 = vunpack.c.l.s4 1934713408
    %v4302 = vunpack.c.0.s8 %v4301
    %v4303 = vlaneseq
    %v4304 = vshrl.u32 %v4303, 7
    %v4305 = vsub.s32 %v4302, %v4304
    %v4306 = vrot.slane %v4292, %v4305
    %v4307 = vcombine.low %v4274, %v4290
    %v4308 = vcombine.high %v4274, %v4290
    %v4310 = vunpack.c.l.s4 1934713408
    %v4311 = vunpack.c.0.s8 %v4310
    %v4312 = vlaneseq
    %v4313 = vshrl.u32 %v4312, 7
    %v4314 = vsub.s32 %v4311, %v4313
    %v4315 = vrot.slane %v4307, %v4314
    %v4317 = vunpack.c.l.s4 1934713408
    %v4318 = vunpack.c.0.s8 %v4317
    %v4319 = vlaneseq
    %v4320 = vshrl.u32 %v4319, 7
    %v4321 = vsub.s32 %v4318, %v4320
    %v4322 = vrot.slane %v4308, %v4321
    %v4323 = vcombine.high %v4299, 0.0
    %v4324 = vcombine.high %v4306, 0.0
    %v4325 = vcombine.high %v4315, 0.0
    %v4326 = vcombine.high %v4322, 0.0
    %v4327 = vcombine.low %v4238, %v4246
    %v4328 = vcombine.high %v4238, %v4246
    %v4330 = vunpack.c.l.s4 1983009808
    %v4331 = vunpack.c.0.s8 %v4330
    %v4332 = vlaneseq
    %v4333 = vshrl.u32 %v4332, 7
    %v4334 = vsub.s32 %v4331, %v4333
    %v4335 = vrot.slane %v4327, %v4334
    %v4337 = vunpack.c.l.s4 1983009808
    %v4338 = vunpack.c.0.s8 %v4337
    %v4339 = vlaneseq
    %v4340 = vshrl.u32 %v4339, 7
    %v4341 = vsub.s32 %v4338, %v4340
    %v4342 = vrot.slane %v4328, %v4341
    %v4343 = vcombine.low %v4242, %v4250
    %v4344 = vcombine.high %v4242, %v4250
    %v4346 = vunpack.c.l.s4 1983009808
    %v4347 = vunpack.c.0.s8 %v4346
    %v4348 = vlaneseq
    %v4349 = vshrl.u32 %v4348, 7
    %v4350 = vsub.s32 %v4347, %v4349
    %v4351 = vrot.slane %v4343, %v4350
    %v4353 = vunpack.c.l.s4 1983009808
    %v4354 = vunpack.c.0.s8 %v4353
    %v4355 = vlaneseq
    %v4356 = vshrl.u32 %v4355, 7
    %v4357 = vsub.s32 %v4354, %v4356
    %v4358 = vrot.slane %v4344, %v4357
    %v4359 = vcombine.low %v4335, %v4351
    %v4360 = vcombine.high %v4335, %v4351
    %v4362 = vunpack.c.l.s4 1934713408
    %v4363 = vunpack.c.0.s8 %v4362
    %v4364 = vlaneseq
    %v4365 = vshrl.u32 %v4364, 7
    %v4366 = vsub.s32 %v4363, %v4365
    %v4367 = vrot.slane %v4359, %v4366
    %v4369 = vunpack.c.l.s4 1934713408
    %v4370 = vunpack.c.0.s8 %v4369
    %v4371 = vlaneseq
    %v4372 = vshrl.u32 %v4371, 7
    %v4373 = vsub.s32 %v4370, %v4372
    %v4374 = vrot.slane %v4360, %v4373
    %v4375 = vcombine.low %v4342, %v4358
    %v4376 = vcombine.high %v4342, %v4358
    %v4378 = vunpack.c.l.s4 1934713408
    %v4379 = vunpack.c.0.s8 %v4378
    %v4380 = vlaneseq
    %v4381 = vshrl.u32 %v4380, 7
    %v4382 = vsub.s32 %v4379, %v4381
    %v4383 = vrot.slane %v4375, %v4382
    %v4385 = vunpack.c.l.s4 1934713408
    %v4386 = vunpack.c.0.s8 %v4385
    %v4387 = vlaneseq
    %v4388 = vshrl.u32 %v4387, 7
    %v4389 = vsub.s32 %v4386, %v4388
    %v4390 = vrot.slane %v4376, %v4389
    %v4391 = vcombine.high %v4367, 0.0
    %v4392 = vcombine.high %v4374, 0.0
    %v4393 = vcombine.high %v4383, 0.0
    %v4394 = vcombine.high %v4390, 0.0
    %4396 = vrot.lane.b32.xlu0 %v4323, 16
    %v4397 = vpop.permute.xlu0 %4396
    %4400 = vrot.lane.b32.xlu0 %v4306, 32
    %v4401 = vpop.permute.xlu0 %4400
    %4404 = vrot.lane.b32.xlu0 %v4324, 48
    %v4405 = vpop.permute.xlu0 %4404
    %4408 = vrot.lane.b32.xlu0 %v4315, 64
    %v4409 = vpop.permute.xlu0 %4408
    %4412 = vrot.lane.b32.xlu0 %v4325, 80
    %v4413 = vpop.permute.xlu0 %4412
    %4416 = vrot.lane.b32.xlu0 %v4322, 96
    %v4417 = vpop.permute.xlu0 %4416
    %4420 = vrot.lane.b32.xlu0 %v4326, 112
    %v4421 = vpop.permute.xlu0 %4420
    %4424 = vrot.lane.b32.xlu0 %v4391, 16
    %v4425 = vpop.permute.xlu0 %4424
    %4428 = vrot.lane.b32.xlu0 %v4374, 32
    %v4429 = vpop.permute.xlu0 %4428
    %4432 = vrot.lane.b32.xlu0 %v4392, 48
    %v4433 = vpop.permute.xlu0 %4432
    %4436 = vrot.lane.b32.xlu0 %v4383, 64
    %v4437 = vpop.permute.xlu0 %4436
    %4440 = vrot.lane.b32.xlu0 %v4393, 80
    %v4441 = vpop.permute.xlu0 %4440
    %4444 = vrot.lane.b32.xlu0 %v4390, 96
    %v4445 = vpop.permute.xlu0 %4444
    %4448 = vrot.lane.b32.xlu0 %v4394, 112
    %v4449 = vpop.permute.xlu0 %4448
    %v4451 = vsel %vm429, %v4299, %v4397
    %v4452 = vsel %vm431, %v4451, %v4401
    %v4453 = vsel %vm433, %v4452, %v4405
    %v4454 = vsel %vm435, %v4453, %v4409
    %v4455 = vsel %vm437, %v4454, %v4413
    %v4456 = vsel %vm439, %v4455, %v4417
    %v4457 = vsel %vm441, %v4456, %v4421
    %v4458 = vsel %vm429, %v4367, %v4425
    %v4459 = vsel %vm431, %v4458, %v4429
    %v4460 = vsel %vm433, %v4459, %v4433
    %v4461 = vsel %vm435, %v4460, %v4437
    %v4462 = vsel %vm437, %v4461, %v4441
    %v4463 = vsel %vm439, %v4462, %v4445
    %v4464 = vsel %vm441, %v4463, %v4449
    %v4465 = vpack.c.bf16 %v4457, %v4457
    %v4466 = vpack.c.bf16 %v4464, %v4464
    %v4467 = vld [vmem:[%s1896] sm:$0xf]
    %v4469 = vsel %vm695, %v4467, 0
    %v4472 = vsel %vm699, %v4465, 0
    %v4475 = vsel %vm699, %v4466, 0
    %4477 = vmatprep.subr.bf16.mxu0 %v4475
    %4478 = vmatpush1.bf16.msra.mxu0 %v4472
    %4479 = vmatprep.subr.bf16.mxu0 0
    %4480 = vmatpush1.bf16.msra.mxu0 0
    %4481 = vmatprep.subr.bf16.mxu0 0
    %4482 = vmatpush1.bf16.msra.mxu0 0
    %4483 = vmatprep.subr.bf16.mxu0 0
    %4484 = vmatpush1.bf16.msra.mxu0 0
    %4485 = vmatprep.subr.bf16.mxu0 0
    %4486 = vmatpush1.bf16.msra.mxu0 0
    %4487 = vmatprep.subr.bf16.mxu0 0
    %4488 = vmatpush1.bf16.msra.mxu0 0
    %4489 = vmatprep.subr.bf16.mxu0 0
    %4490 = vmatpush1.bf16.msra.mxu0 0
    %4491 = vmatprep.subr.bf16.mxu0 0
    %4492 = vmatpush1.bf16.msra.mxu0 0
    %4493 = vmatprep.subr.bf16.mxu0 0
    %4494 = vmatpush1.bf16.msra.mxu0 0
    %4495 = vmatprep.subr.bf16.mxu0 0
    %4496 = vmatpush1.bf16.msra.mxu0 0
    %4497 = vmatprep.subr.bf16.mxu0 0
    %4498 = vmatpush1.bf16.msra.mxu0 0
    %4499 = vmatprep.subr.bf16.mxu0 0
    %4500 = vmatpush1.bf16.msra.mxu0 0
    %4501 = vmatprep.subr.bf16.mxu0 0
    %4502 = vmatpush1.bf16.msra.mxu0 0
    %4503 = vmatprep.subr.bf16.mxu0 0
    %4504 = vmatpush1.bf16.msra.mxu0 0
    %4505 = vmatprep.subr.bf16.mxu0 0
    %4506 = vmatpush1.bf16.msra.mxu0 0
    %4507 = vmatprep.subr.bf16.mxu0 0
    %4508 = vmatpush1.bf16.msra.mxu0 0
    %4509 = vmatprep.mubr.bf16.mxu0 0
    %4510 = vmatmul.mubr.bf16.gmra.mrb[0].mxu0 %v4469
    %v4511 = vpop.f32.mrb[0].mxu0
    %v4512 = vadd.f32 0.0, %v4511
    %v4513 = vpop.f32.mrb[0].mxu0
    %v4514 = vadd.f32 0.0, %v4513
    %v4515 = vpop.f32.mrb[0].mxu0
    %v4516 = vpop.f32.mrb[0].mxu0
    %4517 = vdwg.mxu0
    %v4518 = vadd.f32 %v4233, %v4512
    %v4519 = vadd.f32 %v4234, %v4514
    %v4520 = vrot.slane %v224, 2
    %v4521 = vrot.slane %v225, 2
    %v4522 = vsel %vm1950, %v4520, %v4521
    %v4523 = vrot.slane %v226, 2
    %v4524 = vsel %vm1950, %v4521, %v4523
    %v4525 = vrot.slane %v227, 2
    %v4526 = vrot.slane %v228, 2
    %v4527 = vsel %vm1950, %v4525, %v4526
    %v4528 = vrot.slane %v229, 2
    %v4529 = vsel %vm1950, %v4526, %v4528
    %v4530 = vrot.slane %v230, 2
    %v4531 = vrot.slane %v231, 2
    %v4532 = vsel %vm1950, %v4530, %v4531
    %v4533 = vrot.slane %v232, 2
    %v4534 = vsel %vm1950, %v4531, %v4533
    %v4535 = vrot.slane %v233, 2
    %v4536 = vrot.slane %v234, 2
    %v4537 = vsel %vm1950, %v4535, %v4536
    %v4538 = vrot.slane %v235, 2
    %v4539 = vsel %vm1950, %v4536, %v4538
    %v4548 = vcombine.low %v4522, %v4532
    %v4549 = vcombine.high %v4522, %v4532
    %v4551 = vunpack.c.l.s4 1983009808
    %v4552 = vunpack.c.0.s8 %v4551
    %v4553 = vlaneseq
    %v4554 = vshrl.u32 %v4553, 7
    %v4555 = vsub.s32 %v4552, %v4554
    %v4556 = vrot.slane %v4548, %v4555
    %v4558 = vunpack.c.l.s4 1983009808
    %v4559 = vunpack.c.0.s8 %v4558
    %v4560 = vlaneseq
    %v4561 = vshrl.u32 %v4560, 7
    %v4562 = vsub.s32 %v4559, %v4561
    %v4563 = vrot.slane %v4549, %v4562
    %v4564 = vcombine.low %v4527, %v4537
    %v4565 = vcombine.high %v4527, %v4537
    %v4567 = vunpack.c.l.s4 1983009808
    %v4568 = vunpack.c.0.s8 %v4567
    %v4569 = vlaneseq
    %v4570 = vshrl.u32 %v4569, 7
    %v4571 = vsub.s32 %v4568, %v4570
    %v4572 = vrot.slane %v4564, %v4571
    %v4574 = vunpack.c.l.s4 1983009808
    %v4575 = vunpack.c.0.s8 %v4574
    %v4576 = vlaneseq
    %v4577 = vshrl.u32 %v4576, 7
    %v4578 = vsub.s32 %v4575, %v4577
    %v4579 = vrot.slane %v4565, %v4578
    %v4580 = vcombine.low %v4556, %v4572
    %v4581 = vcombine.high %v4556, %v4572
    %v4583 = vunpack.c.l.s4 1934713408
    %v4584 = vunpack.c.0.s8 %v4583
    %v4585 = vlaneseq
    %v4586 = vshrl.u32 %v4585, 7
    %v4587 = vsub.s32 %v4584, %v4586
    %v4588 = vrot.slane %v4580, %v4587
    %v4590 = vunpack.c.l.s4 1934713408
    %v4591 = vunpack.c.0.s8 %v4590
    %v4592 = vlaneseq
    %v4593 = vshrl.u32 %v4592, 7
    %v4594 = vsub.s32 %v4591, %v4593
    %v4595 = vrot.slane %v4581, %v4594
    %v4596 = vcombine.low %v4563, %v4579
    %v4597 = vcombine.high %v4563, %v4579
    %v4599 = vunpack.c.l.s4 1934713408
    %v4600 = vunpack.c.0.s8 %v4599
    %v4601 = vlaneseq
    %v4602 = vshrl.u32 %v4601, 7
    %v4603 = vsub.s32 %v4600, %v4602
    %v4604 = vrot.slane %v4596, %v4603
    %v4606 = vunpack.c.l.s4 1934713408
    %v4607 = vunpack.c.0.s8 %v4606
    %v4608 = vlaneseq
    %v4609 = vshrl.u32 %v4608, 7
    %v4610 = vsub.s32 %v4607, %v4609
    %v4611 = vrot.slane %v4597, %v4610
    %v4612 = vcombine.high %v4588, 0.0
    %v4613 = vcombine.high %v4595, 0.0
    %v4614 = vcombine.high %v4604, 0.0
    %v4615 = vcombine.high %v4611, 0.0
    %v4616 = vcombine.low %v4524, %v4534
    %v4617 = vcombine.high %v4524, %v4534
    %v4619 = vunpack.c.l.s4 1983009808
    %v4620 = vunpack.c.0.s8 %v4619
    %v4621 = vlaneseq
    %v4622 = vshrl.u32 %v4621, 7
    %v4623 = vsub.s32 %v4620, %v4622
    %v4624 = vrot.slane %v4616, %v4623
    %v4626 = vunpack.c.l.s4 1983009808
    %v4627 = vunpack.c.0.s8 %v4626
    %v4628 = vlaneseq
    %v4629 = vshrl.u32 %v4628, 7
    %v4630 = vsub.s32 %v4627, %v4629
    %v4631 = vrot.slane %v4617, %v4630
    %v4632 = vcombine.low %v4529, %v4539
    %v4633 = vcombine.high %v4529, %v4539
    %v4635 = vunpack.c.l.s4 1983009808
    %v4636 = vunpack.c.0.s8 %v4635
    %v4637 = vlaneseq
    %v4638 = vshrl.u32 %v4637, 7
    %v4639 = vsub.s32 %v4636, %v4638
    %v4640 = vrot.slane %v4632, %v4639
    %v4642 = vunpack.c.l.s4 1983009808
    %v4643 = vunpack.c.0.s8 %v4642
    %v4644 = vlaneseq
    %v4645 = vshrl.u32 %v4644, 7
    %v4646 = vsub.s32 %v4643, %v4645
    %v4647 = vrot.slane %v4633, %v4646
    %v4648 = vcombine.low %v4624, %v4640
    %v4649 = vcombine.high %v4624, %v4640
    %v4651 = vunpack.c.l.s4 1934713408
    %v4652 = vunpack.c.0.s8 %v4651
    %v4653 = vlaneseq
    %v4654 = vshrl.u32 %v4653, 7
    %v4655 = vsub.s32 %v4652, %v4654
    %v4656 = vrot.slane %v4648, %v4655
    %v4658 = vunpack.c.l.s4 1934713408
    %v4659 = vunpack.c.0.s8 %v4658
    %v4660 = vlaneseq
    %v4661 = vshrl.u32 %v4660, 7
    %v4662 = vsub.s32 %v4659, %v4661
    %v4663 = vrot.slane %v4649, %v4662
    %v4664 = vcombine.low %v4631, %v4647
    %v4665 = vcombine.high %v4631, %v4647
    %v4667 = vunpack.c.l.s4 1934713408
    %v4668 = vunpack.c.0.s8 %v4667
    %v4669 = vlaneseq
    %v4670 = vshrl.u32 %v4669, 7
    %v4671 = vsub.s32 %v4668, %v4670
    %v4672 = vrot.slane %v4664, %v4671
    %v4674 = vunpack.c.l.s4 1934713408
    %v4675 = vunpack.c.0.s8 %v4674
    %v4676 = vlaneseq
    %v4677 = vshrl.u32 %v4676, 7
    %v4678 = vsub.s32 %v4675, %v4677
    %v4679 = vrot.slane %v4665, %v4678
    %v4680 = vcombine.high %v4656, 0.0
    %v4681 = vcombine.high %v4663, 0.0
    %v4682 = vcombine.high %v4672, 0.0
    %v4683 = vcombine.high %v4679, 0.0
    %4685 = vrot.lane.b32.xlu0 %v4612, 16
    %v4686 = vpop.permute.xlu0 %4685
    %4689 = vrot.lane.b32.xlu0 %v4595, 32
    %v4690 = vpop.permute.xlu0 %4689
    %4693 = vrot.lane.b32.xlu0 %v4613, 48
    %v4694 = vpop.permute.xlu0 %4693
    %4697 = vrot.lane.b32.xlu0 %v4604, 64
    %v4698 = vpop.permute.xlu0 %4697
    %4701 = vrot.lane.b32.xlu0 %v4614, 80
    %v4702 = vpop.permute.xlu0 %4701
    %4705 = vrot.lane.b32.xlu0 %v4611, 96
    %v4706 = vpop.permute.xlu0 %4705
    %4709 = vrot.lane.b32.xlu0 %v4615, 112
    %v4710 = vpop.permute.xlu0 %4709
    %4713 = vrot.lane.b32.xlu0 %v4680, 16
    %v4714 = vpop.permute.xlu0 %4713
    %4717 = vrot.lane.b32.xlu0 %v4663, 32
    %v4718 = vpop.permute.xlu0 %4717
    %4721 = vrot.lane.b32.xlu0 %v4681, 48
    %v4722 = vpop.permute.xlu0 %4721
    %4725 = vrot.lane.b32.xlu0 %v4672, 64
    %v4726 = vpop.permute.xlu0 %4725
    %4729 = vrot.lane.b32.xlu0 %v4682, 80
    %v4730 = vpop.permute.xlu0 %4729
    %4733 = vrot.lane.b32.xlu0 %v4679, 96
    %v4734 = vpop.permute.xlu0 %4733
    %4737 = vrot.lane.b32.xlu0 %v4683, 112
    %v4738 = vpop.permute.xlu0 %4737
    %v4740 = vsel %vm429, %v4588, %v4686
    %v4741 = vsel %vm431, %v4740, %v4690
    %v4742 = vsel %vm433, %v4741, %v4694
    %v4743 = vsel %vm435, %v4742, %v4698
    %v4744 = vsel %vm437, %v4743, %v4702
    %v4745 = vsel %vm439, %v4744, %v4706
    %v4746 = vsel %vm441, %v4745, %v4710
    %v4747 = vsel %vm429, %v4656, %v4714
    %v4748 = vsel %vm431, %v4747, %v4718
    %v4749 = vsel %vm433, %v4748, %v4722
    %v4750 = vsel %vm435, %v4749, %v4726
    %v4751 = vsel %vm437, %v4750, %v4730
    %v4752 = vsel %vm439, %v4751, %v4734
    %v4753 = vsel %vm441, %v4752, %v4738
    %v4754 = vpack.c.bf16 %v4746, %v4746
    %v4755 = vpack.c.bf16 %v4753, %v4753
    %v4756 = vld [vmem:[%s2187] sm:$0xf]
    %v4758 = vsel %vm695, %v4756, 0
    %v4761 = vsel %vm699, %v4754, 0
    %v4764 = vsel %vm699, %v4755, 0
    %4766 = vmatprep.subr.bf16.mxu0 %v4764
    %4767 = vmatpush1.bf16.msra.mxu0 %v4761
    %4768 = vmatprep.subr.bf16.mxu0 0
    %4769 = vmatpush1.bf16.msra.mxu0 0
    %4770 = vmatprep.subr.bf16.mxu0 0
    %4771 = vmatpush1.bf16.msra.mxu0 0
    %4772 = vmatprep.subr.bf16.mxu0 0
    %4773 = vmatpush1.bf16.msra.mxu0 0
    %4774 = vmatprep.subr.bf16.mxu0 0
    %4775 = vmatpush1.bf16.msra.mxu0 0
    %4776 = vmatprep.subr.bf16.mxu0 0
    %4777 = vmatpush1.bf16.msra.mxu0 0
    %4778 = vmatprep.subr.bf16.mxu0 0
    %4779 = vmatpush1.bf16.msra.mxu0 0
    %4780 = vmatprep.subr.bf16.mxu0 0
    %4781 = vmatpush1.bf16.msra.mxu0 0
    %4782 = vmatprep.subr.bf16.mxu0 0
    %4783 = vmatpush1.bf16.msra.mxu0 0
    %4784 = vmatprep.subr.bf16.mxu0 0
    %4785 = vmatpush1.bf16.msra.mxu0 0
    %4786 = vmatprep.subr.bf16.mxu0 0
    %4787 = vmatpush1.bf16.msra.mxu0 0
    %4788 = vmatprep.subr.bf16.mxu0 0
    %4789 = vmatpush1.bf16.msra.mxu0 0
    %4790 = vmatprep.subr.bf16.mxu0 0
    %4791 = vmatpush1.bf16.msra.mxu0 0
    %4792 = vmatprep.subr.bf16.mxu0 0
    %4793 = vmatpush1.bf16.msra.mxu0 0
    %4794 = vmatprep.subr.bf16.mxu0 0
    %4795 = vmatpush1.bf16.msra.mxu0 0
    %4796 = vmatprep.subr.bf16.mxu0 0
    %4797 = vmatpush1.bf16.msra.mxu0 0
    %4798 = vmatprep.mubr.bf16.mxu0 0
    %4799 = vmatmul.mubr.bf16.gmra.mrb[0].mxu0 %v4758
    %v4800 = vpop.f32.mrb[0].mxu0
    %v4801 = vadd.f32 0.0, %v4800
    %v4802 = vpop.f32.mrb[0].mxu0
    %v4803 = vadd.f32 0.0, %v4802
    %v4804 = vpop.f32.mrb[0].mxu0
    %v4805 = vpop.f32.mrb[0].mxu0
    %4806 = vdwg.mxu0
    %v4807 = vadd.f32 %v4518, %v4801
    %v4808 = vadd.f32 %v4519, %v4803
    %4809 = vrot.lane.b32.xlu0 %v4522, 127
    %v4810 = vpop.permute.xlu0 %4809
    %4811 = vrot.lane.b32.xlu0 %v4524, 127
    %v4812 = vpop.permute.xlu0 %4811
    %4813 = vrot.lane.b32.xlu0 %v4527, 127
    %v4814 = vpop.permute.xlu0 %4813
    %4815 = vrot.lane.b32.xlu0 %v4529, 127
    %v4816 = vpop.permute.xlu0 %4815
    %4817 = vrot.lane.b32.xlu0 %v4532, 127
    %v4818 = vpop.permute.xlu0 %4817
    %4819 = vrot.lane.b32.xlu0 %v4534, 127
    %v4820 = vpop.permute.xlu0 %4819
    %4821 = vrot.lane.b32.xlu0 %v4537, 127
    %v4822 = vpop.permute.xlu0 %4821
    %4823 = vrot.lane.b32.xlu0 %v4539, 127
    %v4824 = vpop.permute.xlu0 %4823
    %v4833 = vcombine.low %v4810, %v4818
    %v4834 = vcombine.high %v4810, %v4818
    %v4836 = vunpack.c.l.s4 1983009808
    %v4837 = vunpack.c.0.s8 %v4836
    %v4838 = vlaneseq
    %v4839 = vshrl.u32 %v4838, 7
    %v4840 = vsub.s32 %v4837, %v4839
    %v4841 = vrot.slane %v4833, %v4840
    %v4843 = vunpack.c.l.s4 1983009808
    %v4844 = vunpack.c.0.s8 %v4843
    %v4845 = vlaneseq
    %v4846 = vshrl.u32 %v4845, 7
    %v4847 = vsub.s32 %v4844, %v4846
    %v4848 = vrot.slane %v4834, %v4847
    %v4849 = vcombine.low %v4814, %v4822
    %v4850 = vcombine.high %v4814, %v4822
    %v4852 = vunpack.c.l.s4 1983009808
    %v4853 = vunpack.c.0.s8 %v4852
    %v4854 = vlaneseq
    %v4855 = vshrl.u32 %v4854, 7
    %v4856 = vsub.s32 %v4853, %v4855
    %v4857 = vrot.slane %v4849, %v4856
    %v4859 = vunpack.c.l.s4 1983009808
    %v4860 = vunpack.c.0.s8 %v4859
    %v4861 = vlaneseq
    %v4862 = vshrl.u32 %v4861, 7
    %v4863 = vsub.s32 %v4860, %v4862
    %v4864 = vrot.slane %v4850, %v4863
    %v4865 = vcombine.low %v4841, %v4857
    %v4866 = vcombine.high %v4841, %v4857
    %v4868 = vunpack.c.l.s4 1934713408
    %v4869 = vunpack.c.0.s8 %v4868
    %v4870 = vlaneseq
    %v4871 = vshrl.u32 %v4870, 7
    %v4872 = vsub.s32 %v4869, %v4871
    %v4873 = vrot.slane %v4865, %v4872
    %v4875 = vunpack.c.l.s4 1934713408
    %v4876 = vunpack.c.0.s8 %v4875
    %v4877 = vlaneseq
    %v4878 = vshrl.u32 %v4877, 7
    %v4879 = vsub.s32 %v4876, %v4878
    %v4880 = vrot.slane %v4866, %v4879
    %v4881 = vcombine.low %v4848, %v4864
    %v4882 = vcombine.high %v4848, %v4864
    %v4884 = vunpack.c.l.s4 1934713408
    %v4885 = vunpack.c.0.s8 %v4884
    %v4886 = vlaneseq
    %v4887 = vshrl.u32 %v4886, 7
    %v4888 = vsub.s32 %v4885, %v4887
    %v4889 = vrot.slane %v4881, %v4888
    %v4891 = vunpack.c.l.s4 1934713408
    %v4892 = vunpack.c.0.s8 %v4891
    %v4893 = vlaneseq
    %v4894 = vshrl.u32 %v4893, 7
    %v4895 = vsub.s32 %v4892, %v4894
    %v4896 = vrot.slane %v4882, %v4895
    %v4897 = vcombine.high %v4873, 0.0
    %v4898 = vcombine.high %v4880, 0.0
    %v4899 = vcombine.high %v4889, 0.0
    %v4900 = vcombine.high %v4896, 0.0
    %v4901 = vcombine.low %v4812, %v4820
    %v4902 = vcombine.high %v4812, %v4820
    %v4904 = vunpack.c.l.s4 1983009808
    %v4905 = vunpack.c.0.s8 %v4904
    %v4906 = vlaneseq
    %v4907 = vshrl.u32 %v4906, 7
    %v4908 = vsub.s32 %v4905, %v4907
    %v4909 = vrot.slane %v4901, %v4908
    %v4911 = vunpack.c.l.s4 1983009808
    %v4912 = vunpack.c.0.s8 %v4911
    %v4913 = vlaneseq
    %v4914 = vshrl.u32 %v4913, 7
    %v4915 = vsub.s32 %v4912, %v4914
    %v4916 = vrot.slane %v4902, %v4915
    %v4917 = vcombine.low %v4816, %v4824
    %v4918 = vcombine.high %v4816, %v4824
    %v4920 = vunpack.c.l.s4 1983009808
    %v4921 = vunpack.c.0.s8 %v4920
    %v4922 = vlaneseq
    %v4923 = vshrl.u32 %v4922, 7
    %v4924 = vsub.s32 %v4921, %v4923
    %v4925 = vrot.slane %v4917, %v4924
    %v4927 = vunpack.c.l.s4 1983009808
    %v4928 = vunpack.c.0.s8 %v4927
    %v4929 = vlaneseq
    %v4930 = vshrl.u32 %v4929, 7
    %v4931 = vsub.s32 %v4928, %v4930
    %v4932 = vrot.slane %v4918, %v4931
    %v4933 = vcombine.low %v4909, %v4925
    %v4934 = vcombine.high %v4909, %v4925
    %v4936 = vunpack.c.l.s4 1934713408
    %v4937 = vunpack.c.0.s8 %v4936
    %v4938 = vlaneseq
    %v4939 = vshrl.u32 %v4938, 7
    %v4940 = vsub.s32 %v4937, %v4939
    %v4941 = vrot.slane %v4933, %v4940
    %v4943 = vunpack.c.l.s4 1934713408
    %v4944 = vunpack.c.0.s8 %v4943
    %v4945 = vlaneseq
    %v4946 = vshrl.u32 %v4945, 7
    %v4947 = vsub.s32 %v4944, %v4946
    %v4948 = vrot.slane %v4934, %v4947
    %v4949 = vcombine.low %v4916, %v4932
    %v4950 = vcombine.high %v4916, %v4932
    %v4952 = vunpack.c.l.s4 1934713408
    %v4953 = vunpack.c.0.s8 %v4952
    %v4954 = vlaneseq
    %v4955 = vshrl.u32 %v4954, 7
    %v4956 = vsub.s32 %v4953, %v4955
    %v4957 = vrot.slane %v4949, %v4956
    %v4959 = vunpack.c.l.s4 1934713408
    %v4960 = vunpack.c.0.s8 %v4959
    %v4961 = vlaneseq
    %v4962 = vshrl.u32 %v4961, 7
    %v4963 = vsub.s32 %v4960, %v4962
    %v4964 = vrot.slane %v4950, %v4963
    %v4965 = vcombine.high %v4941, 0.0
    %v4966 = vcombine.high %v4948, 0.0
    %v4967 = vcombine.high %v4957, 0.0
    %v4968 = vcombine.high %v4964, 0.0
    %4970 = vrot.lane.b32.xlu0 %v4897, 16
    %v4971 = vpop.permute.xlu0 %4970
    %4974 = vrot.lane.b32.xlu0 %v4880, 32
    %v4975 = vpop.permute.xlu0 %4974
    %4978 = vrot.lane.b32.xlu0 %v4898, 48
    %v4979 = vpop.permute.xlu0 %4978
    %4982 = vrot.lane.b32.xlu0 %v4889, 64
    %v4983 = vpop.permute.xlu0 %4982
    %4986 = vrot.lane.b32.xlu0 %v4899, 80
    %v4987 = vpop.permute.xlu0 %4986
    %4990 = vrot.lane.b32.xlu0 %v4896, 96
    %v4991 = vpop.permute.xlu0 %4990
    %4994 = vrot.lane.b32.xlu0 %v4900, 112
    %v4995 = vpop.permute.xlu0 %4994
    %4998 = vrot.lane.b32.xlu0 %v4965, 16
    %v4999 = vpop.permute.xlu0 %4998
    %5002 = vrot.lane.b32.xlu0 %v4948, 32
    %v5003 = vpop.permute.xlu0 %5002
    %5006 = vrot.lane.b32.xlu0 %v4966, 48
    %v5007 = vpop.permute.xlu0 %5006
    %5010 = vrot.lane.b32.xlu0 %v4957, 64
    %v5011 = vpop.permute.xlu0 %5010
    %5014 = vrot.lane.b32.xlu0 %v4967, 80
    %v5015 = vpop.permute.xlu0 %5014
    %5018 = vrot.lane.b32.xlu0 %v4964, 96
    %v5019 = vpop.permute.xlu0 %5018
    %5022 = vrot.lane.b32.xlu0 %v4968, 112
    %v5023 = vpop.permute.xlu0 %5022
    %v5025 = vsel %vm429, %v4873, %v4971
    %v5026 = vsel %vm431, %v5025, %v4975
    %v5027 = vsel %vm433, %v5026, %v4979
    %v5028 = vsel %vm435, %v5027, %v4983
    %v5029 = vsel %vm437, %v5028, %v4987
    %v5030 = vsel %vm439, %v5029, %v4991
    %v5031 = vsel %vm441, %v5030, %v4995
    %v5032 = vsel %vm429, %v4941, %v4999
    %v5033 = vsel %vm431, %v5032, %v5003
    %v5034 = vsel %vm433, %v5033, %v5007
    %v5035 = vsel %vm435, %v5034, %v5011
    %v5036 = vsel %vm437, %v5035, %v5015
    %v5037 = vsel %vm439, %v5036, %v5019
    %v5038 = vsel %vm441, %v5037, %v5023
    %v5039 = vpack.c.bf16 %v5031, %v5031
    %v5040 = vpack.c.bf16 %v5038, %v5038
    %v5041 = vld [vmem:[%s2473] sm:$0xf]
    %v5043 = vsel %vm695, %v5041, 0
    %v5046 = vsel %vm699, %v5039, 0
    %v5049 = vsel %vm699, %v5040, 0
    %5051 = vmatprep.subr.bf16.mxu0 %v5049
    %5052 = vmatpush1.bf16.msra.mxu0 %v5046
    %5053 = vmatprep.subr.bf16.mxu0 0
    %5054 = vmatpush1.bf16.msra.mxu0 0
    %5055 = vmatprep.subr.bf16.mxu0 0
    %5056 = vmatpush1.bf16.msra.mxu0 0
    %5057 = vmatprep.subr.bf16.mxu0 0
    %5058 = vmatpush1.bf16.msra.mxu0 0
    %5059 = vmatprep.subr.bf16.mxu0 0
    %5060 = vmatpush1.bf16.msra.mxu0 0
    %5061 = vmatprep.subr.bf16.mxu0 0
    %5062 = vmatpush1.bf16.msra.mxu0 0
    %5063 = vmatprep.subr.bf16.mxu0 0
    %5064 = vmatpush1.bf16.msra.mxu0 0
    %5065 = vmatprep.subr.bf16.mxu0 0
    %5066 = vmatpush1.bf16.msra.mxu0 0
    %5067 = vmatprep.subr.bf16.mxu0 0
    %5068 = vmatpush1.bf16.msra.mxu0 0
    %5069 = vmatprep.subr.bf16.mxu0 0
    %5070 = vmatpush1.bf16.msra.mxu0 0
    %5071 = vmatprep.subr.bf16.mxu0 0
    %5072 = vmatpush1.bf16.msra.mxu0 0
    %5073 = vmatprep.subr.bf16.mxu0 0
    %5074 = vmatpush1.bf16.msra.mxu0 0
    %5075 = vmatprep.subr.bf16.mxu0 0
    %5076 = vmatpush1.bf16.msra.mxu0 0
    %5077 = vmatprep.subr.bf16.mxu0 0
    %5078 = vmatpush1.bf16.msra.mxu0 0
    %5079 = vmatprep.subr.bf16.mxu0 0
    %5080 = vmatpush1.bf16.msra.mxu0 0
    %5081 = vmatprep.subr.bf16.mxu0 0
    %5082 = vmatpush1.bf16.msra.mxu0 0
    %5083 = vmatprep.mubr.bf16.mxu0 0
    %5084 = vmatmul.mubr.bf16.gmra.mrb[0].mxu0 %v5043
    %v5085 = vpop.f32.mrb[0].mxu0
    %v5086 = vadd.f32 0.0, %v5085
    %v5087 = vpop.f32.mrb[0].mxu0
    %v5088 = vadd.f32 0.0, %v5087
    %v5089 = vpop.f32.mrb[0].mxu0
    %v5090 = vpop.f32.mrb[0].mxu0
    %5091 = vdwg.mxu0
    %v5092 = vadd.f32 %v4807, %v5086
    %v5093 = vadd.f32 %v4808, %v5088
    %5094 = vrot.lane.b32.xlu0 %v4522, 126
    %v5095 = vpop.permute.xlu0 %5094
    %5096 = vrot.lane.b32.xlu0 %v4524, 126
    %v5097 = vpop.permute.xlu0 %5096
    %5098 = vrot.lane.b32.xlu0 %v4527, 126
    %v5099 = vpop.permute.xlu0 %5098
    %5100 = vrot.lane.b32.xlu0 %v4529, 126
    %v5101 = vpop.permute.xlu0 %5100
    %5102 = vrot.lane.b32.xlu0 %v4532, 126
    %v5103 = vpop.permute.xlu0 %5102
    %5104 = vrot.lane.b32.xlu0 %v4534, 126
    %v5105 = vpop.permute.xlu0 %5104
    %5106 = vrot.lane.b32.xlu0 %v4537, 126
    %v5107 = vpop.permute.xlu0 %5106
    %5108 = vrot.lane.b32.xlu0 %v4539, 126
    %v5109 = vpop.permute.xlu0 %5108
    %v5118 = vcombine.low %v5095, %v5103
    %v5119 = vcombine.high %v5095, %v5103
    %v5121 = vunpack.c.l.s4 1983009808
    %v5122 = vunpack.c.0.s8 %v5121
    %v5123 = vlaneseq
    %v5124 = vshrl.u32 %v5123, 7
    %v5125 = vsub.s32 %v5122, %v5124
    %v5126 = vrot.slane %v5118, %v5125
    %v5128 = vunpack.c.l.s4 1983009808
    %v5129 = vunpack.c.0.s8 %v5128
    %v5130 = vlaneseq
    %v5131 = vshrl.u32 %v5130, 7
    %v5132 = vsub.s32 %v5129, %v5131
    %v5133 = vrot.slane %v5119, %v5132
    %v5134 = vcombine.low %v5099, %v5107
    %v5135 = vcombine.high %v5099, %v5107
    %v5137 = vunpack.c.l.s4 1983009808
    %v5138 = vunpack.c.0.s8 %v5137
    %v5139 = vlaneseq
    %v5140 = vshrl.u32 %v5139, 7
    %v5141 = vsub.s32 %v5138, %v5140
    %v5142 = vrot.slane %v5134, %v5141
    %v5144 = vunpack.c.l.s4 1983009808
    %v5145 = vunpack.c.0.s8 %v5144
    %v5146 = vlaneseq
    %v5147 = vshrl.u32 %v5146, 7
    %v5148 = vsub.s32 %v5145, %v5147
    %v5149 = vrot.slane %v5135, %v5148
    %v5150 = vcombine.low %v5126, %v5142
    %v5151 = vcombine.high %v5126, %v5142
    %v5153 = vunpack.c.l.s4 1934713408
    %v5154 = vunpack.c.0.s8 %v5153
    %v5155 = vlaneseq
    %v5156 = vshrl.u32 %v5155, 7
    %v5157 = vsub.s32 %v5154, %v5156
    %v5158 = vrot.slane %v5150, %v5157
    %v5160 = vunpack.c.l.s4 1934713408
    %v5161 = vunpack.c.0.s8 %v5160
    %v5162 = vlaneseq
    %v5163 = vshrl.u32 %v5162, 7
    %v5164 = vsub.s32 %v5161, %v5163
    %v5165 = vrot.slane %v5151, %v5164
    %v5166 = vcombine.low %v5133, %v5149
    %v5167 = vcombine.high %v5133, %v5149
    %v5169 = vunpack.c.l.s4 1934713408
    %v5170 = vunpack.c.0.s8 %v5169
    %v5171 = vlaneseq
    %v5172 = vshrl.u32 %v5171, 7
    %v5173 = vsub.s32 %v5170, %v5172
    %v5174 = vrot.slane %v5166, %v5173
    %v5176 = vunpack.c.l.s4 1934713408
    %v5177 = vunpack.c.0.s8 %v5176
    %v5178 = vlaneseq
    %v5179 = vshrl.u32 %v5178, 7
    %v5180 = vsub.s32 %v5177, %v5179
    %v5181 = vrot.slane %v5167, %v5180
    %v5182 = vcombine.high %v5158, 0.0
    %v5183 = vcombine.high %v5165, 0.0
    %v5184 = vcombine.high %v5174, 0.0
    %v5185 = vcombine.high %v5181, 0.0
    %v5186 = vcombine.low %v5097, %v5105
    %v5187 = vcombine.high %v5097, %v5105
    %v5189 = vunpack.c.l.s4 1983009808
    %v5190 = vunpack.c.0.s8 %v5189
    %v5191 = vlaneseq
    %v5192 = vshrl.u32 %v5191, 7
    %v5193 = vsub.s32 %v5190, %v5192
    %v5194 = vrot.slane %v5186, %v5193
    %v5196 = vunpack.c.l.s4 1983009808
    %v5197 = vunpack.c.0.s8 %v5196
    %v5198 = vlaneseq
    %v5199 = vshrl.u32 %v5198, 7
    %v5200 = vsub.s32 %v5197, %v5199
    %v5201 = vrot.slane %v5187, %v5200
    %v5202 = vcombine.low %v5101, %v5109
    %v5203 = vcombine.high %v5101, %v5109
    %v5205 = vunpack.c.l.s4 1983009808
    %v5206 = vunpack.c.0.s8 %v5205
    %v5207 = vlaneseq
    %v5208 = vshrl.u32 %v5207, 7
    %v5209 = vsub.s32 %v5206, %v5208
    %v5210 = vrot.slane %v5202, %v5209
    %v5212 = vunpack.c.l.s4 1983009808
    %v5213 = vunpack.c.0.s8 %v5212
    %v5214 = vlaneseq
    %v5215 = vshrl.u32 %v5214, 7
    %v5216 = vsub.s32 %v5213, %v5215
    %v5217 = vrot.slane %v5203, %v5216
    %v5218 = vcombine.low %v5194, %v5210
    %v5219 = vcombine.high %v5194, %v5210
    %v5221 = vunpack.c.l.s4 1934713408
    %v5222 = vunpack.c.0.s8 %v5221
    %v5223 = vlaneseq
    %v5224 = vshrl.u32 %v5223, 7
    %v5225 = vsub.s32 %v5222, %v5224
    %v5226 = vrot.slane %v5218, %v5225
    %v5228 = vunpack.c.l.s4 1934713408
    %v5229 = vunpack.c.0.s8 %v5228
    %v5230 = vlaneseq
    %v5231 = vshrl.u32 %v5230, 7
    %v5232 = vsub.s32 %v5229, %v5231
    %v5233 = vrot.slane %v5219, %v5232
    %v5234 = vcombine.low %v5201, %v5217
    %v5235 = vcombine.high %v5201, %v5217
    %v5237 = vunpack.c.l.s4 1934713408
    %v5238 = vunpack.c.0.s8 %v5237
    %v5239 = vlaneseq
    %v5240 = vshrl.u32 %v5239, 7
    %v5241 = vsub.s32 %v5238, %v5240
    %v5242 = vrot.slane %v5234, %v5241
    %v5244 = vunpack.c.l.s4 1934713408
    %v5245 = vunpack.c.0.s8 %v5244
    %v5246 = vlaneseq
    %v5247 = vshrl.u32 %v5246, 7
    %v5248 = vsub.s32 %v5245, %v5247
    %v5249 = vrot.slane %v5235, %v5248
    %v5250 = vcombine.high %v5226, 0.0
    %v5251 = vcombine.high %v5233, 0.0
    %v5252 = vcombine.high %v5242, 0.0
    %v5253 = vcombine.high %v5249, 0.0
    %5255 = vrot.lane.b32.xlu0 %v5182, 16
    %v5256 = vpop.permute.xlu0 %5255
    %5259 = vrot.lane.b32.xlu0 %v5165, 32
    %v5260 = vpop.permute.xlu0 %5259
    %5263 = vrot.lane.b32.xlu0 %v5183, 48
    %v5264 = vpop.permute.xlu0 %5263
    %5267 = vrot.lane.b32.xlu0 %v5174, 64
    %v5268 = vpop.permute.xlu0 %5267
    %5271 = vrot.lane.b32.xlu0 %v5184, 80
    %v5272 = vpop.permute.xlu0 %5271
    %5275 = vrot.lane.b32.xlu0 %v5181, 96
    %v5276 = vpop.permute.xlu0 %5275
    %5279 = vrot.lane.b32.xlu0 %v5185, 112
    %v5280 = vpop.permute.xlu0 %5279
    %5283 = vrot.lane.b32.xlu0 %v5250, 16
    %v5284 = vpop.permute.xlu0 %5283
    %5287 = vrot.lane.b32.xlu0 %v5233, 32
    %v5288 = vpop.permute.xlu0 %5287
    %5291 = vrot.lane.b32.xlu0 %v5251, 48
    %v5292 = vpop.permute.xlu0 %5291
    %5295 = vrot.lane.b32.xlu0 %v5242, 64
    %v5296 = vpop.permute.xlu0 %5295
    %5299 = vrot.lane.b32.xlu0 %v5252, 80
    %v5300 = vpop.permute.xlu0 %5299
    %5303 = vrot.lane.b32.xlu0 %v5249, 96
    %v5304 = vpop.permute.xlu0 %5303
    %5307 = vrot.lane.b32.xlu0 %v5253, 112
    %v5308 = vpop.permute.xlu0 %5307
    %v5310 = vsel %vm429, %v5158, %v5256
    %v5311 = vsel %vm431, %v5310, %v5260
    %v5312 = vsel %vm433, %v5311, %v5264
    %v5313 = vsel %vm435, %v5312, %v5268
    %v5314 = vsel %vm437, %v5313, %v5272
    %v5315 = vsel %vm439, %v5314, %v5276
    %v5316 = vsel %vm441, %v5315, %v5280
    %v5317 = vsel %vm429, %v5226, %v5284
    %v5318 = vsel %vm431, %v5317, %v5288
    %v5319 = vsel %vm433, %v5318, %v5292
    %v5320 = vsel %vm435, %v5319, %v5296
    %v5321 = vsel %vm437, %v5320, %v5300
    %v5322 = vsel %vm439, %v5321, %v5304
    %v5323 = vsel %vm441, %v5322, %v5308
    %v5324 = vpack.c.bf16 %v5316, %v5316
    %v5325 = vpack.c.bf16 %v5323, %v5323
    %v5326 = vld [vmem:[%s2759] sm:$0xf]
    %v5328 = vsel %vm695, %v5326, 0
    %v5331 = vsel %vm699, %v5324, 0
    %v5334 = vsel %vm699, %v5325, 0
    %5336 = vmatprep.subr.bf16.mxu0 %v5334
    %5337 = vmatpush1.bf16.msra.mxu0 %v5331
    %5338 = vmatprep.subr.bf16.mxu0 0
    %5339 = vmatpush1.bf16.msra.mxu0 0
    %5340 = vmatprep.subr.bf16.mxu0 0
    %5341 = vmatpush1.bf16.msra.mxu0 0
    %5342 = vmatprep.subr.bf16.mxu0 0
    %5343 = vmatpush1.bf16.msra.mxu0 0
    %5344 = vmatprep.subr.bf16.mxu0 0
    %5345 = vmatpush1.bf16.msra.mxu0 0
    %5346 = vmatprep.subr.bf16.mxu0 0
    %5347 = vmatpush1.bf16.msra.mxu0 0
    %5348 = vmatprep.subr.bf16.mxu0 0
    %5349 = vmatpush1.bf16.msra.mxu0 0
    %5350 = vmatprep.subr.bf16.mxu0 0
    %5351 = vmatpush1.bf16.msra.mxu0 0
    %5352 = vmatprep.subr.bf16.mxu0 0
    %5353 = vmatpush1.bf16.msra.mxu0 0
    %5354 = vmatprep.subr.bf16.mxu0 0
    %5355 = vmatpush1.bf16.msra.mxu0 0
    %5356 = vmatprep.subr.bf16.mxu0 0
    %5357 = vmatpush1.bf16.msra.mxu0 0
    %5358 = vmatprep.subr.bf16.mxu0 0
    %5359 = vmatpush1.bf16.msra.mxu0 0
    %5360 = vmatprep.subr.bf16.mxu0 0
    %5361 = vmatpush1.bf16.msra.mxu0 0
    %5362 = vmatprep.subr.bf16.mxu0 0
    %5363 = vmatpush1.bf16.msra.mxu0 0
    %5364 = vmatprep.subr.bf16.mxu0 0
    %5365 = vmatpush1.bf16.msra.mxu0 0
    %5366 = vmatprep.subr.bf16.mxu0 0
    %5367 = vmatpush1.bf16.msra.mxu0 0
    %5368 = vmatprep.mubr.bf16.mxu0 0
    %5369 = vmatmul.mubr.bf16.gmra.mrb[0].mxu0 %v5328
    %v5370 = vpop.f32.mrb[0].mxu0
    %v5371 = vadd.f32 0.0, %v5370
    %v5372 = vpop.f32.mrb[0].mxu0
    %v5373 = vadd.f32 0.0, %v5372
    %v5374 = vpop.f32.mrb[0].mxu0
    %v5375 = vpop.f32.mrb[0].mxu0
    %5376 = vdwg.mxu0
    %v5377 = vadd.f32 %v5092, %v5371
    %v5378 = vadd.f32 %v5093, %v5373
    %v5379 = vadd.f32 %v5377, %v2816
    %v5380 = vadd.f32 %v5378, %v2816
    %s5381 = scalar_lea.vmem [#allocation6], 16
    %5382 = vst [vmem:[%s5381] sm:$0xff] %v5379
    %5383 = vst [vmem:[%s5381 + $0x8] sm:$0xff] %v5380
    // Predicated region
    $region18: #{tpu_custom_call.1} parent=1 // pred_check
      _
    $region19: #{tpu_custom_call.1} parent=1 // pred_check_branch
      %5385 = sbr.rel (0) target = $region21
    $region20: #{tpu_custom_call.1} parent=1 // pred_region
      %s5387 = ssub.s32 512, 512
      %5388 = vsyncadd [#allocation5], %s5387
      %s5389 = sshll.u32 [#allocation6], 4
      %s5390 = int_to_ptr.vmem [resolvable:$true] %s5389
      %5395 = dma.vmem_to_hbm [thread:$0]  %s5390, 512, %s3, [#allocation5], 256, 256, 16
    $region21: #{tpu_custom_call.1} parent=1 // pred_fallthru
      _
    // Predicated region
    $region22: #{tpu_custom_call.1} parent=1 // pred_check
      _
    $region23: #{tpu_custom_call.1} parent=1 // pred_check_branch
      %5397 = sbr.rel (0) target = $region25
    $region24: #{tpu_custom_call.1} parent=1 // pred_region
      %5398 = dma.done [#allocation5], 512
    $region25: #{tpu_custom_call.1} parent=1 // pred_fallthru
      _
    %5399 = vsyncpa [#allocation4], 1
    %5400 = vsyncpa [#allocation5], 1

</llo_original>
